<compile_context>
chip_gen: v6e
topology: v6e:2x2x1
jax: 0.10.0
libtpu: 0.0.40
codegen_flags: <defaults>
</compile_context>

<pallas_src>
import math
import jax
import jax.numpy as jnp
from jax.experimental import pallas as pl
from jax.experimental.pallas import tpu as pltpu  # noqa: F401  (kept per convention)

# ----------------------- synthetic small RoBERTa config ---------------------
B, S, H = 2, 8, 32          # batch, seq len, hidden size
NH, HD = 4, 8               # num heads, head dim   (NH * HD == H)
I = 64                      # intermediate (FFN) size
L = 2                       # num_labels
VOCAB = 100
PAD_IDX = 1                 # RoBERTa padding_idx
MAX_POS = 16                # position-embedding table size
NUM_LAYERS = 2
LN_EPS = 1e-5
MASK_NEG = -1e9             # additive attention-mask bias for masked keys

OUT_W = 128                 # lane-dense packed output width (probs | pooled | 0)
MXU_DTYPE = jnp.bfloat16    # matmul-input dtype (f32 accumulation everywhere)


# ------------------------------ kernel helpers ------------------------------
def _layernorm(x, g, b):
    mu = jnp.mean(x, axis=-1, keepdims=True)
    var = jnp.mean((x - mu) ** 2, axis=-1, keepdims=True)
    return (x - mu) * jax.lax.rsqrt(var + LN_EPS) * g + b


def _gelu(x):
    # TODO(synk): HF RoBERTa 'gelu' is the exact erf GELU; tanh approximation
    # is used because erf lowering is not guaranteed in Mosaic.
    return jax.nn.gelu(x, approximate=True)


def _mm(a, w):
    # MXU matmul: cast LHS to the weight dtype (bf16 for encoder/head weights,
    # f32 for the exact one-hot embedding lookups), accumulate in f32.
    return jnp.dot(a.astype(w.dtype), w, preferred_element_type=jnp.float32)


# --------------------------- fused forward kernel ---------------------------
def clr_fused_kernel(ids_ref, mask_ref,
                     wemb_ref, pemb_ref, temb_ref, emb_g_ref, emb_b_ref,
                     wqkv_ref, bqkv_ref, wo_ref, bo_ref, ln1g_ref, ln1b_ref,
                     wi_ref, bi_ref, wo2_ref, bo2_ref, ln2g_ref, ln2b_ref,
                     dw_ref, db_ref, ow_ref, ob_ref,
                     out_ref):
    scale = 1.0 / math.sqrt(HD)
    ids = ids_ref[...]                                          # (B,S) int32

    # ---- RoBERTa position ids, computed in-kernel (cumsum via tri matmul) ----
    not_pad = (ids != PAD_IDX).astype(jnp.float32)              # (B,S)
    tri = (jax.lax.broadcasted_iota(jnp.int32, (S, S), 0)
           <= jax.lax.broadcasted_iota(jnp.int32, (S, S), 1)).astype(jnp.float32)
    csum = jnp.dot(not_pad, tri, preferred_element_type=jnp.float32)
    pos = (csum * not_pad).astype(jnp.int32) + PAD_IDX          # (B,S) int32

    # ---- embedding "gathers" as exact one-hot MXU matmuls ---------------------
    voc_iota = jax.lax.broadcasted_iota(jnp.int32, (B, S, VOCAB), 2)
    w_oh = (voc_iota == ids[:, :, None]).astype(jnp.float32).reshape(B * S, VOCAB)
    pos_iota = jax.lax.broadcasted_iota(jnp.int32, (B, S, MAX_POS), 2)
    p_oh = (pos_iota == pos[:, :, None]).astype(jnp.float32).reshape(B * S, MAX_POS)

    x = _mm(w_oh, wemb_ref[...]) + _mm(p_oh, pemb_ref[...]) + temb_ref[...]
    x = _layernorm(x, emb_g_ref[...], emb_b_ref[...])           # (B*S, H)

    # ---- additive attention-mask bias, hoisted out of the layer loop ----------
    bias = (1.0 - mask_ref[...].astype(jnp.float32)) * MASK_NEG  # (B,S)
    bias = jnp.broadcast_to(bias[:, None, None, :], (B, NH, 1, S)).reshape(B * NH, 1, S)

    # ---- encoder layers (statically unrolled; weights stacked on leading dim) --
    for l in range(NUM_LAYERS):
        # fused QKV projection: one (B*S,H) x (H,3H) matmul
        qkv = _mm(x, wqkv_ref[l]) + bqkv_ref[l]                  # (B*S, 3H)
        qkv = qkv.reshape(B, S, 3 * NH, HD)
        q = qkv[:, :, :NH, :].transpose(0, 2, 1, 3).reshape(B * NH, S, HD)
        k = qkv[:, :, NH:2 * NH, :].transpose(0, 2, 1, 3).reshape(B * NH, S, HD)
        v = qkv[:, :, 2 * NH:, :].transpose(0, 2, 1, 3).reshape(B * NH, S, HD)

        # merged-batch attention: one einsum pair for all heads
        s = jnp.einsum('bqd,bkd->bqk', q.astype(MXU_DTYPE), k.astype(MXU_DTYPE),
                       preferred_element_type=jnp.float32) * scale + bias
        m = jnp.max(s, axis=-1, keepdims=True)
        e = jnp.exp(s - m)
        p = e * pl.reciprocal(jnp.sum(e, axis=-1, keepdims=True), approx=True)
        ctx = jnp.einsum('bqk,bkd->bqd', p.astype(MXU_DTYPE), v.astype(MXU_DTYPE),
                         preferred_element_type=jnp.float32)     # (B*NH, S, HD)
        ctx = ctx.reshape(B, NH, S, HD).transpose(0, 2, 1, 3).reshape(B * S, H)

        attn = _mm(ctx, wo_ref[l]) + bo_ref[l]
        x1 = _layernorm(x + attn, ln1g_ref[l], ln1b_ref[l])

        inter = _gelu(_mm(x1, wi_ref[l]) + bi_ref[l])
        ffn = _mm(inter, wo2_ref[l]) + bo2_ref[l]
        x = _layernorm(x1 + ffn, ln2g_ref[l], ln2b_ref[l])

    # ---- classification head: CLS -> dense -> tanh -> out_proj -> softmax -----
    cls = x.reshape(B, S, H)[:, 0, :]                            # sequence_output[:,0,:]
    t = jnp.tanh(_mm(cls, dw_ref[...]) + db_ref[...])
    logits = _mm(t, ow_ref[...]) + ob_ref[...]
    m = jnp.max(logits, axis=-1, keepdims=True)
    e = jnp.exp(logits - m)
    probs = e / jnp.sum(e, axis=-1, keepdims=True)               # (B,L), exact divide

    # ---- single lane-dense (B,128) packed store: [probs | pooled CLS | zeros] --
    pad = jnp.zeros((B, OUT_W - L - H), jnp.float32)
    out_ref[...] = jnp.concatenate([probs, cls, pad], axis=-1)


# ------------------------------- full forward --------------------------------
@jax.jit
def clr_forward(input_ids, attention_mask, params):
    packed = pl.pallas_call(
        clr_fused_kernel,
        out_shape=jax.ShapeDtypeStruct((B, OUT_W), jnp.float32),
    )(input_ids.astype(jnp.int32), attention_mask.astype(jnp.int32),
      params["word_emb"], params["pos_emb"], params["type_emb"],
      params["emb_ln_g"], params["emb_ln_b"],
      params["wqkv"], params["bqkv"], params["wo"], params["bo"],
      params["ln1_g"], params["ln1_b"],
      params["wi"], params["bi"], params["wo2"], params["bo2"],
      params["ln2_g"], params["ln2_b"],
      params["cls_dense_w"], params["cls_dense_b"],
      params["cls_out_w"], params["cls_out_b"])
    probs = packed[:, :L]
    pooled = packed[:, L:L + H]
    return probs, pooled


# ------------------------------ parameter init --------------------------------
def init_params(key):
    def nrm(k, shape, dtype=jnp.float32):
        return (0.02 * jax.random.normal(k, shape, jnp.float32)).astype(dtype)

    keys = iter(jax.random.split(key, 32))
    return {
        # embedding tables stay f32 so the one-hot lookups are exact
        "word_emb": nrm(next(keys), (VOCAB, H)),
        "pos_emb": nrm(next(keys), (MAX_POS, H)),
        "type_emb": nrm(next(keys), (1, H)),
        "emb_ln_g": jnp.ones((1, H), jnp.float32),
        "emb_ln_b": jnp.zeros((1, H), jnp.float32),
        # per-layer matmul weights stacked on a leading NUM_LAYERS axis, stored
        # in the MXU input dtype (bf16); biases / LN params stay f32.
        "wqkv": nrm(next(keys), (NUM_LAYERS, H, 3 * H), MXU_DTYPE),
        "bqkv": nrm(next(keys), (NUM_LAYERS, 1, 3 * H)),
        "wo": nrm(next(keys), (NUM_LAYERS, H, H), MXU_DTYPE),
        "bo": nrm(next(keys), (NUM_LAYERS, 1, H)),
        "ln1_g": jnp.ones((NUM_LAYERS, 1, H), jnp.float32),
        "ln1_b": jnp.zeros((NUM_LAYERS, 1, H), jnp.float32),
        "wi": nrm(next(keys), (NUM_LAYERS, H, I), MXU_DTYPE),
        "bi": nrm(next(keys), (NUM_LAYERS, 1, I)),
        "wo2": nrm(next(keys), (NUM_LAYERS, I, H), MXU_DTYPE),
        "bo2": nrm(next(keys), (NUM_LAYERS, 1, H)),
        "ln2_g": jnp.ones((NUM_LAYERS, 1, H), jnp.float32),
        "ln2_b": jnp.zeros((NUM_LAYERS, 1, H), jnp.float32),
        "cls_dense_w": nrm(next(keys), (H, H), MXU_DTYPE),
        "cls_dense_b": nrm(next(keys), (1, H)),
        "cls_out_w": nrm(next(keys), (H, L), MXU_DTYPE),
        "cls_out_b": nrm(next(keys), (1, L)),
    }


if __name__ == "__main__":
    root = jax.random.PRNGKey(0)
    k_param, k_ids = jax.random.split(root)
    params = init_params(k_param)

    # deterministic example inputs: tokens in [2, VOCAB); pad tail of 2nd row
    input_ids = jax.random.randint(k_ids, (B, S), 2, VOCAB, dtype=jnp.int32)
    input_ids = input_ids.at[1, -3:].set(PAD_IDX)
    attention_mask = (input_ids != PAD_IDX).astype(jnp.int32)

    probs, pooled = clr_forward(input_ids, attention_mask, params)
    probs = jax.block_until_ready(probs)
    pooled = jax.block_until_ready(pooled)

    assert probs.shape == (B, L) and pooled.shape == (B, H)
    assert bool(jnp.all(jnp.isfinite(probs))) and bool(jnp.all(jnp.isfinite(pooled)))
    assert bool(jnp.allclose(jnp.sum(probs, axis=-1), 1.0, atol=1e-5))
    print("KERNEL_OK")
</pallas_src>

<mosaic_0001>
module attributes {stable_mosaic.version = 11 : i64} {
  func.func @clr_fused_kernel(%arg0: memref<2x8xi32, #tpu.memory_space<vmem>>, %arg1: memref<2x8xi32, #tpu.memory_space<vmem>>, %arg2: memref<100x32xf32, #tpu.memory_space<vmem>>, %arg3: memref<16x32xf32, #tpu.memory_space<vmem>>, %arg4: memref<1x32xf32, #tpu.memory_space<vmem>>, %arg5: memref<1x32xf32, #tpu.memory_space<vmem>>, %arg6: memref<1x32xf32, #tpu.memory_space<vmem>>, %arg7: memref<2x32x96xbf16, #tpu.memory_space<vmem>>, %arg8: memref<2x1x96xf32, #tpu.memory_space<vmem>>, %arg9: memref<2x32x32xbf16, #tpu.memory_space<vmem>>, %arg10: memref<2x1x32xf32, #tpu.memory_space<vmem>>, %arg11: memref<2x1x32xf32, #tpu.memory_space<vmem>>, %arg12: memref<2x1x32xf32, #tpu.memory_space<vmem>>, %arg13: memref<2x32x64xbf16, #tpu.memory_space<vmem>>, %arg14: memref<2x1x64xf32, #tpu.memory_space<vmem>>, %arg15: memref<2x64x32xbf16, #tpu.memory_space<vmem>>, %arg16: memref<2x1x32xf32, #tpu.memory_space<vmem>>, %arg17: memref<2x1x32xf32, #tpu.memory_space<vmem>>, %arg18: memref<2x1x32xf32, #tpu.memory_space<vmem>>, %arg19: memref<32x32xbf16, #tpu.memory_space<vmem>>, %arg20: memref<1x32xf32, #tpu.memory_space<vmem>>, %arg21: memref<32x2xbf16, #tpu.memory_space<vmem>>, %arg22: memref<1x2xf32, #tpu.memory_space<vmem>>, %arg23: memref<2x128xf32, #tpu.memory_space<vmem>>) attributes {dimension_semantics = [], scalar_prefetch = 0 : i64, scratch_operands = 0 : i64, tpu.core_type = #tpu.core_type<tc>} {
    %c0 = arith.constant 0 : index
    %c0_0 = arith.constant 0 : index
    %0 = vector.load %arg0[%c0, %c0_0] : memref<2x8xi32, #tpu.memory_space<vmem>>, vector<2x8xi32>
    %c1_i32 = arith.constant 1 : i32
    %1 = vector.broadcast %c1_i32 : i32 to vector<2x8xi32>
    %2 = arith.cmpi ne, %0, %1 : vector<2x8xi32>
    %3 = arith.extui %2 : vector<2x8xi1> to vector<2x8xi32>
    %4 = arith.sitofp %3 : vector<2x8xi32> to vector<2x8xf32>
    %5 = tpu.iota {dimensions = array<i32: 0>} : vector<8x8xi32>
    %6 = tpu.iota {dimensions = array<i32: 1>} : vector<8x8xi32>
    %7 = arith.cmpi sle, %5, %6 : vector<8x8xi32>
    %8 = arith.extui %7 : vector<8x8xi1> to vector<8x8xi32>
    %9 = arith.sitofp %8 : vector<8x8xi32> to vector<8x8xf32>
    %cst = arith.constant dense<0.000000e+00> : vector<2x8xf32>
    %10 = tpu.matmul %4, %9, %cst {dimension_numbers = #tpu.dot_dimension_numbers<[1], [0], [0], [1], [0, 0, 1, 1], [], []>} : vector<2x8xf32>, vector<8x8xf32>, vector<2x8xf32> -> vector<2x8xf32>
    %11 = arith.mulf %10, %4 : vector<2x8xf32>
    %12 = arith.fptosi %11 : vector<2x8xf32> to vector<2x8xi32>
    %c1_i32_1 = arith.constant 1 : i32
    %13 = vector.broadcast %c1_i32_1 : i32 to vector<2x8xi32>
    %14 = arith.addi %12, %13 : vector<2x8xi32>
    %15 = tpu.iota {dimensions = array<i32: 2>} : vector<2x8x100xi32>
    %16 = vector.shape_cast %0 : vector<2x8xi32> to vector<2x8x1xi32>
    %17 = vector.broadcast %16 : vector<2x8x1xi32> to vector<2x8x100xi32>
    %18 = arith.cmpi eq, %15, %17 : vector<2x8x100xi32>
    %19 = arith.extui %18 : vector<2x8x100xi1> to vector<2x8x100xi32>
    %20 = arith.sitofp %19 : vector<2x8x100xi32> to vector<2x8x100xf32>
    %21 = vector.shape_cast %20 : vector<2x8x100xf32> to vector<16x100xf32>
    %22 = tpu.iota {dimensions = array<i32: 2>} : vector<2x8x16xi32>
    %23 = vector.shape_cast %14 : vector<2x8xi32> to vector<2x8x1xi32>
    %24 = vector.broadcast %23 : vector<2x8x1xi32> to vector<2x8x16xi32>
    %25 = arith.cmpi eq, %22, %24 : vector<2x8x16xi32>
    %26 = arith.extui %25 : vector<2x8x16xi1> to vector<2x8x16xi32>
    %27 = arith.sitofp %26 : vector<2x8x16xi32> to vector<2x8x16xf32>
    %28 = vector.shape_cast %27 : vector<2x8x16xf32> to vector<16x16xf32>
    %c0_2 = arith.constant 0 : index
    %c0_3 = arith.constant 0 : index
    %29 = vector.load %arg2[%c0_2, %c0_3] : memref<100x32xf32, #tpu.memory_space<vmem>>, vector<100x32xf32>
    %cst_4 = arith.constant dense<0.000000e+00> : vector<16x32xf32>
    %30 = tpu.matmul %21, %29, %cst_4 {dimension_numbers = #tpu.dot_dimension_numbers<[1], [0], [0], [1], [0, 0, 1, 1], [], []>} : vector<16x100xf32>, vector<100x32xf32>, vector<16x32xf32> -> vector<16x32xf32>
    %c0_5 = arith.constant 0 : index
    %c0_6 = arith.constant 0 : index
    %31 = vector.load %arg3[%c0_5, %c0_6] : memref<16x32xf32, #tpu.memory_space<vmem>>, vector<16x32xf32>
    %cst_7 = arith.constant dense<0.000000e+00> : vector<16x32xf32>
    %32 = tpu.matmul %28, %31, %cst_7 {dimension_numbers = #tpu.dot_dimension_numbers<[1], [0], [0], [1], [0, 0, 1, 1], [], []>} : vector<16x16xf32>, vector<16x32xf32>, vector<16x32xf32> -> vector<16x32xf32>
    %33 = arith.addf %30, %32 : vector<16x32xf32>
    %c0_8 = arith.constant 0 : index
    %c0_9 = arith.constant 0 : index
    %34 = vector.load %arg4[%c0_8, %c0_9] : memref<1x32xf32, #tpu.memory_space<vmem>>, vector<1x32xf32>
    %35 = vector.broadcast %34 : vector<1x32xf32> to vector<16x32xf32>
    %36 = arith.addf %33, %35 : vector<16x32xf32>
    %c0_10 = arith.constant 0 : index
    %c0_11 = arith.constant 0 : index
    %37 = vector.load %arg5[%c0_10, %c0_11] : memref<1x32xf32, #tpu.memory_space<vmem>>, vector<1x32xf32>
    %c0_12 = arith.constant 0 : index
    %c0_13 = arith.constant 0 : index
    %38 = vector.load %arg6[%c0_12, %c0_13] : memref<1x32xf32, #tpu.memory_space<vmem>>, vector<1x32xf32>
    %cst_14 = arith.constant dense<0.000000e+00> : vector<16xf32>
    %39 = vector.multi_reduction <add>, %36, %cst_14 [1] : vector<16x32xf32> to vector<16xf32>
    %40 = vector.shape_cast %39 : vector<16xf32> to vector<16x1xf32>
    %cst_15 = arith.constant 3.200000e+01 : f32
    %41 = vector.broadcast %cst_15 : f32 to vector<16x1xf32>
    %42 = arith.divf %40, %41 : vector<16x1xf32>
    %43 = vector.broadcast %42 : vector<16x1xf32> to vector<16x32xf32>
    %44 = arith.subf %36, %43 : vector<16x32xf32>
    %45 = arith.mulf %44, %44 : vector<16x32xf32>
    %cst_16 = arith.constant dense<0.000000e+00> : vector<16xf32>
    %46 = vector.multi_reduction <add>, %45, %cst_16 [1] : vector<16x32xf32> to vector<16xf32>
    %47 = vector.shape_cast %46 : vector<16xf32> to vector<16x1xf32>
    %cst_17 = arith.constant 3.200000e+01 : f32
    %48 = vector.broadcast %cst_17 : f32 to vector<16x1xf32>
    %49 = arith.divf %47, %48 : vector<16x1xf32>
    %50 = vector.broadcast %42 : vector<16x1xf32> to vector<16x32xf32>
    %51 = arith.subf %36, %50 : vector<16x32xf32>
    %cst_18 = arith.constant 9.99999974E-6 : f32
    %52 = vector.broadcast %cst_18 : f32 to vector<16x1xf32>
    %53 = arith.addf %49, %52 : vector<16x1xf32>
    %54 = math.rsqrt %53 : vector<16x1xf32>
    %55 = vector.broadcast %54 : vector<16x1xf32> to vector<16x32xf32>
    %56 = arith.mulf %51, %55 : vector<16x32xf32>
    %57 = vector.broadcast %37 : vector<1x32xf32> to vector<16x32xf32>
    %58 = arith.mulf %56, %57 : vector<16x32xf32>
    %59 = vector.broadcast %38 : vector<1x32xf32> to vector<16x32xf32>
    %60 = arith.addf %58, %59 : vector<16x32xf32>
    %c0_19 = arith.constant 0 : index
    %c0_20 = arith.constant 0 : index
    %61 = vector.load %arg1[%c0_19, %c0_20] : memref<2x8xi32, #tpu.memory_space<vmem>>, vector<2x8xi32>
    %62 = arith.sitofp %61 : vector<2x8xi32> to vector<2x8xf32>
    %cst_21 = arith.constant 1.000000e+00 : f32
    %63 = vector.broadcast %cst_21 : f32 to vector<2x8xf32>
    %64 = arith.subf %63, %62 : vector<2x8xf32>
    %cst_22 = arith.constant -1.000000e+09 : f32
    %65 = vector.broadcast %cst_22 : f32 to vector<2x8xf32>
    %66 = arith.mulf %64, %65 : vector<2x8xf32>
    %67 = vector.shape_cast %66 : vector<2x8xf32> to vector<2x1x1x8xf32>
    %68 = vector.shape_cast %67 : vector<2x1x1x8xf32> to vector<2x1x1x8xf32>
    %69 = vector.broadcast %68 : vector<2x1x1x8xf32> to vector<2x4x1x8xf32>
    %70 = vector.shape_cast %69 : vector<2x4x1x8xf32> to vector<8x1x8xf32>
    %c0_23 = arith.constant 0 : index
    %c0_24 = arith.constant 0 : index
    %c0_25 = arith.constant 0 : index
    %71 = vector.load %arg7[%c0_23, %c0_24, %c0_25] : memref<2x32x96xbf16, #tpu.memory_space<vmem>>, vector<1x32x96xbf16>
    %72 = vector.shape_cast %71 : vector<1x32x96xbf16> to vector<32x96xbf16>
    %73 = arith.truncf %60 : vector<16x32xf32> to vector<16x32xbf16>
    %cst_26 = arith.constant dense<0.000000e+00> : vector<16x96xf32>
    %74 = tpu.matmul %73, %72, %cst_26 {dimension_numbers = #tpu.dot_dimension_numbers<[1], [0], [0], [1], [0, 0, 1, 1], [], []>} : vector<16x32xbf16>, vector<32x96xbf16>, vector<16x96xf32> -> vector<16x96xf32>
    %c0_27 = arith.constant 0 : index
    %c0_28 = arith.constant 0 : index
    %c0_29 = arith.constant 0 : index
    %75 = vector.load %arg8[%c0_27, %c0_28, %c0_29] : memref<2x1x96xf32, #tpu.memory_space<vmem>>, vector<1x1x96xf32>
    %76 = vector.shape_cast %75 : vector<1x1x96xf32> to vector<1x96xf32>
    %77 = vector.broadcast %76 : vector<1x96xf32> to vector<16x96xf32>
    %78 = arith.addf %74, %77 : vector<16x96xf32>
    %79 = vector.shape_cast %78 : vector<16x96xf32> to vector<2x8x12x8xf32>
    %80 = vector.extract_strided_slice %79 {offsets = [0, 0, 0, 0], sizes = [2, 8, 4, 8], strides = [1, 1, 1, 1]} : vector<2x8x12x8xf32> to vector<2x8x4x8xf32>
    %81 = tpu.transpose %80, [0, 2, 1, 3] : vector<2x8x4x8xf32> -> vector<2x4x8x8xf32>
    %82 = vector.shape_cast %81 : vector<2x4x8x8xf32> to vector<8x8x8xf32>
    %83 = vector.extract_strided_slice %79 {offsets = [0, 0, 4, 0], sizes = [2, 8, 4, 8], strides = [1, 1, 1, 1]} : vector<2x8x12x8xf32> to vector<2x8x4x8xf32>
    %84 = tpu.transpose %83, [0, 2, 1, 3] : vector<2x8x4x8xf32> -> vector<2x4x8x8xf32>
    %85 = vector.shape_cast %84 : vector<2x4x8x8xf32> to vector<8x8x8xf32>
    %86 = vector.extract_strided_slice %79 {offsets = [0, 0, 8, 0], sizes = [2, 8, 4, 8], strides = [1, 1, 1, 1]} : vector<2x8x12x8xf32> to vector<2x8x4x8xf32>
    %87 = tpu.transpose %86, [0, 2, 1, 3] : vector<2x8x4x8xf32> -> vector<2x4x8x8xf32>
    %88 = vector.shape_cast %87 : vector<2x4x8x8xf32> to vector<8x8x8xf32>
    %89 = arith.truncf %82 : vector<8x8x8xf32> to vector<8x8x8xbf16>
    %90 = arith.truncf %85 : vector<8x8x8xf32> to vector<8x8x8xbf16>
    "tpu.trace_start"() <{level = 10 : i32, message = "bqd,bkd->bqk"}> : () -> ()
    %cst_30 = arith.constant dense<0.000000e+00> : vector<8x8x8xf32>
    %91 = tpu.matmul %89, %90, %cst_30 {dimension_numbers = #tpu.dot_dimension_numbers<[2], [2], [1], [1], [0, 0, 0, 1, 1, 1], [0], [0]>} : vector<8x8x8xbf16>, vector<8x8x8xbf16>, vector<8x8x8xf32> -> vector<8x8x8xf32>
    "tpu.trace_stop"() : () -> ()
    %cst_31 = arith.constant 0.353553385 : f32
    %92 = vector.broadcast %cst_31 : f32 to vector<8x8x8xf32>
    %93 = arith.mulf %91, %92 : vector<8x8x8xf32>
    %94 = vector.broadcast %70 : vector<8x1x8xf32> to vector<8x8x8xf32>
    %95 = arith.addf %93, %94 : vector<8x8x8xf32>
    %cst_32 = arith.constant dense<0xFF800000> : vector<8x8xf32>
    %96 = vector.multi_reduction <maximumf>, %95, %cst_32 [2] : vector<8x8x8xf32> to vector<8x8xf32>
    %97 = vector.shape_cast %96 : vector<8x8xf32> to vector<8x8x1xf32>
    %98 = vector.broadcast %97 : vector<8x8x1xf32> to vector<8x8x8xf32>
    %99 = arith.subf %95, %98 : vector<8x8x8xf32>
    %100 = math.exp %99 : vector<8x8x8xf32>
    %cst_33 = arith.constant dense<0.000000e+00> : vector<8x8xf32>
    %101 = vector.multi_reduction <add>, %100, %cst_33 [2] : vector<8x8x8xf32> to vector<8x8xf32>
    %102 = vector.shape_cast %101 : vector<8x8xf32> to vector<8x8x1xf32>
    %103 = tpu.reciprocal %102 {approx = true} : vector<8x8x1xf32> -> vector<8x8x1xf32>
    %104 = vector.broadcast %103 : vector<8x8x1xf32> to vector<8x8x8xf32>
    %105 = arith.mulf %100, %104 : vector<8x8x8xf32>
    %106 = arith.truncf %105 : vector<8x8x8xf32> to vector<8x8x8xbf16>
    %107 = arith.truncf %88 : vector<8x8x8xf32> to vector<8x8x8xbf16>
    "tpu.trace_start"() <{level = 10 : i32, message = "bqk,bkd->bqd"}> : () -> ()
    %cst_34 = arith.constant dense<0.000000e+00> : vector<8x8x8xf32>
    %108 = tpu.matmul %106, %107, %cst_34 {dimension_numbers = #tpu.dot_dimension_numbers<[2], [1], [1], [2], [0, 0, 0, 1, 1, 2], [0], [0]>} : vector<8x8x8xbf16>, vector<8x8x8xbf16>, vector<8x8x8xf32> -> vector<8x8x8xf32>
    "tpu.trace_stop"() : () -> ()
    %109 = vector.shape_cast %108 : vector<8x8x8xf32> to vector<2x4x8x8xf32>
    %110 = tpu.transpose %109, [0, 2, 1, 3] : vector<2x4x8x8xf32> -> vector<2x8x4x8xf32>
    %111 = vector.shape_cast %110 : vector<2x8x4x8xf32> to vector<16x32xf32>
    %c0_35 = arith.constant 0 : index
    %c0_36 = arith.constant 0 : index
    %c0_37 = arith.constant 0 : index
    %112 = vector.load %arg9[%c0_35, %c0_36, %c0_37] : memref<2x32x32xbf16, #tpu.memory_space<vmem>>, vector<1x32x32xbf16>
    %113 = vector.shape_cast %112 : vector<1x32x32xbf16> to vector<32x32xbf16>
    %114 = arith.truncf %111 : vector<16x32xf32> to vector<16x32xbf16>
    %cst_38 = arith.constant dense<0.000000e+00> : vector<16x32xf32>
    %115 = tpu.matmul %114, %113, %cst_38 {dimension_numbers = #tpu.dot_dimension_numbers<[1], [0], [0], [1], [0, 0, 1, 1], [], []>} : vector<16x32xbf16>, vector<32x32xbf16>, vector<16x32xf32> -> vector<16x32xf32>
    %c0_39 = arith.constant 0 : index
    %c0_40 = arith.constant 0 : index
    %c0_41 = arith.constant 0 : index
    %116 = vector.load %arg10[%c0_39, %c0_40, %c0_41] : memref<2x1x32xf32, #tpu.memory_space<vmem>>, vector<1x1x32xf32>
    %117 = vector.shape_cast %116 : vector<1x1x32xf32> to vector<1x32xf32>
    %118 = vector.broadcast %117 : vector<1x32xf32> to vector<16x32xf32>
    %119 = arith.addf %115, %118 : vector<16x32xf32>
    %120 = arith.addf %60, %119 : vector<16x32xf32>
    %c0_42 = arith.constant 0 : index
    %c0_43 = arith.constant 0 : index
    %c0_44 = arith.constant 0 : index
    %121 = vector.load %arg11[%c0_42, %c0_43, %c0_44] : memref<2x1x32xf32, #tpu.memory_space<vmem>>, vector<1x1x32xf32>
    %122 = vector.shape_cast %121 : vector<1x1x32xf32> to vector<1x32xf32>
    %c0_45 = arith.constant 0 : index
    %c0_46 = arith.constant 0 : index
    %c0_47 = arith.constant 0 : index
    %123 = vector.load %arg12[%c0_45, %c0_46, %c0_47] : memref<2x1x32xf32, #tpu.memory_space<vmem>>, vector<1x1x32xf32>
    %124 = vector.shape_cast %123 : vector<1x1x32xf32> to vector<1x32xf32>
    %cst_48 = arith.constant dense<0.000000e+00> : vector<16xf32>
    %125 = vector.multi_reduction <add>, %120, %cst_48 [1] : vector<16x32xf32> to vector<16xf32>
    %126 = vector.shape_cast %125 : vector<16xf32> to vector<16x1xf32>
    %cst_49 = arith.constant 3.200000e+01 : f32
    %127 = vector.broadcast %cst_49 : f32 to vector<16x1xf32>
    %128 = arith.divf %126, %127 : vector<16x1xf32>
    %129 = vector.broadcast %128 : vector<16x1xf32> to vector<16x32xf32>
    %130 = arith.subf %120, %129 : vector<16x32xf32>
    %131 = arith.mulf %130, %130 : vector<16x32xf32>
    %cst_50 = arith.constant dense<0.000000e+00> : vector<16xf32>
    %132 = vector.multi_reduction <add>, %131, %cst_50 [1] : vector<16x32xf32> to vector<16xf32>
    %133 = vector.shape_cast %132 : vector<16xf32> to vector<16x1xf32>
    %cst_51 = arith.constant 3.200000e+01 : f32
    %134 = vector.broadcast %cst_51 : f32 to vector<16x1xf32>
    %135 = arith.divf %133, %134 : vector<16x1xf32>
    %136 = vector.broadcast %128 : vector<16x1xf32> to vector<16x32xf32>
    %137 = arith.subf %120, %136 : vector<16x32xf32>
    %cst_52 = arith.constant 9.99999974E-6 : f32
    %138 = vector.broadcast %cst_52 : f32 to vector<16x1xf32>
    %139 = arith.addf %135, %138 : vector<16x1xf32>
    %140 = math.rsqrt %139 : vector<16x1xf32>
    %141 = vector.broadcast %140 : vector<16x1xf32> to vector<16x32xf32>
    %142 = arith.mulf %137, %141 : vector<16x32xf32>
    %143 = vector.broadcast %122 : vector<1x32xf32> to vector<16x32xf32>
    %144 = arith.mulf %142, %143 : vector<16x32xf32>
    %145 = vector.broadcast %124 : vector<1x32xf32> to vector<16x32xf32>
    %146 = arith.addf %144, %145 : vector<16x32xf32>
    %c0_53 = arith.constant 0 : index
    %c0_54 = arith.constant 0 : index
    %c0_55 = arith.constant 0 : index
    %147 = vector.load %arg13[%c0_53, %c0_54, %c0_55] : memref<2x32x64xbf16, #tpu.memory_space<vmem>>, vector<1x32x64xbf16>
    %148 = vector.shape_cast %147 : vector<1x32x64xbf16> to vector<32x64xbf16>
    %149 = arith.truncf %146 : vector<16x32xf32> to vector<16x32xbf16>
    %cst_56 = arith.constant dense<0.000000e+00> : vector<16x64xf32>
    %150 = tpu.matmul %149, %148, %cst_56 {dimension_numbers = #tpu.dot_dimension_numbers<[1], [0], [0], [1], [0, 0, 1, 1], [], []>} : vector<16x32xbf16>, vector<32x64xbf16>, vector<16x64xf32> -> vector<16x64xf32>
    %c0_57 = arith.constant 0 : index
    %c0_58 = arith.constant 0 : index
    %c0_59 = arith.constant 0 : index
    %151 = vector.load %arg14[%c0_57, %c0_58, %c0_59] : memref<2x1x64xf32, #tpu.memory_space<vmem>>, vector<1x1x64xf32>
    %152 = vector.shape_cast %151 : vector<1x1x64xf32> to vector<1x64xf32>
    %153 = vector.broadcast %152 : vector<1x64xf32> to vector<16x64xf32>
    %154 = arith.addf %150, %153 : vector<16x64xf32>
    %155 = arith.mulf %154, %154 : vector<16x64xf32>
    %156 = arith.mulf %154, %155 : vector<16x64xf32>
    %cst_60 = arith.constant 4.471500e-02 : f32
    %157 = vector.broadcast %cst_60 : f32 to vector<16x64xf32>
    %158 = arith.mulf %157, %156 : vector<16x64xf32>
    %159 = arith.addf %154, %158 : vector<16x64xf32>
    %cst_61 = arith.constant 0.797884583 : f32
    %160 = vector.broadcast %cst_61 : f32 to vector<16x64xf32>
    %161 = arith.mulf %160, %159 : vector<16x64xf32>
    %162 = math.tanh %161 : vector<16x64xf32>
    %cst_62 = arith.constant 1.000000e+00 : f32
    %163 = vector.broadcast %cst_62 : f32 to vector<16x64xf32>
    %164 = arith.addf %163, %162 : vector<16x64xf32>
    %cst_63 = arith.constant 5.000000e-01 : f32
    %165 = vector.broadcast %cst_63 : f32 to vector<16x64xf32>
    %166 = arith.mulf %165, %164 : vector<16x64xf32>
    %167 = arith.mulf %154, %166 : vector<16x64xf32>
    %c0_64 = arith.constant 0 : index
    %c0_65 = arith.constant 0 : index
    %c0_66 = arith.constant 0 : index
    %168 = vector.load %arg15[%c0_64, %c0_65, %c0_66] : memref<2x64x32xbf16, #tpu.memory_space<vmem>>, vector<1x64x32xbf16>
    %169 = vector.shape_cast %168 : vector<1x64x32xbf16> to vector<64x32xbf16>
    %170 = arith.truncf %167 : vector<16x64xf32> to vector<16x64xbf16>
    %cst_67 = arith.constant dense<0.000000e+00> : vector<16x32xf32>
    %171 = tpu.matmul %170, %169, %cst_67 {dimension_numbers = #tpu.dot_dimension_numbers<[1], [0], [0], [1], [0, 0, 1, 1], [], []>} : vector<16x64xbf16>, vector<64x32xbf16>, vector<16x32xf32> -> vector<16x32xf32>
    %c0_68 = arith.constant 0 : index
    %c0_69 = arith.constant 0 : index
    %c0_70 = arith.constant 0 : index
    %172 = vector.load %arg16[%c0_68, %c0_69, %c0_70] : memref<2x1x32xf32, #tpu.memory_space<vmem>>, vector<1x1x32xf32>
    %173 = vector.shape_cast %172 : vector<1x1x32xf32> to vector<1x32xf32>
    %174 = vector.broadcast %173 : vector<1x32xf32> to vector<16x32xf32>
    %175 = arith.addf %171, %174 : vector<16x32xf32>
    %176 = arith.addf %146, %175 : vector<16x32xf32>
    %c0_71 = arith.constant 0 : index
    %c0_72 = arith.constant 0 : index
    %c0_73 = arith.constant 0 : index
    %177 = vector.load %arg17[%c0_71, %c0_72, %c0_73] : memref<2x1x32xf32, #tpu.memory_space<vmem>>, vector<1x1x32xf32>
    %178 = vector.shape_cast %177 : vector<1x1x32xf32> to vector<1x32xf32>
    %c0_74 = arith.constant 0 : index
    %c0_75 = arith.constant 0 : index
    %c0_76 = arith.constant 0 : index
    %179 = vector.load %arg18[%c0_74, %c0_75, %c0_76] : memref<2x1x32xf32, #tpu.memory_space<vmem>>, vector<1x1x32xf32>
    %180 = vector.shape_cast %179 : vector<1x1x32xf32> to vector<1x32xf32>
    %cst_77 = arith.constant dense<0.000000e+00> : vector<16xf32>
    %181 = vector.multi_reduction <add>, %176, %cst_77 [1] : vector<16x32xf32> to vector<16xf32>
    %182 = vector.shape_cast %181 : vector<16xf32> to vector<16x1xf32>
    %cst_78 = arith.constant 3.200000e+01 : f32
    %183 = vector.broadcast %cst_78 : f32 to vector<16x1xf32>
    %184 = arith.divf %182, %183 : vector<16x1xf32>
    %185 = vector.broadcast %184 : vector<16x1xf32> to vector<16x32xf32>
    %186 = arith.subf %176, %185 : vector<16x32xf32>
    %187 = arith.mulf %186, %186 : vector<16x32xf32>
    %cst_79 = arith.constant dense<0.000000e+00> : vector<16xf32>
    %188 = vector.multi_reduction <add>, %187, %cst_79 [1] : vector<16x32xf32> to vector<16xf32>
    %189 = vector.shape_cast %188 : vector<16xf32> to vector<16x1xf32>
    %cst_80 = arith.constant 3.200000e+01 : f32
    %190 = vector.broadcast %cst_80 : f32 to vector<16x1xf32>
    %191 = arith.divf %189, %190 : vector<16x1xf32>
    %192 = vector.broadcast %184 : vector<16x1xf32> to vector<16x32xf32>
    %193 = arith.subf %176, %192 : vector<16x32xf32>
    %cst_81 = arith.constant 9.99999974E-6 : f32
    %194 = vector.broadcast %cst_81 : f32 to vector<16x1xf32>
    %195 = arith.addf %191, %194 : vector<16x1xf32>
    %196 = math.rsqrt %195 : vector<16x1xf32>
    %197 = vector.broadcast %196 : vector<16x1xf32> to vector<16x32xf32>
    %198 = arith.mulf %193, %197 : vector<16x32xf32>
    %199 = vector.broadcast %178 : vector<1x32xf32> to vector<16x32xf32>
    %200 = arith.mulf %198, %199 : vector<16x32xf32>
    %201 = vector.broadcast %180 : vector<1x32xf32> to vector<16x32xf32>
    %202 = arith.addf %200, %201 : vector<16x32xf32>
    %c1 = arith.constant 1 : index
    %c0_82 = arith.constant 0 : index
    %c0_83 = arith.constant 0 : index
    %203 = vector.load %arg7[%c1, %c0_82, %c0_83] : memref<2x32x96xbf16, #tpu.memory_space<vmem>>, vector<1x32x96xbf16>
    %204 = vector.shape_cast %203 : vector<1x32x96xbf16> to vector<32x96xbf16>
    %205 = arith.truncf %202 : vector<16x32xf32> to vector<16x32xbf16>
    %cst_84 = arith.constant dense<0.000000e+00> : vector<16x96xf32>
    %206 = tpu.matmul %205, %204, %cst_84 {dimension_numbers = #tpu.dot_dimension_numbers<[1], [0], [0], [1], [0, 0, 1, 1], [], []>} : vector<16x32xbf16>, vector<32x96xbf16>, vector<16x96xf32> -> vector<16x96xf32>
    %c1_85 = arith.constant 1 : index
    %c0_86 = arith.constant 0 : index
    %c0_87 = arith.constant 0 : index
    %207 = vector.load %arg8[%c1_85, %c0_86, %c0_87] : memref<2x1x96xf32, #tpu.memory_space<vmem>>, vector<1x1x96xf32>
    %208 = vector.shape_cast %207 : vector<1x1x96xf32> to vector<1x96xf32>
    %209 = vector.broadcast %208 : vector<1x96xf32> to vector<16x96xf32>
    %210 = arith.addf %206, %209 : vector<16x96xf32>
    %211 = vector.shape_cast %210 : vector<16x96xf32> to vector<2x8x12x8xf32>
    %212 = vector.extract_strided_slice %211 {offsets = [0, 0, 0, 0], sizes = [2, 8, 4, 8], strides = [1, 1, 1, 1]} : vector<2x8x12x8xf32> to vector<2x8x4x8xf32>
    %213 = tpu.transpose %212, [0, 2, 1, 3] : vector<2x8x4x8xf32> -> vector<2x4x8x8xf32>
    %214 = vector.shape_cast %213 : vector<2x4x8x8xf32> to vector<8x8x8xf32>
    %215 = vector.extract_strided_slice %211 {offsets = [0, 0, 4, 0], sizes = [2, 8, 4, 8], strides = [1, 1, 1, 1]} : vector<2x8x12x8xf32> to vector<2x8x4x8xf32>
    %216 = tpu.transpose %215, [0, 2, 1, 3] : vector<2x8x4x8xf32> -> vector<2x4x8x8xf32>
    %217 = vector.shape_cast %216 : vector<2x4x8x8xf32> to vector<8x8x8xf32>
    %218 = vector.extract_strided_slice %211 {offsets = [0, 0, 8, 0], sizes = [2, 8, 4, 8], strides = [1, 1, 1, 1]} : vector<2x8x12x8xf32> to vector<2x8x4x8xf32>
    %219 = tpu.transpose %218, [0, 2, 1, 3] : vector<2x8x4x8xf32> -> vector<2x4x8x8xf32>
    %220 = vector.shape_cast %219 : vector<2x4x8x8xf32> to vector<8x8x8xf32>
    %221 = arith.truncf %214 : vector<8x8x8xf32> to vector<8x8x8xbf16>
    %222 = arith.truncf %217 : vector<8x8x8xf32> to vector<8x8x8xbf16>
    "tpu.trace_start"() <{level = 10 : i32, message = "bqd,bkd->bqk"}> : () -> ()
    %cst_88 = arith.constant dense<0.000000e+00> : vector<8x8x8xf32>
    %223 = tpu.matmul %221, %222, %cst_88 {dimension_numbers = #tpu.dot_dimension_numbers<[2], [2], [1], [1], [0, 0, 0, 1, 1, 1], [0], [0]>} : vector<8x8x8xbf16>, vector<8x8x8xbf16>, vector<8x8x8xf32> -> vector<8x8x8xf32>
    "tpu.trace_stop"() : () -> ()
    %cst_89 = arith.constant 0.353553385 : f32
    %224 = vector.broadcast %cst_89 : f32 to vector<8x8x8xf32>
    %225 = arith.mulf %223, %224 : vector<8x8x8xf32>
    %226 = vector.broadcast %70 : vector<8x1x8xf32> to vector<8x8x8xf32>
    %227 = arith.addf %225, %226 : vector<8x8x8xf32>
    %cst_90 = arith.constant dense<0xFF800000> : vector<8x8xf32>
    %228 = vector.multi_reduction <maximumf>, %227, %cst_90 [2] : vector<8x8x8xf32> to vector<8x8xf32>
    %229 = vector.shape_cast %228 : vector<8x8xf32> to vector<8x8x1xf32>
    %230 = vector.broadcast %229 : vector<8x8x1xf32> to vector<8x8x8xf32>
    %231 = arith.subf %227, %230 : vector<8x8x8xf32>
    %232 = math.exp %231 : vector<8x8x8xf32>
    %cst_91 = arith.constant dense<0.000000e+00> : vector<8x8xf32>
    %233 = vector.multi_reduction <add>, %232, %cst_91 [2] : vector<8x8x8xf32> to vector<8x8xf32>
    %234 = vector.shape_cast %233 : vector<8x8xf32> to vector<8x8x1xf32>
    %235 = tpu.reciprocal %234 {approx = true} : vector<8x8x1xf32> -> vector<8x8x1xf32>
    %236 = vector.broadcast %235 : vector<8x8x1xf32> to vector<8x8x8xf32>
    %237 = arith.mulf %232, %236 : vector<8x8x8xf32>
    %238 = arith.truncf %237 : vector<8x8x8xf32> to vector<8x8x8xbf16>
    %239 = arith.truncf %220 : vector<8x8x8xf32> to vector<8x8x8xbf16>
    "tpu.trace_start"() <{level = 10 : i32, message = "bqk,bkd->bqd"}> : () -> ()
    %cst_92 = arith.constant dense<0.000000e+00> : vector<8x8x8xf32>
    %240 = tpu.matmul %238, %239, %cst_92 {dimension_numbers = #tpu.dot_dimension_numbers<[2], [1], [1], [2], [0, 0, 0, 1, 1, 2], [0], [0]>} : vector<8x8x8xbf16>, vector<8x8x8xbf16>, vector<8x8x8xf32> -> vector<8x8x8xf32>
    "tpu.trace_stop"() : () -> ()
    %241 = vector.shape_cast %240 : vector<8x8x8xf32> to vector<2x4x8x8xf32>
    %242 = tpu.transpose %241, [0, 2, 1, 3] : vector<2x4x8x8xf32> -> vector<2x8x4x8xf32>
    %243 = vector.shape_cast %242 : vector<2x8x4x8xf32> to vector<16x32xf32>
    %c1_93 = arith.constant 1 : index
    %c0_94 = arith.constant 0 : index
    %c0_95 = arith.constant 0 : index
    %244 = vector.load %arg9[%c1_93, %c0_94, %c0_95] : memref<2x32x32xbf16, #tpu.memory_space<vmem>>, vector<1x32x32xbf16>
    %245 = vector.shape_cast %244 : vector<1x32x32xbf16> to vector<32x32xbf16>
    %246 = arith.truncf %243 : vector<16x32xf32> to vector<16x32xbf16>
    %cst_96 = arith.constant dense<0.000000e+00> : vector<16x32xf32>
    %247 = tpu.matmul %246, %245, %cst_96 {dimension_numbers = #tpu.dot_dimension_numbers<[1], [0], [0], [1], [0, 0, 1, 1], [], []>} : vector<16x32xbf16>, vector<32x32xbf16>, vector<16x32xf32> -> vector<16x32xf32>
    %c1_97 = arith.constant 1 : index
    %c0_98 = arith.constant 0 : index
    %c0_99 = arith.constant 0 : index
    %248 = vector.load %arg10[%c1_97, %c0_98, %c0_99] : memref<2x1x32xf32, #tpu.memory_space<vmem>>, vector<1x1x32xf32>
    %249 = vector.shape_cast %248 : vector<1x1x32xf32> to vector<1x32xf32>
    %250 = vector.broadcast %249 : vector<1x32xf32> to vector<16x32xf32>
    %251 = arith.addf %247, %250 : vector<16x32xf32>
    %252 = arith.addf %202, %251 : vector<16x32xf32>
    %c1_100 = arith.constant 1 : index
    %c0_101 = arith.constant 0 : index
    %c0_102 = arith.constant 0 : index
    %253 = vector.load %arg11[%c1_100, %c0_101, %c0_102] : memref<2x1x32xf32, #tpu.memory_space<vmem>>, vector<1x1x32xf32>
    %254 = vector.shape_cast %253 : vector<1x1x32xf32> to vector<1x32xf32>
    %c1_103 = arith.constant 1 : index
    %c0_104 = arith.constant 0 : index
    %c0_105 = arith.constant 0 : index
    %255 = vector.load %arg12[%c1_103, %c0_104, %c0_105] : memref<2x1x32xf32, #tpu.memory_space<vmem>>, vector<1x1x32xf32>
    %256 = vector.shape_cast %255 : vector<1x1x32xf32> to vector<1x32xf32>
    %cst_106 = arith.constant dense<0.000000e+00> : vector<16xf32>
    %257 = vector.multi_reduction <add>, %252, %cst_106 [1] : vector<16x32xf32> to vector<16xf32>
    %258 = vector.shape_cast %257 : vector<16xf32> to vector<16x1xf32>
    %cst_107 = arith.constant 3.200000e+01 : f32
    %259 = vector.broadcast %cst_107 : f32 to vector<16x1xf32>
    %260 = arith.divf %258, %259 : vector<16x1xf32>
    %261 = vector.broadcast %260 : vector<16x1xf32> to vector<16x32xf32>
    %262 = arith.subf %252, %261 : vector<16x32xf32>
    %263 = arith.mulf %262, %262 : vector<16x32xf32>
    %cst_108 = arith.constant dense<0.000000e+00> : vector<16xf32>
    %264 = vector.multi_reduction <add>, %263, %cst_108 [1] : vector<16x32xf32> to vector<16xf32>
    %265 = vector.shape_cast %264 : vector<16xf32> to vector<16x1xf32>
    %cst_109 = arith.constant 3.200000e+01 : f32
    %266 = vector.broadcast %cst_109 : f32 to vector<16x1xf32>
    %267 = arith.divf %265, %266 : vector<16x1xf32>
    %268 = vector.broadcast %260 : vector<16x1xf32> to vector<16x32xf32>
    %269 = arith.subf %252, %268 : vector<16x32xf32>
    %cst_110 = arith.constant 9.99999974E-6 : f32
    %270 = vector.broadcast %cst_110 : f32 to vector<16x1xf32>
    %271 = arith.addf %267, %270 : vector<16x1xf32>
    %272 = math.rsqrt %271 : vector<16x1xf32>
    %273 = vector.broadcast %272 : vector<16x1xf32> to vector<16x32xf32>
    %274 = arith.mulf %269, %273 : vector<16x32xf32>
    %275 = vector.broadcast %254 : vector<1x32xf32> to vector<16x32xf32>
    %276 = arith.mulf %274, %275 : vector<16x32xf32>
    %277 = vector.broadcast %256 : vector<1x32xf32> to vector<16x32xf32>
    %278 = arith.addf %276, %277 : vector<16x32xf32>
    %c1_111 = arith.constant 1 : index
    %c0_112 = arith.constant 0 : index
    %c0_113 = arith.constant 0 : index
    %279 = vector.load %arg13[%c1_111, %c0_112, %c0_113] : memref<2x32x64xbf16, #tpu.memory_space<vmem>>, vector<1x32x64xbf16>
    %280 = vector.shape_cast %279 : vector<1x32x64xbf16> to vector<32x64xbf16>
    %281 = arith.truncf %278 : vector<16x32xf32> to vector<16x32xbf16>
    %cst_114 = arith.constant dense<0.000000e+00> : vector<16x64xf32>
    %282 = tpu.matmul %281, %280, %cst_114 {dimension_numbers = #tpu.dot_dimension_numbers<[1], [0], [0], [1], [0, 0, 1, 1], [], []>} : vector<16x32xbf16>, vector<32x64xbf16>, vector<16x64xf32> -> vector<16x64xf32>
    %c1_115 = arith.constant 1 : index
    %c0_116 = arith.constant 0 : index
    %c0_117 = arith.constant 0 : index
    %283 = vector.load %arg14[%c1_115, %c0_116, %c0_117] : memref<2x1x64xf32, #tpu.memory_space<vmem>>, vector<1x1x64xf32>
    %284 = vector.shape_cast %283 : vector<1x1x64xf32> to vector<1x64xf32>
    %285 = vector.broadcast %284 : vector<1x64xf32> to vector<16x64xf32>
    %286 = arith.addf %282, %285 : vector<16x64xf32>
    %287 = arith.mulf %286, %286 : vector<16x64xf32>
    %288 = arith.mulf %286, %287 : vector<16x64xf32>
    %cst_118 = arith.constant 4.471500e-02 : f32
    %289 = vector.broadcast %cst_118 : f32 to vector<16x64xf32>
    %290 = arith.mulf %289, %288 : vector<16x64xf32>
    %291 = arith.addf %286, %290 : vector<16x64xf32>
    %cst_119 = arith.constant 0.797884583 : f32
    %292 = vector.broadcast %cst_119 : f32 to vector<16x64xf32>
    %293 = arith.mulf %292, %291 : vector<16x64xf32>
    %294 = math.tanh %293 : vector<16x64xf32>
    %cst_120 = arith.constant 1.000000e+00 : f32
    %295 = vector.broadcast %cst_120 : f32 to vector<16x64xf32>
    %296 = arith.addf %295, %294 : vector<16x64xf32>
    %cst_121 = arith.constant 5.000000e-01 : f32
    %297 = vector.broadcast %cst_121 : f32 to vector<16x64xf32>
    %298 = arith.mulf %297, %296 : vector<16x64xf32>
    %299 = arith.mulf %286, %298 : vector<16x64xf32>
    %c1_122 = arith.constant 1 : index
    %c0_123 = arith.constant 0 : index
    %c0_124 = arith.constant 0 : index
    %300 = vector.load %arg15[%c1_122, %c0_123, %c0_124] : memref<2x64x32xbf16, #tpu.memory_space<vmem>>, vector<1x64x32xbf16>
    %301 = vector.shape_cast %300 : vector<1x64x32xbf16> to vector<64x32xbf16>
    %302 = arith.truncf %299 : vector<16x64xf32> to vector<16x64xbf16>
    %cst_125 = arith.constant dense<0.000000e+00> : vector<16x32xf32>
    %303 = tpu.matmul %302, %301, %cst_125 {dimension_numbers = #tpu.dot_dimension_numbers<[1], [0], [0], [1], [0, 0, 1, 1], [], []>} : vector<16x64xbf16>, vector<64x32xbf16>, vector<16x32xf32> -> vector<16x32xf32>
    %c1_126 = arith.constant 1 : index
    %c0_127 = arith.constant 0 : index
    %c0_128 = arith.constant 0 : index
    %304 = vector.load %arg16[%c1_126, %c0_127, %c0_128] : memref<2x1x32xf32, #tpu.memory_space<vmem>>, vector<1x1x32xf32>
    %305 = vector.shape_cast %304 : vector<1x1x32xf32> to vector<1x32xf32>
    %306 = vector.broadcast %305 : vector<1x32xf32> to vector<16x32xf32>
    %307 = arith.addf %303, %306 : vector<16x32xf32>
    %308 = arith.addf %278, %307 : vector<16x32xf32>
    %c1_129 = arith.constant 1 : index
    %c0_130 = arith.constant 0 : index
    %c0_131 = arith.constant 0 : index
    %309 = vector.load %arg17[%c1_129, %c0_130, %c0_131] : memref<2x1x32xf32, #tpu.memory_space<vmem>>, vector<1x1x32xf32>
    %310 = vector.shape_cast %309 : vector<1x1x32xf32> to vector<1x32xf32>
    %c1_132 = arith.constant 1 : index
    %c0_133 = arith.constant 0 : index
    %c0_134 = arith.constant 0 : index
    %311 = vector.load %arg18[%c1_132, %c0_133, %c0_134] : memref<2x1x32xf32, #tpu.memory_space<vmem>>, vector<1x1x32xf32>
    %312 = vector.shape_cast %311 : vector<1x1x32xf32> to vector<1x32xf32>
    %cst_135 = arith.constant dense<0.000000e+00> : vector<16xf32>
    %313 = vector.multi_reduction <add>, %308, %cst_135 [1] : vector<16x32xf32> to vector<16xf32>
    %314 = vector.shape_cast %313 : vector<16xf32> to vector<16x1xf32>
    %cst_136 = arith.constant 3.200000e+01 : f32
    %315 = vector.broadcast %cst_136 : f32 to vector<16x1xf32>
    %316 = arith.divf %314, %315 : vector<16x1xf32>
    %317 = vector.broadcast %316 : vector<16x1xf32> to vector<16x32xf32>
    %318 = arith.subf %308, %317 : vector<16x32xf32>
    %319 = arith.mulf %318, %318 : vector<16x32xf32>
    %cst_137 = arith.constant dense<0.000000e+00> : vector<16xf32>
    %320 = vector.multi_reduction <add>, %319, %cst_137 [1] : vector<16x32xf32> to vector<16xf32>
    %321 = vector.shape_cast %320 : vector<16xf32> to vector<16x1xf32>
    %cst_138 = arith.constant 3.200000e+01 : f32
    %322 = vector.broadcast %cst_138 : f32 to vector<16x1xf32>
    %323 = arith.divf %321, %322 : vector<16x1xf32>
    %324 = vector.broadcast %316 : vector<16x1xf32> to vector<16x32xf32>
    %325 = arith.subf %308, %324 : vector<16x32xf32>
    %cst_139 = arith.constant 9.99999974E-6 : f32
    %326 = vector.broadcast %cst_139 : f32 to vector<16x1xf32>
    %327 = arith.addf %323, %326 : vector<16x1xf32>
    %328 = math.rsqrt %327 : vector<16x1xf32>
    %329 = vector.broadcast %328 : vector<16x1xf32> to vector<16x32xf32>
    %330 = arith.mulf %325, %329 : vector<16x32xf32>
    %331 = vector.broadcast %310 : vector<1x32xf32> to vector<16x32xf32>
    %332 = arith.mulf %330, %331 : vector<16x32xf32>
    %333 = vector.broadcast %312 : vector<1x32xf32> to vector<16x32xf32>
    %334 = arith.addf %332, %333 : vector<16x32xf32>
    %335 = vector.shape_cast %334 : vector<16x32xf32> to vector<2x8x32xf32>
    %336 = vector.extract_strided_slice %335 {offsets = [0, 0, 0], sizes = [2, 1, 32], strides = [1, 1, 1]} : vector<2x8x32xf32> to vector<2x1x32xf32>
    %337 = vector.shape_cast %336 : vector<2x1x32xf32> to vector<2x32xf32>
    %c0_140 = arith.constant 0 : index
    %c0_141 = arith.constant 0 : index
    %338 = vector.load %arg19[%c0_140, %c0_141] : memref<32x32xbf16, #tpu.memory_space<vmem>>, vector<32x32xbf16>
    %339 = arith.truncf %337 : vector<2x32xf32> to vector<2x32xbf16>
    %cst_142 = arith.constant dense<0.000000e+00> : vector<2x32xf32>
    %340 = tpu.matmul %339, %338, %cst_142 {dimension_numbers = #tpu.dot_dimension_numbers<[1], [0], [0], [1], [0, 0, 1, 1], [], []>} : vector<2x32xbf16>, vector<32x32xbf16>, vector<2x32xf32> -> vector<2x32xf32>
    %c0_143 = arith.constant 0 : index
    %c0_144 = arith.constant 0 : index
    %341 = vector.load %arg20[%c0_143, %c0_144] : memref<1x32xf32, #tpu.memory_space<vmem>>, vector<1x32xf32>
    %342 = vector.broadcast %341 : vector<1x32xf32> to vector<2x32xf32>
    %343 = arith.addf %340, %342 : vector<2x32xf32>
    %344 = math.tanh %343 : vector<2x32xf32>
    %c0_145 = arith.constant 0 : index
    %c0_146 = arith.constant 0 : index
    %345 = vector.load %arg21[%c0_145, %c0_146] : memref<32x2xbf16, #tpu.memory_space<vmem>>, vector<32x2xbf16>
    %346 = arith.truncf %344 : vector<2x32xf32> to vector<2x32xbf16>
    %cst_147 = arith.constant dense<0.000000e+00> : vector<2x2xf32>
    %347 = tpu.matmul %346, %345, %cst_147 {dimension_numbers = #tpu.dot_dimension_numbers<[1], [0], [0], [1], [0, 0, 1, 1], [], []>} : vector<2x32xbf16>, vector<32x2xbf16>, vector<2x2xf32> -> vector<2x2xf32>
    %c0_148 = arith.constant 0 : index
    %c0_149 = arith.constant 0 : index
    %348 = vector.load %arg22[%c0_148, %c0_149] : memref<1x2xf32, #tpu.memory_space<vmem>>, vector<1x2xf32>
    %349 = vector.broadcast %348 : vector<1x2xf32> to vector<2x2xf32>
    %350 = arith.addf %347, %349 : vector<2x2xf32>
    %cst_150 = arith.constant dense<0xFF800000> : vector<2xf32>
    %351 = vector.multi_reduction <maximumf>, %350, %cst_150 [1] : vector<2x2xf32> to vector<2xf32>
    %352 = vector.shape_cast %351 : vector<2xf32> to vector<2x1xf32>
    %353 = vector.broadcast %352 : vector<2x1xf32> to vector<2x2xf32>
    %354 = arith.subf %350, %353 : vector<2x2xf32>
    %355 = math.exp %354 : vector<2x2xf32>
    %cst_151 = arith.constant dense<0.000000e+00> : vector<2xf32>
    %356 = vector.multi_reduction <add>, %355, %cst_151 [1] : vector<2x2xf32> to vector<2xf32>
    %357 = vector.shape_cast %356 : vector<2xf32> to vector<2x1xf32>
    %358 = vector.broadcast %357 : vector<2x1xf32> to vector<2x2xf32>
    %359 = arith.divf %355, %358 : vector<2x2xf32>
    %cst_152 = arith.constant 0.000000e+00 : f32
    %360 = vector.broadcast %cst_152 : f32 to vector<2x94xf32>
    %361 = tpu.concatenate %359, %337, %360 in 1 : vector<2x2xf32>, vector<2x32xf32>, vector<2x94xf32> -> vector<2x128xf32>
    %c0_153 = arith.constant 0 : index
    %c0_154 = arith.constant 0 : index
    %362 = vector.load %arg23[%c0_153, %c0_154] : memref<2x128xf32, #tpu.memory_space<vmem>>, vector<2x128xf32>
    tpu.vector_store %arg23[%c0_153, %c0_154], %361 {strides = array<i32>} : memref<2x128xf32, #tpu.memory_space<vmem>>, vector<2x128xf32>,
    return
  }
}

</mosaic_0001>

<llo_original>
// kernel: clr_forward.1
$region0: #{clr_forward.1}
  #allocation0 [shape = 'u32[]', space=smem, size = 0x4, offset = 0x4, fixed_abs, tag = 'smem constant byte address 0x4 - core index']
  #allocation1 [shape = 'u32[144,128]{1,0:T(1,128)}', space=vmem, size = 0x12000, scoped, tag = 'internal scratch']
  %s0 = inlined_call_operand.vmem [shape: s32[2,8], index: 0, kind: input, shape index: {}]
  %s1 = inlined_call_operand.vmem [shape: s32[2,8], index: 1, kind: input, shape index: {}]
  %s2 = inlined_call_operand.vmem [shape: f32[100,32], index: 2, kind: input, shape index: {}]
  %s3 = inlined_call_operand.vmem [shape: f32[16,32], index: 3, kind: input, shape index: {}]
  %s4 = inlined_call_operand.vmem [shape: f32[1,32], index: 4, kind: input, shape index: {}]
  %s5 = inlined_call_operand.vmem [shape: f32[1,32], index: 5, kind: input, shape index: {}]
  %s6 = inlined_call_operand.vmem [shape: f32[1,32], index: 6, kind: input, shape index: {}]
  %s7 = inlined_call_operand.vmem [shape: bf16[2,32,96], index: 7, kind: input, shape index: {}]
  %s8 = inlined_call_operand.vmem [shape: f32[2,1,96], index: 8, kind: input, shape index: {}]
  %s9 = inlined_call_operand.vmem [shape: bf16[2,32,32], index: 9, kind: input, shape index: {}]
  %s10 = inlined_call_operand.vmem [shape: f32[2,1,32], index: 10, kind: input, shape index: {}]
  %s11 = inlined_call_operand.vmem [shape: f32[2,1,32], index: 11, kind: input, shape index: {}]
  %s12 = inlined_call_operand.vmem [shape: f32[2,1,32], index: 12, kind: input, shape index: {}]
  %s13 = inlined_call_operand.vmem [shape: bf16[2,32,64], index: 13, kind: input, shape index: {}]
  %s14 = inlined_call_operand.vmem [shape: f32[2,1,64], index: 14, kind: input, shape index: {}]
  %s15 = inlined_call_operand.vmem [shape: bf16[2,64,32], index: 15, kind: input, shape index: {}]
  %s16 = inlined_call_operand.vmem [shape: f32[2,1,32], index: 16, kind: input, shape index: {}]
  %s17 = inlined_call_operand.vmem [shape: f32[2,1,32], index: 17, kind: input, shape index: {}]
  %s18 = inlined_call_operand.vmem [shape: f32[2,1,32], index: 18, kind: input, shape index: {}]
  %s19 = inlined_call_operand.vmem [shape: bf16[32,32], index: 19, kind: input, shape index: {}]
  %s20 = inlined_call_operand.vmem [shape: f32[1,32], index: 20, kind: input, shape index: {}]
  %s21 = inlined_call_operand.vmem [shape: bf16[32,2], index: 21, kind: input, shape index: {}]
  %s22 = inlined_call_operand.vmem [shape: f32[1,2], index: 22, kind: input, shape index: {}]
  %s23 = inlined_call_operand.vmem [shape: f32[2,128], index: 23, kind: output, shape index: {}]
  %s24 = sld [smem:[#allocation0]]
  $region102: #{clr_forward.1} parent=0
    _
  %s26 = ssub.s32 1, %s24
  %s27 = scalar_select 0, %s26, %s24
  // Predicated region
  $region2: #{clr_forward.1} parent=0 // pred_check
    _
  $region3: #{clr_forward.1} parent=0 // pred_check_branch
    %29 = sbr.rel (0) target = $region5
  $region4: #{clr_forward.1} parent=0 // pred_region
    _
  $region5: #{clr_forward.1} parent=0 // pred_fallthru
    _
  // Predicated region
  $region6: #{clr_forward.1} parent=0 // pred_check
    _
  $region7: #{clr_forward.1} parent=0 // pred_check_branch
    %31 = sbr.rel (0) target = $region9
  $region8: #{clr_forward.1} parent=0 // pred_region
    _
  $region9: #{clr_forward.1} parent=0 // pred_fallthru
    _
  // Predicated region
  $region10: #{clr_forward.1} parent=0 // pred_check
    _
  $region11: #{clr_forward.1} parent=0 // pred_check_branch
    %33 = sbr.rel (0) target = $region13
  $region12: #{clr_forward.1} parent=0 // pred_region
    _
  $region13: #{clr_forward.1} parent=0 // pred_fallthru
    _
  // Predicated region
  $region14: #{clr_forward.1} parent=0 // pred_check
    _
  $region15: #{clr_forward.1} parent=0 // pred_check_branch
    %35 = sbr.rel (0) target = $region17
  $region16: #{clr_forward.1} parent=0 // pred_region
    _
  $region17: #{clr_forward.1} parent=0 // pred_fallthru
    _
  // Predicated region
  $region18: #{clr_forward.1} parent=0 // pred_check
    _
  $region19: #{clr_forward.1} parent=0 // pred_check_branch
    %37 = sbr.rel (0) target = $region21
  $region20: #{clr_forward.1} parent=0 // pred_region
    _
  $region21: #{clr_forward.1} parent=0 // pred_fallthru
    _
  // Predicated region
  $region22: #{clr_forward.1} parent=0 // pred_check
    _
  $region23: #{clr_forward.1} parent=0 // pred_check_branch
    %39 = sbr.rel (0) target = $region25
  $region24: #{clr_forward.1} parent=0 // pred_region
    _
  $region25: #{clr_forward.1} parent=0 // pred_fallthru
    _
  // Predicated region
  $region26: #{clr_forward.1} parent=0 // pred_check
    _
  $region27: #{clr_forward.1} parent=0 // pred_check_branch
    %41 = sbr.rel (0) target = $region29
  $region28: #{clr_forward.1} parent=0 // pred_region
    _
  $region29: #{clr_forward.1} parent=0 // pred_fallthru
    _
  // Predicated region
  $region30: #{clr_forward.1} parent=0 // pred_check
    _
  $region31: #{clr_forward.1} parent=0 // pred_check_branch
    %43 = sbr.rel (0) target = $region33
  $region32: #{clr_forward.1} parent=0 // pred_region
    _
  $region33: #{clr_forward.1} parent=0 // pred_fallthru
    _
  // Predicated region
  $region34: #{clr_forward.1} parent=0 // pred_check
    _
  $region35: #{clr_forward.1} parent=0 // pred_check_branch
    %45 = sbr.rel (0) target = $region37
  $region36: #{clr_forward.1} parent=0 // pred_region
    _
  $region37: #{clr_forward.1} parent=0 // pred_fallthru
    _
  // Predicated region
  $region38: #{clr_forward.1} parent=0 // pred_check
    _
  $region39: #{clr_forward.1} parent=0 // pred_check_branch
    %47 = sbr.rel (0) target = $region41
  $region40: #{clr_forward.1} parent=0 // pred_region
    _
  $region41: #{clr_forward.1} parent=0 // pred_fallthru
    _
  // Predicated region
  $region42: #{clr_forward.1} parent=0 // pred_check
    _
  $region43: #{clr_forward.1} parent=0 // pred_check_branch
    %49 = sbr.rel (0) target = $region45
  $region44: #{clr_forward.1} parent=0 // pred_region
    _
  $region45: #{clr_forward.1} parent=0 // pred_fallthru
    _
  // Predicated region
  $region46: #{clr_forward.1} parent=0 // pred_check
    _
  $region47: #{clr_forward.1} parent=0 // pred_check_branch
    %51 = sbr.rel (0) target = $region49
  $region48: #{clr_forward.1} parent=0 // pred_region
    _
  $region49: #{clr_forward.1} parent=0 // pred_fallthru
    _
  // Predicated region
  $region50: #{clr_forward.1} parent=0 // pred_check
    _
  $region51: #{clr_forward.1} parent=0 // pred_check_branch
    %53 = sbr.rel (0) target = $region53
  $region52: #{clr_forward.1} parent=0 // pred_region
    _
  $region53: #{clr_forward.1} parent=0 // pred_fallthru
    _
  // Predicated region
  $region54: #{clr_forward.1} parent=0 // pred_check
    _
  $region55: #{clr_forward.1} parent=0 // pred_check_branch
    %55 = sbr.rel (0) target = $region57
  $region56: #{clr_forward.1} parent=0 // pred_region
    _
  $region57: #{clr_forward.1} parent=0 // pred_fallthru
    _
  // Predicated region
  $region58: #{clr_forward.1} parent=0 // pred_check
    _
  $region59: #{clr_forward.1} parent=0 // pred_check_branch
    %57 = sbr.rel (0) target = $region61
  $region60: #{clr_forward.1} parent=0 // pred_region
    _
  $region61: #{clr_forward.1} parent=0 // pred_fallthru
    _
  // Predicated region
  $region62: #{clr_forward.1} parent=0 // pred_check
    _
  $region63: #{clr_forward.1} parent=0 // pred_check_branch
    %59 = sbr.rel (0) target = $region65
  $region64: #{clr_forward.1} parent=0 // pred_region
    _
  $region65: #{clr_forward.1} parent=0 // pred_fallthru
    _
  // Predicated region
  $region66: #{clr_forward.1} parent=0 // pred_check
    _
  $region67: #{clr_forward.1} parent=0 // pred_check_branch
    %61 = sbr.rel (0) target = $region69
  $region68: #{clr_forward.1} parent=0 // pred_region
    _
  $region69: #{clr_forward.1} parent=0 // pred_fallthru
    _
  // Predicated region
  $region70: #{clr_forward.1} parent=0 // pred_check
    _
  $region71: #{clr_forward.1} parent=0 // pred_check_branch
    %63 = sbr.rel (0) target = $region73
  $region72: #{clr_forward.1} parent=0 // pred_region
    _
  $region73: #{clr_forward.1} parent=0 // pred_fallthru
    _
  // Predicated region
  $region74: #{clr_forward.1} parent=0 // pred_check
    _
  $region75: #{clr_forward.1} parent=0 // pred_check_branch
    %65 = sbr.rel (0) target = $region77
  $region76: #{clr_forward.1} parent=0 // pred_region
    _
  $region77: #{clr_forward.1} parent=0 // pred_fallthru
    _
  // Predicated region
  $region78: #{clr_forward.1} parent=0 // pred_check
    _
  $region79: #{clr_forward.1} parent=0 // pred_check_branch
    %67 = sbr.rel (0) target = $region81
  $region80: #{clr_forward.1} parent=0 // pred_region
    _
  $region81: #{clr_forward.1} parent=0 // pred_fallthru
    _
  // Predicated region
  $region82: #{clr_forward.1} parent=0 // pred_check
    _
  $region83: #{clr_forward.1} parent=0 // pred_check_branch
    %69 = sbr.rel (0) target = $region85
  $region84: #{clr_forward.1} parent=0 // pred_region
    _
  $region85: #{clr_forward.1} parent=0 // pred_fallthru
    _
  // Predicated region
  $region86: #{clr_forward.1} parent=0 // pred_check
    _
  $region87: #{clr_forward.1} parent=0 // pred_check_branch
    %71 = sbr.rel (0) target = $region89
  $region88: #{clr_forward.1} parent=0 // pred_region
    _
  $region89: #{clr_forward.1} parent=0 // pred_fallthru
    _
  // Predicated region
  $region90: #{clr_forward.1} parent=0 // pred_check
    _
  $region91: #{clr_forward.1} parent=0 // pred_check_branch
    %73 = sbr.rel (0) target = $region93
  $region92: #{clr_forward.1} parent=0 // pred_region
    _
  $region93: #{clr_forward.1} parent=0 // pred_fallthru
    _
  %v75 = vld [vmem:[%s0] sm:$0x3]
  %vm76 = vcmp.ne.s32.totalorder %v75, 1
  %v77 = vsel %vm76, 1, 0
  %v78 = vcvt.s32.f32 %v77
  %v79 = vlaneseq
  %v80 = vshrl.u32 %v79, 7
  %v81 = vlaneseq
  %v82 = vand.u32 %v81, 127
  %vm83 = vcmp.le.s32.totalorder %v80, %v82
  %v84 = vsel %vm83, 1, 0
  %v85 = vcvt.s32.f32 %v84
  %vm86 = vcmask 64512
  %v88 = vsel %vm86, %v78, 0
  %90 = vmatprep.subr.mxu0 0.0
  %91 = vmatpush1.msra.mxu0 0.0
  %92 = vmatprep.subr.mxu0 0.0
  %93 = vmatpush1.msra.mxu0 0.0
  %94 = vmatprep.subr.mxu0 0.0
  %95 = vmatpush1.msra.mxu0 0.0
  %96 = vmatprep.subr.mxu0 0.0
  %97 = vmatpush1.msra.mxu0 0.0
  %98 = vmatprep.subr.mxu0 0.0
  %99 = vmatpush1.msra.mxu0 0.0
  %100 = vmatprep.subr.mxu0 0.0
  %101 = vmatpush1.msra.mxu0 0.0
  %102 = vmatprep.subr.mxu0 0.0
  %103 = vmatpush1.msra.mxu0 0.0
  %104 = vmatprep.subr.mxu0 0.0
  %105 = vmatpush1.msra.mxu0 0.0
  %106 = vmatprep.subr.mxu0 0.0
  %107 = vmatpush1.msra.mxu0 0.0
  %108 = vmatprep.subr.mxu0 0.0
  %109 = vmatpush1.msra.mxu0 0.0
  %110 = vmatprep.subr.mxu0 0.0
  %111 = vmatpush1.msra.mxu0 0.0
  %112 = vmatprep.subr.mxu0 0.0
  %113 = vmatpush1.msra.mxu0 0.0
  %114 = vmatprep.subr.mxu0 0.0
  %115 = vmatpush1.msra.mxu0 0.0
  %116 = vmatprep.subr.mxu0 0.0
  %117 = vmatpush1.msra.mxu0 0.0
  %118 = vmatprep.subr.mxu0 0.0
  %119 = vmatpush1.msra.mxu0 0.0
  %120 = vmatprep.subr.mxu0 0.0
  %121 = vmatpush1.msra.mxu0 %v85
  %122 = vmatprep.subr.mxu0 0.0
  %123 = vmatpush2.msra.mxu0 0.0
  %124 = vmatprep.subr.mxu0 0.0
  %125 = vmatpush2.msra.mxu0 0.0
  %126 = vmatprep.subr.mxu0 0.0
  %127 = vmatpush2.msra.mxu0 0.0
  %128 = vmatprep.subr.mxu0 0.0
  %129 = vmatpush2.msra.mxu0 0.0
  %130 = vmatprep.subr.mxu0 0.0
  %131 = vmatpush2.msra.mxu0 0.0
  %132 = vmatprep.subr.mxu0 0.0
  %133 = vmatpush2.msra.mxu0 0.0
  %134 = vmatprep.subr.mxu0 0.0
  %135 = vmatpush2.msra.mxu0 0.0
  %136 = vmatprep.subr.mxu0 0.0
  %137 = vmatpush2.msra.mxu0 0.0
  %138 = vmatprep.subr.mxu0 0.0
  %139 = vmatpush2.msra.mxu0 0.0
  %140 = vmatprep.subr.mxu0 0.0
  %141 = vmatpush2.msra.mxu0 0.0
  %142 = vmatprep.subr.mxu0 0.0
  %143 = vmatpush2.msra.mxu0 0.0
  %144 = vmatprep.subr.mxu0 0.0
  %145 = vmatpush2.msra.mxu0 0.0
  %146 = vmatprep.subr.mxu0 0.0
  %147 = vmatpush2.msra.mxu0 0.0
  %148 = vmatprep.subr.mxu0 0.0
  %149 = vmatpush2.msra.mxu0 0.0
  %150 = vmatprep.subr.mxu0 0.0
  %151 = vmatpush2.msra.mxu0 0.0
  %152 = vmatprep.subr.mxu0 0.0
  %153 = vmatpush2.msra.mxu0 0.0
  %154 = vmatprep.mubr.f32.mxu0 0.0
  %155 = vmatmul.mubr.f32.gmra.mxu0 %v88
  %v156 = vpop.f32.mrf.mxu0
  %v157 = vadd.f32 0.0, %v156
  %v158 = vpop.f32.mrf.mxu0
  %159 = vdwg.mxu0
  %v160 = vmul.f32 %v157, %v78
  %v161 = vcvt.f32.s32.to.zero.pseudo %v160
  %v162 = vadd.s32 %v161, 1
  %v163 = vlaneseq
  %v164 = vshrl.u32 %v163, 7
  %v165 = vsub.s32 0, %v164
  %v166 = vrot.slane %v75, %v165
  %168 = vbcast.lane.b32.xlu0 %v166, 256
  %v169 = vpop.permute.xlu0 %168
  %v170 = vlaneseq
  %v171 = vshrl.u32 %v170, 7
  %v172 = vsub.s32 1, %v171
  %v173 = vrot.slane %v75, %v172
  %175 = vbcast.lane.b32.xlu0 %v173, 256
  %v176 = vpop.permute.xlu0 %175
  %vm177 = vcmp.eq.s32.totalorder %v82, %v169
  %vm178 = vcmp.eq.s32.totalorder %v82, %v176
  %v179 = vsel %vm177, 1, 0
  %v180 = vsel %vm178, 1, 0
  %v181 = vcvt.s32.f32 %v179
  %v182 = vcvt.s32.f32 %v180
  %v183 = vlaneseq
  %v184 = vshrl.u32 %v183, 7
  %v185 = vsub.s32 0, %v184
  %v186 = vrot.slane %v162, %v185
  %188 = vbcast.lane.b32.xlu0 %v186, 256
  %v189 = vpop.permute.xlu0 %188
  %v190 = vlaneseq
  %v191 = vshrl.u32 %v190, 7
  %v192 = vsub.s32 1, %v191
  %v193 = vrot.slane %v162, %v192
  %195 = vbcast.lane.b32.xlu0 %v193, 256
  %v196 = vpop.permute.xlu0 %195
  %vm197 = vcmp.eq.s32.totalorder %v82, %v189
  %vm198 = vcmp.eq.s32.totalorder %v82, %v196
  %v199 = vsel %vm197, 1, 0
  %v200 = vsel %vm198, 1, 0
  %v201 = vcvt.s32.f32 %v199
  %v202 = vcvt.s32.f32 %v200
  %v203 = vld [vmem:[%s2] sm:$0xff]
  %v204 = vld [vmem:[%s2 + $0x8] sm:$0xff]
  %v205 = vld [vmem:[%s2 + $0x10] sm:$0xff]
  %v206 = vld [vmem:[%s2 + $0x18] sm:$0xff]
  %v207 = vld [vmem:[%s2 + $0x20] sm:$0xff]
  %v208 = vld [vmem:[%s2 + $0x28] sm:$0xff]
  %v209 = vld [vmem:[%s2 + $0x30] sm:$0xff]
  %v210 = vld [vmem:[%s2 + $0x38] sm:$0xff]
  %v211 = vld [vmem:[%s2 + $0x40] sm:$0xff]
  %v212 = vld [vmem:[%s2 + $0x48] sm:$0xff]
  %v213 = vld [vmem:[%s2 + $0x50] sm:$0xff]
  %v214 = vld [vmem:[%s2 + $0x58] sm:$0xff]
  %v215 = vld [vmem:[%s2 + $0x60] sm:$0xf]
  %v216 = vld [vmem:[%s3] sm:$0xff]
  %v217 = vld [vmem:[%s3 + $0x8] sm:$0xff]
  %vm218 = vcmask 130048
  %v220 = vsel %vm218, %v201, 0
  %v223 = vsel %vm218, %v202, 0
  %225 = vmatprep.subr.mxu0 0.0
  %226 = vmatpush1.msra.mxu0 0.0
  %227 = vmatprep.subr.mxu0 0.0
  %228 = vmatpush1.msra.mxu0 0.0
  %229 = vmatprep.subr.mxu0 0.0
  %230 = vmatpush1.msra.mxu0 0.0
  %231 = vmatprep.subr.mxu0 0.0
  %232 = vmatpush1.msra.mxu0 0.0
  %233 = vmatprep.subr.mxu0 0.0
  %234 = vmatpush1.msra.mxu0 0.0
  %235 = vmatprep.subr.mxu0 0.0
  %236 = vmatpush1.msra.mxu0 0.0
  %237 = vmatprep.subr.mxu0 0.0
  %238 = vmatpush1.msra.mxu0 0.0
  %239 = vmatprep.subr.mxu0 0.0
  %240 = vmatpush1.msra.mxu0 0.0
  %241 = vmatprep.subr.mxu0 0.0
  %242 = vmatpush1.msra.mxu0 0.0
  %243 = vmatprep.subr.mxu0 0.0
  %244 = vmatpush1.msra.mxu0 0.0
  %245 = vmatprep.subr.mxu0 0.0
  %246 = vmatpush1.msra.mxu0 0.0
  %247 = vmatprep.subr.mxu0 0.0
  %248 = vmatpush1.msra.mxu0 0.0
  %249 = vmatprep.subr.mxu0 0.0
  %250 = vmatpush1.msra.mxu0 0.0
  %251 = vmatprep.subr.mxu0 0.0
  %252 = vmatpush1.msra.mxu0 0.0
  %253 = vmatprep.subr.mxu0 0.0
  %254 = vmatpush1.msra.mxu0 %v217
  %255 = vmatprep.subr.mxu0 0.0
  %256 = vmatpush1.msra.mxu0 %v216
  %257 = vmatprep.subr.mxu0 0.0
  %258 = vmatpush2.msra.mxu0 0.0
  %259 = vmatprep.subr.mxu0 0.0
  %260 = vmatpush2.msra.mxu0 0.0
  %261 = vmatprep.subr.mxu0 0.0
  %262 = vmatpush2.msra.mxu0 0.0
  %263 = vmatprep.subr.mxu0 0.0
  %264 = vmatpush2.msra.mxu0 0.0
  %265 = vmatprep.subr.mxu0 0.0
  %266 = vmatpush2.msra.mxu0 0.0
  %267 = vmatprep.subr.mxu0 0.0
  %268 = vmatpush2.msra.mxu0 0.0
  %269 = vmatprep.subr.mxu0 0.0
  %270 = vmatpush2.msra.mxu0 0.0
  %271 = vmatprep.subr.mxu0 0.0
  %272 = vmatpush2.msra.mxu0 0.0
  %273 = vmatprep.subr.mxu0 0.0
  %274 = vmatpush2.msra.mxu0 0.0
  %275 = vmatprep.subr.mxu0 0.0
  %276 = vmatpush2.msra.mxu0 0.0
  %277 = vmatprep.subr.mxu0 0.0
  %278 = vmatpush2.msra.mxu0 0.0
  %279 = vmatprep.subr.mxu0 0.0
  %280 = vmatpush2.msra.mxu0 0.0
  %281 = vmatprep.subr.mxu0 0.0
  %282 = vmatpush2.msra.mxu0 0.0
  %283 = vmatprep.subr.mxu0 0.0
  %284 = vmatpush2.msra.mxu0 0.0
  %285 = vmatprep.subr.mxu0 0.0
  %286 = vmatpush2.msra.mxu0 0.0
  %287 = vmatprep.subr.mxu0 0.0
  %288 = vmatpush2.msra.mxu0 0.0
  %289 = vmatprep.mubr.f32.mxu0 0.0
  %290 = vmatmul.mubr.f32.gmra.mxu0 %v220
  %v291 = vpop.f32.mrf.mxu0
  %v292 = vadd.f32 0.0, %v291
  %v293 = vpop.f32.mrf.mxu0
  %294 = vmatprep.mubr.f32.mxu0 0.0
  %295 = vmatmul.mubr.f32.gmra.mxu0 %v223
  %v296 = vpop.f32.mrf.mxu0
  %v297 = vadd.f32 0.0, %v296
  %v298 = vpop.f32.mrf.mxu0
  %299 = vdwg.mxu0
  %vm300 = vcmask 818176
  %v302 = vsel %vm300, %v181, 0
  %v305 = vsel %vm300, %v182, 0
  %vm307 = vcmask 1043456
  %v309 = vsel %vm307, %v215, 0
  %311 = vmatprep.subr.mxu0 0.0
  %312 = vmatpush1.msra.mxu0 0.0
  %313 = vmatprep.subr.mxu0 0.0
  %314 = vmatpush1.msra.mxu0 0.0
  %315 = vmatprep.subr.mxu0 0.0
  %316 = vmatpush1.msra.mxu0 0.0
  %317 = vmatprep.subr.mxu0 0.0
  %318 = vmatpush1.msra.mxu0 %v309
  %319 = vmatprep.subr.mxu0 0.0
  %320 = vmatpush1.msra.mxu0 %v214
  %321 = vmatprep.subr.mxu0 0.0
  %322 = vmatpush1.msra.mxu0 %v213
  %323 = vmatprep.subr.mxu0 0.0
  %324 = vmatpush1.msra.mxu0 %v212
  %325 = vmatprep.subr.mxu0 0.0
  %326 = vmatpush1.msra.mxu0 %v211
  %327 = vmatprep.subr.mxu0 0.0
  %328 = vmatpush1.msra.mxu0 %v210
  %329 = vmatprep.subr.mxu0 0.0
  %330 = vmatpush1.msra.mxu0 %v209
  %331 = vmatprep.subr.mxu0 0.0
  %332 = vmatpush1.msra.mxu0 %v208
  %333 = vmatprep.subr.mxu0 0.0
  %334 = vmatpush1.msra.mxu0 %v207
  %335 = vmatprep.subr.mxu0 0.0
  %336 = vmatpush1.msra.mxu0 %v206
  %337 = vmatprep.subr.mxu0 0.0
  %338 = vmatpush1.msra.mxu0 %v205
  %339 = vmatprep.subr.mxu0 0.0
  %340 = vmatpush1.msra.mxu0 %v204
  %341 = vmatprep.subr.mxu0 0.0
  %342 = vmatpush1.msra.mxu0 %v203
  %343 = vmatprep.subr.mxu0 0.0
  %344 = vmatpush2.msra.mxu0 0.0
  %345 = vmatprep.subr.mxu0 0.0
  %346 = vmatpush2.msra.mxu0 0.0
  %347 = vmatprep.subr.mxu0 0.0
  %348 = vmatpush2.msra.mxu0 0.0
  %349 = vmatprep.subr.mxu0 0.0
  %350 = vmatpush2.msra.mxu0 0.0
  %351 = vmatprep.subr.mxu0 0.0
  %352 = vmatpush2.msra.mxu0 0.0
  %353 = vmatprep.subr.mxu0 0.0
  %354 = vmatpush2.msra.mxu0 0.0
  %355 = vmatprep.subr.mxu0 0.0
  %356 = vmatpush2.msra.mxu0 0.0
  %357 = vmatprep.subr.mxu0 0.0
  %358 = vmatpush2.msra.mxu0 0.0
  %359 = vmatprep.subr.mxu0 0.0
  %360 = vmatpush2.msra.mxu0 0.0
  %361 = vmatprep.subr.mxu0 0.0
  %362 = vmatpush2.msra.mxu0 0.0
  %363 = vmatprep.subr.mxu0 0.0
  %364 = vmatpush2.msra.mxu0 0.0
  %365 = vmatprep.subr.mxu0 0.0
  %366 = vmatpush2.msra.mxu0 0.0
  %367 = vmatprep.subr.mxu0 0.0
  %368 = vmatpush2.msra.mxu0 0.0
  %369 = vmatprep.subr.mxu0 0.0
  %370 = vmatpush2.msra.mxu0 0.0
  %371 = vmatprep.subr.mxu0 0.0
  %372 = vmatpush2.msra.mxu0 0.0
  %373 = vmatprep.subr.mxu0 0.0
  %374 = vmatpush2.msra.mxu0 0.0
  %375 = vmatprep.mubr.f32.mxu0 0.0
  %376 = vmatmul.mubr.f32.gmra.mxu0 %v302
  %v377 = vpop.f32.mrf.mxu0
  %v378 = vadd.f32 %v292, %v377
  %v379 = vpop.f32.mrf.mxu0
  %380 = vmatprep.mubr.f32.mxu0 0.0
  %381 = vmatmul.mubr.f32.gmra.mxu0 %v305
  %v382 = vpop.f32.mrf.mxu0
  %v383 = vadd.f32 %v297, %v382
  %v384 = vpop.f32.mrf.mxu0
  %385 = vdwg.mxu0
  %v386 = vld [vmem:[%s4] sm:$0x1]
  %v388 = vlaneseq
  %v389 = vshrl.u32 %v388, 7
  %v390 = vsub.s32 0, %v389
  %v391 = vrot.slane %v386, %v390
  %v393 = vadd.f32 %v378, %v391
  %v394 = vadd.f32 %v383, %v391
  %v395 = vld [vmem:[%s5] sm:$0x1]
  %v396 = vld [vmem:[%s6] sm:$0x1]
  %vm397 = vcmask 261120
  %v398 = vsel %vm397, %v393, 0.0
  %399 = vadd.xlane.f32.xlu0 %v398
  %v400 = vpop.xlane.xlu0 %399
  %v401 = vsel %vm397, %v394, 0.0
  %402 = vadd.xlane.f32.xlu0 %v401
  %v403 = vpop.xlane.xlu0 %402
  %v404 = vrcp.pop 32.0
  %v405 = vmul.f32 %v400, %v404
  %v406 = vmul.f32 %v403, %v404
  %v407 = vsub.f32 %v393, %v405
  %v408 = vsub.f32 %v394, %v406
  %v409 = vmul.f32 %v407, %v407
  %v410 = vmul.f32 %v408, %v408
  %v411 = vsel %vm397, %v409, 0.0
  %412 = vadd.xlane.f32.xlu0 %v411
  %v413 = vpop.xlane.xlu0 %412
  %v414 = vsel %vm397, %v410, 0.0
  %415 = vadd.xlane.f32.xlu0 %v414
  %v416 = vpop.xlane.xlu0 %415
  %v417 = vmul.f32 %v413, %v404
  %v418 = vmul.f32 %v416, %v404
  %v419 = vadd.f32 %v417, 1e-05
  %v420 = vadd.f32 %v418, 1e-05
  %v421 = vrsqrt.pop %v419
  %v422 = vrsqrt.pop %v420
  %v423 = vmul.f32 %v407, %v421
  %v424 = vmul.f32 %v408, %v422
  %v426 = vlaneseq
  %v427 = vshrl.u32 %v426, 7
  %v428 = vsub.s32 0, %v427
  %v429 = vrot.slane %v395, %v428
  %v431 = vmul.f32 %v423, %v429
  %v432 = vmul.f32 %v424, %v429
  %v434 = vlaneseq
  %v435 = vshrl.u32 %v434, 7
  %v436 = vsub.s32 0, %v435
  %v437 = vrot.slane %v396, %v436
  %v439 = vadd.f32 %v431, %v437
  %v440 = vadd.f32 %v432, %v437
  %v441 = vld [vmem:[%s1] sm:$0x3]
  %v442 = vcvt.s32.f32 %v441
  %v443 = vsub.f32 1.0, %v442
  %v444 = vmul.f32 %v443, -1e+09
  %v447 = vunpack.c.l.s4 1966171168
  %v448 = vunpack.c.0.s8 %v447
  %v449 = vlaneseq
  %v450 = vshrl.u32 %v449, 7
  %v451 = vsub.s32 %v448, %v450
  %v452 = vrot.slane %v444, %v451
  %v453 = vcombine.high %v452, %v452
  %v455 = vunpack.c.l.s4 1966171168
  %v456 = vunpack.c.0.s8 %v455
  %v457 = vlaneseq
  %v458 = vshrl.u32 %v457, 7
  %v459 = vsub.s32 %v456, %v458
  %v460 = vrot.slane %v452, %v459
  %v462 = vunpack.c.l.s4 1966171168
  %v463 = vunpack.c.0.s8 %v462
  %v464 = vlaneseq
  %v465 = vshrl.u32 %v464, 7
  %v466 = vsub.s32 %v463, %v465
  %v467 = vrot.slane %v453, %v466
  %v468 = vld [vmem:[%s7] sm:$0xf]
  %v469 = vld [vmem:[%s7 + $0x4] sm:$0xf]
  %v470 = vld [vmem:[%s7 + $0x8] sm:$0xf]
  %v471 = vld [vmem:[%s7 + $0xc] sm:$0xf]
  %v472 = vpack.c.bf16 %v440, %v439
  %v473 = vld [vmem:[%s8] sm:$0x1]
  %v475 = vlaneseq
  %v476 = vshrl.u32 %v475, 7
  %v477 = vsub.s32 0, %v476
  %v478 = vrot.slane %v473, %v477
  %v484 = vunpack.c.l.b16 %v468
  %v485 = vunpack.c.l.b16 %v469
  %v486 = vunpack.c.l.b16 %v470
  %v487 = vunpack.c.l.b16 %v471
  %v488 = vpack.c.b16 %v485, %v484
  %v489 = vpack.c.b16 %v487, %v486
  %v493 = vsel %vm397, %v472, 0
  %495 = vmatprep.subr.bf16.mxu0 0
  %496 = vmatpush1.bf16.msra.mxu0 0
  %497 = vmatprep.subr.bf16.mxu0 0
  %498 = vmatpush1.bf16.msra.mxu0 0
  %499 = vmatprep.subr.bf16.mxu0 0
  %500 = vmatpush1.bf16.msra.mxu0 0
  %501 = vmatprep.subr.bf16.mxu0 0
  %502 = vmatpush1.bf16.msra.mxu0 0
  %503 = vmatprep.subr.bf16.mxu0 0
  %504 = vmatpush1.bf16.msra.mxu0 0
  %505 = vmatprep.subr.bf16.mxu0 0
  %506 = vmatpush1.bf16.msra.mxu0 0
  %507 = vmatprep.subr.bf16.mxu0 0
  %508 = vmatpush1.bf16.msra.mxu0 %v489
  %509 = vmatprep.subr.bf16.mxu0 0
  %510 = vmatpush1.bf16.msra.mxu0 %v488
  %511 = vmatprep.subr.bf16.mxu0 0
  %512 = vmatpush2.bf16.msra.mxu0 0
  %513 = vmatprep.subr.bf16.mxu0 0
  %514 = vmatpush2.bf16.msra.mxu0 0
  %515 = vmatprep.subr.bf16.mxu0 0
  %516 = vmatpush2.bf16.msra.mxu0 0
  %517 = vmatprep.subr.bf16.mxu0 0
  %518 = vmatpush2.bf16.msra.mxu0 0
  %519 = vmatprep.subr.bf16.mxu0 0
  %520 = vmatpush2.bf16.msra.mxu0 0
  %521 = vmatprep.subr.bf16.mxu0 0
  %522 = vmatpush2.bf16.msra.mxu0 0
  %523 = vmatprep.subr.bf16.mxu0 0
  %524 = vmatpush2.bf16.msra.mxu0 0
  %525 = vmatprep.subr.bf16.mxu0 0
  %526 = vmatpush2.bf16.msra.mxu0 0
  %527 = vmatprep.mubr.bf16.mxu0 0
  %528 = vmatmul.mubr.bf16.gmra.mxu0 %v493
  %v529 = vpop.f32.mrf.mxu0
  %v530 = vadd.f32 %v478, %v529
  %v531 = vpop.f32.mrf.mxu0
  %v532 = vpop.f32.mrf.mxu0
  %v533 = vadd.f32 %v478, %v532
  %v534 = vpop.f32.mrf.mxu0
  %535 = vdwg.mxu0
  %538 = vrot.lane.b32.xlu0 %v530, 120
  %v539 = vpop.permute.xlu0 %538
  %540 = vrot.lane.b32.xlu0 %v533, 120
  %v541 = vpop.permute.xlu0 %540
  %544 = vrot.lane.b32.xlu0 %v530, 112
  %v545 = vpop.permute.xlu0 %544
  %546 = vrot.lane.b32.xlu0 %v533, 112
  %v547 = vpop.permute.xlu0 %546
  %550 = vrot.lane.b32.xlu0 %v530, 104
  %v551 = vpop.permute.xlu0 %550
  %552 = vrot.lane.b32.xlu0 %v533, 104
  %v553 = vpop.permute.xlu0 %552
  %556 = vrot.lane.b32.xlu0 %v530, 96
  %v557 = vpop.permute.xlu0 %556
  %558 = vrot.lane.b32.xlu0 %v533, 96
  %v559 = vpop.permute.xlu0 %558
  %562 = vrot.lane.b32.xlu0 %v530, 88
  %v563 = vpop.permute.xlu0 %562
  %564 = vrot.lane.b32.xlu0 %v533, 88
  %v565 = vpop.permute.xlu0 %564
  %568 = vrot.lane.b32.xlu0 %v530, 80
  %v569 = vpop.permute.xlu0 %568
  %570 = vrot.lane.b32.xlu0 %v533, 80
  %v571 = vpop.permute.xlu0 %570
  %574 = vrot.lane.b32.xlu0 %v530, 72
  %v575 = vpop.permute.xlu0 %574
  %576 = vrot.lane.b32.xlu0 %v533, 72
  %v577 = vpop.permute.xlu0 %576
  %580 = vrot.lane.b32.xlu0 %v530, 64
  %v581 = vpop.permute.xlu0 %580
  %582 = vrot.lane.b32.xlu0 %v533, 64
  %v583 = vpop.permute.xlu0 %582
  %586 = vrot.lane.b32.xlu0 %v530, 56
  %v587 = vpop.permute.xlu0 %586
  %588 = vrot.lane.b32.xlu0 %v533, 56
  %v589 = vpop.permute.xlu0 %588
  %592 = vrot.lane.b32.xlu0 %v530, 48
  %v593 = vpop.permute.xlu0 %592
  %594 = vrot.lane.b32.xlu0 %v533, 48
  %v595 = vpop.permute.xlu0 %594
  %598 = vrot.lane.b32.xlu0 %v530, 40
  %v599 = vpop.permute.xlu0 %598
  %600 = vrot.lane.b32.xlu0 %v533, 40
  %v601 = vpop.permute.xlu0 %600
  %v604 = vcombine.low %v530, %v545
  %v605 = vcombine.high %v530, %v545
  %v607 = vunpack.c.l.s4 1983009808
  %v608 = vunpack.c.0.s8 %v607
  %v609 = vlaneseq
  %v610 = vshrl.u32 %v609, 7
  %v611 = vsub.s32 %v608, %v610
  %v612 = vrot.slane %v604, %v611
  %v614 = vunpack.c.l.s4 1983009808
  %v615 = vunpack.c.0.s8 %v614
  %v616 = vlaneseq
  %v617 = vshrl.u32 %v616, 7
  %v618 = vsub.s32 %v615, %v617
  %v619 = vrot.slane %v605, %v618
  %v620 = vcombine.low %v539, %v551
  %v621 = vcombine.high %v539, %v551
  %v623 = vunpack.c.l.s4 1983009808
  %v624 = vunpack.c.0.s8 %v623
  %v625 = vlaneseq
  %v626 = vshrl.u32 %v625, 7
  %v627 = vsub.s32 %v624, %v626
  %v628 = vrot.slane %v620, %v627
  %v630 = vunpack.c.l.s4 1983009808
  %v631 = vunpack.c.0.s8 %v630
  %v632 = vlaneseq
  %v633 = vshrl.u32 %v632, 7
  %v634 = vsub.s32 %v631, %v633
  %v635 = vrot.slane %v621, %v634
  %v636 = vcombine.low %v557, %v569
  %v637 = vcombine.high %v557, %v569
  %v639 = vunpack.c.l.s4 1983009808
  %v640 = vunpack.c.0.s8 %v639
  %v641 = vlaneseq
  %v642 = vshrl.u32 %v641, 7
  %v643 = vsub.s32 %v640, %v642
  %v644 = vrot.slane %v636, %v643
  %v646 = vunpack.c.l.s4 1983009808
  %v647 = vunpack.c.0.s8 %v646
  %v648 = vlaneseq
  %v649 = vshrl.u32 %v648, 7
  %v650 = vsub.s32 %v647, %v649
  %v651 = vrot.slane %v637, %v650
  %v652 = vcombine.low %v563, %v575
  %v653 = vcombine.high %v563, %v575
  %v655 = vunpack.c.l.s4 1983009808
  %v656 = vunpack.c.0.s8 %v655
  %v657 = vlaneseq
  %v658 = vshrl.u32 %v657, 7
  %v659 = vsub.s32 %v656, %v658
  %v660 = vrot.slane %v652, %v659
  %v662 = vunpack.c.l.s4 1983009808
  %v663 = vunpack.c.0.s8 %v662
  %v664 = vlaneseq
  %v665 = vshrl.u32 %v664, 7
  %v666 = vsub.s32 %v663, %v665
  %v667 = vrot.slane %v653, %v666
  %v668 = vcombine.low %v612, %v628
  %v669 = vcombine.high %v612, %v628
  %v671 = vunpack.c.l.s4 1934713408
  %v672 = vunpack.c.0.s8 %v671
  %v673 = vlaneseq
  %v674 = vshrl.u32 %v673, 7
  %v675 = vsub.s32 %v672, %v674
  %v676 = vrot.slane %v668, %v675
  %v678 = vunpack.c.l.s4 1934713408
  %v679 = vunpack.c.0.s8 %v678
  %v680 = vlaneseq
  %v681 = vshrl.u32 %v680, 7
  %v682 = vsub.s32 %v679, %v681
  %v683 = vrot.slane %v669, %v682
  %v684 = vcombine.low %v619, %v635
  %v685 = vcombine.high %v619, %v635
  %v687 = vunpack.c.l.s4 1934713408
  %v688 = vunpack.c.0.s8 %v687
  %v689 = vlaneseq
  %v690 = vshrl.u32 %v689, 7
  %v691 = vsub.s32 %v688, %v690
  %v692 = vrot.slane %v684, %v691
  %v694 = vunpack.c.l.s4 1934713408
  %v695 = vunpack.c.0.s8 %v694
  %v696 = vlaneseq
  %v697 = vshrl.u32 %v696, 7
  %v698 = vsub.s32 %v695, %v697
  %v699 = vrot.slane %v685, %v698
  %v700 = vcombine.low %v644, %v660
  %v701 = vcombine.high %v644, %v660
  %v703 = vunpack.c.l.s4 1934713408
  %v704 = vunpack.c.0.s8 %v703
  %v705 = vlaneseq
  %v706 = vshrl.u32 %v705, 7
  %v707 = vsub.s32 %v704, %v706
  %v708 = vrot.slane %v700, %v707
  %v710 = vunpack.c.l.s4 1934713408
  %v711 = vunpack.c.0.s8 %v710
  %v712 = vlaneseq
  %v713 = vshrl.u32 %v712, 7
  %v714 = vsub.s32 %v711, %v713
  %v715 = vrot.slane %v701, %v714
  %v716 = vcombine.low %v651, %v667
  %v717 = vcombine.high %v651, %v667
  %v719 = vunpack.c.l.s4 1934713408
  %v720 = vunpack.c.0.s8 %v719
  %v721 = vlaneseq
  %v722 = vshrl.u32 %v721, 7
  %v723 = vsub.s32 %v720, %v722
  %v724 = vrot.slane %v716, %v723
  %v726 = vunpack.c.l.s4 1934713408
  %v727 = vunpack.c.0.s8 %v726
  %v728 = vlaneseq
  %v729 = vshrl.u32 %v728, 7
  %v730 = vsub.s32 %v727, %v729
  %v731 = vrot.slane %v717, %v730
  %v732 = vcombine.low %v676, %v708
  %v733 = vcombine.high %v676, %v708
  %v734 = vcombine.low %v683, %v715
  %v735 = vcombine.high %v683, %v715
  %v736 = vcombine.low %v692, %v724
  %v737 = vcombine.high %v692, %v724
  %v738 = vcombine.low %v699, %v731
  %v739 = vcombine.high %v699, %v731
  %v740 = vcombine.low %v581, %v593
  %v741 = vcombine.high %v581, %v593
  %v743 = vunpack.c.l.s4 1983009808
  %v744 = vunpack.c.0.s8 %v743
  %v745 = vlaneseq
  %v746 = vshrl.u32 %v745, 7
  %v747 = vsub.s32 %v744, %v746
  %v748 = vrot.slane %v740, %v747
  %v750 = vunpack.c.l.s4 1983009808
  %v751 = vunpack.c.0.s8 %v750
  %v752 = vlaneseq
  %v753 = vshrl.u32 %v752, 7
  %v754 = vsub.s32 %v751, %v753
  %v755 = vrot.slane %v741, %v754
  %v756 = vcombine.low %v587, %v599
  %v757 = vcombine.high %v587, %v599
  %v759 = vunpack.c.l.s4 1983009808
  %v760 = vunpack.c.0.s8 %v759
  %v761 = vlaneseq
  %v762 = vshrl.u32 %v761, 7
  %v763 = vsub.s32 %v760, %v762
  %v764 = vrot.slane %v756, %v763
  %v766 = vunpack.c.l.s4 1983009808
  %v767 = vunpack.c.0.s8 %v766
  %v768 = vlaneseq
  %v769 = vshrl.u32 %v768, 7
  %v770 = vsub.s32 %v767, %v769
  %v771 = vrot.slane %v757, %v770
  %v772 = vcombine.low %v748, %v764
  %v773 = vcombine.high %v748, %v764
  %v775 = vunpack.c.l.s4 1934713408
  %v776 = vunpack.c.0.s8 %v775
  %v777 = vlaneseq
  %v778 = vshrl.u32 %v777, 7
  %v779 = vsub.s32 %v776, %v778
  %v780 = vrot.slane %v772, %v779
  %v782 = vunpack.c.l.s4 1934713408
  %v783 = vunpack.c.0.s8 %v782
  %v784 = vlaneseq
  %v785 = vshrl.u32 %v784, 7
  %v786 = vsub.s32 %v783, %v785
  %v787 = vrot.slane %v773, %v786
  %v788 = vcombine.low %v755, %v771
  %v789 = vcombine.high %v755, %v771
  %v791 = vunpack.c.l.s4 1934713408
  %v792 = vunpack.c.0.s8 %v791
  %v793 = vlaneseq
  %v794 = vshrl.u32 %v793, 7
  %v795 = vsub.s32 %v792, %v794
  %v796 = vrot.slane %v788, %v795
  %v798 = vunpack.c.l.s4 1934713408
  %v799 = vunpack.c.0.s8 %v798
  %v800 = vlaneseq
  %v801 = vshrl.u32 %v800, 7
  %v802 = vsub.s32 %v799, %v801
  %v803 = vrot.slane %v789, %v802
  %v804 = vcombine.high %v780, 0.0
  %v805 = vcombine.high %v787, 0.0
  %v806 = vcombine.high %v796, 0.0
  %v807 = vcombine.high %v803, 0.0
  %v808 = vcombine.low %v533, %v547
  %v809 = vcombine.high %v533, %v547
  %v811 = vunpack.c.l.s4 1983009808
  %v812 = vunpack.c.0.s8 %v811
  %v813 = vlaneseq
  %v814 = vshrl.u32 %v813, 7
  %v815 = vsub.s32 %v812, %v814
  %v816 = vrot.slane %v808, %v815
  %v818 = vunpack.c.l.s4 1983009808
  %v819 = vunpack.c.0.s8 %v818
  %v820 = vlaneseq
  %v821 = vshrl.u32 %v820, 7
  %v822 = vsub.s32 %v819, %v821
  %v823 = vrot.slane %v809, %v822
  %v824 = vcombine.low %v541, %v553
  %v825 = vcombine.high %v541, %v553
  %v827 = vunpack.c.l.s4 1983009808
  %v828 = vunpack.c.0.s8 %v827
  %v829 = vlaneseq
  %v830 = vshrl.u32 %v829, 7
  %v831 = vsub.s32 %v828, %v830
  %v832 = vrot.slane %v824, %v831
  %v834 = vunpack.c.l.s4 1983009808
  %v835 = vunpack.c.0.s8 %v834
  %v836 = vlaneseq
  %v837 = vshrl.u32 %v836, 7
  %v838 = vsub.s32 %v835, %v837
  %v839 = vrot.slane %v825, %v838
  %v840 = vcombine.low %v559, %v571
  %v841 = vcombine.high %v559, %v571
  %v843 = vunpack.c.l.s4 1983009808
  %v844 = vunpack.c.0.s8 %v843
  %v845 = vlaneseq
  %v846 = vshrl.u32 %v845, 7
  %v847 = vsub.s32 %v844, %v846
  %v848 = vrot.slane %v840, %v847
  %v850 = vunpack.c.l.s4 1983009808
  %v851 = vunpack.c.0.s8 %v850
  %v852 = vlaneseq
  %v853 = vshrl.u32 %v852, 7
  %v854 = vsub.s32 %v851, %v853
  %v855 = vrot.slane %v841, %v854
  %v856 = vcombine.low %v565, %v577
  %v857 = vcombine.high %v565, %v577
  %v859 = vunpack.c.l.s4 1983009808
  %v860 = vunpack.c.0.s8 %v859
  %v861 = vlaneseq
  %v862 = vshrl.u32 %v861, 7
  %v863 = vsub.s32 %v860, %v862
  %v864 = vrot.slane %v856, %v863
  %v866 = vunpack.c.l.s4 1983009808
  %v867 = vunpack.c.0.s8 %v866
  %v868 = vlaneseq
  %v869 = vshrl.u32 %v868, 7
  %v870 = vsub.s32 %v867, %v869
  %v871 = vrot.slane %v857, %v870
  %v872 = vcombine.low %v816, %v832
  %v873 = vcombine.high %v816, %v832
  %v875 = vunpack.c.l.s4 1934713408
  %v876 = vunpack.c.0.s8 %v875
  %v877 = vlaneseq
  %v878 = vshrl.u32 %v877, 7
  %v879 = vsub.s32 %v876, %v878
  %v880 = vrot.slane %v872, %v879
  %v882 = vunpack.c.l.s4 1934713408
  %v883 = vunpack.c.0.s8 %v882
  %v884 = vlaneseq
  %v885 = vshrl.u32 %v884, 7
  %v886 = vsub.s32 %v883, %v885
  %v887 = vrot.slane %v873, %v886
  %v888 = vcombine.low %v823, %v839
  %v889 = vcombine.high %v823, %v839
  %v891 = vunpack.c.l.s4 1934713408
  %v892 = vunpack.c.0.s8 %v891
  %v893 = vlaneseq
  %v894 = vshrl.u32 %v893, 7
  %v895 = vsub.s32 %v892, %v894
  %v896 = vrot.slane %v888, %v895
  %v898 = vunpack.c.l.s4 1934713408
  %v899 = vunpack.c.0.s8 %v898
  %v900 = vlaneseq
  %v901 = vshrl.u32 %v900, 7
  %v902 = vsub.s32 %v899, %v901
  %v903 = vrot.slane %v889, %v902
  %v904 = vcombine.low %v848, %v864
  %v905 = vcombine.high %v848, %v864
  %v907 = vunpack.c.l.s4 1934713408
  %v908 = vunpack.c.0.s8 %v907
  %v909 = vlaneseq
  %v910 = vshrl.u32 %v909, 7
  %v911 = vsub.s32 %v908, %v910
  %v912 = vrot.slane %v904, %v911
  %v914 = vunpack.c.l.s4 1934713408
  %v915 = vunpack.c.0.s8 %v914
  %v916 = vlaneseq
  %v917 = vshrl.u32 %v916, 7
  %v918 = vsub.s32 %v915, %v917
  %v919 = vrot.slane %v905, %v918
  %v920 = vcombine.low %v855, %v871
  %v921 = vcombine.high %v855, %v871
  %v923 = vunpack.c.l.s4 1934713408
  %v924 = vunpack.c.0.s8 %v923
  %v925 = vlaneseq
  %v926 = vshrl.u32 %v925, 7
  %v927 = vsub.s32 %v924, %v926
  %v928 = vrot.slane %v920, %v927
  %v930 = vunpack.c.l.s4 1934713408
  %v931 = vunpack.c.0.s8 %v930
  %v932 = vlaneseq
  %v933 = vshrl.u32 %v932, 7
  %v934 = vsub.s32 %v931, %v933
  %v935 = vrot.slane %v921, %v934
  %v936 = vcombine.low %v880, %v912
  %v937 = vcombine.high %v880, %v912
  %v938 = vcombine.low %v887, %v919
  %v939 = vcombine.high %v887, %v919
  %v940 = vcombine.low %v896, %v928
  %v941 = vcombine.high %v896, %v928
  %v942 = vcombine.low %v903, %v935
  %v943 = vcombine.high %v903, %v935
  %v944 = vcombine.low %v583, %v595
  %v945 = vcombine.high %v583, %v595
  %v947 = vunpack.c.l.s4 1983009808
  %v948 = vunpack.c.0.s8 %v947
  %v949 = vlaneseq
  %v950 = vshrl.u32 %v949, 7
  %v951 = vsub.s32 %v948, %v950
  %v952 = vrot.slane %v944, %v951
  %v954 = vunpack.c.l.s4 1983009808
  %v955 = vunpack.c.0.s8 %v954
  %v956 = vlaneseq
  %v957 = vshrl.u32 %v956, 7
  %v958 = vsub.s32 %v955, %v957
  %v959 = vrot.slane %v945, %v958
  %v960 = vcombine.low %v589, %v601
  %v961 = vcombine.high %v589, %v601
  %v963 = vunpack.c.l.s4 1983009808
  %v964 = vunpack.c.0.s8 %v963
  %v965 = vlaneseq
  %v966 = vshrl.u32 %v965, 7
  %v967 = vsub.s32 %v964, %v966
  %v968 = vrot.slane %v960, %v967
  %v970 = vunpack.c.l.s4 1983009808
  %v971 = vunpack.c.0.s8 %v970
  %v972 = vlaneseq
  %v973 = vshrl.u32 %v972, 7
  %v974 = vsub.s32 %v971, %v973
  %v975 = vrot.slane %v961, %v974
  %v976 = vcombine.low %v952, %v968
  %v977 = vcombine.high %v952, %v968
  %v979 = vunpack.c.l.s4 1934713408
  %v980 = vunpack.c.0.s8 %v979
  %v981 = vlaneseq
  %v982 = vshrl.u32 %v981, 7
  %v983 = vsub.s32 %v980, %v982
  %v984 = vrot.slane %v976, %v983
  %v986 = vunpack.c.l.s4 1934713408
  %v987 = vunpack.c.0.s8 %v986
  %v988 = vlaneseq
  %v989 = vshrl.u32 %v988, 7
  %v990 = vsub.s32 %v987, %v989
  %v991 = vrot.slane %v977, %v990
  %v992 = vcombine.low %v959, %v975
  %v993 = vcombine.high %v959, %v975
  %v995 = vunpack.c.l.s4 1934713408
  %v996 = vunpack.c.0.s8 %v995
  %v997 = vlaneseq
  %v998 = vshrl.u32 %v997, 7
  %v999 = vsub.s32 %v996, %v998
  %v1000 = vrot.slane %v992, %v999
  %v1002 = vunpack.c.l.s4 1934713408
  %v1003 = vunpack.c.0.s8 %v1002
  %v1004 = vlaneseq
  %v1005 = vshrl.u32 %v1004, 7
  %v1006 = vsub.s32 %v1003, %v1005
  %v1007 = vrot.slane %v993, %v1006
  %v1008 = vcombine.high %v984, 0.0
  %v1009 = vcombine.high %v991, 0.0
  %v1010 = vcombine.high %v1000, 0.0
  %v1011 = vcombine.high %v1007, 0.0
  %v1012 = vcombine.low %v732, %v734
  %v1014 = vunpack.c.l.s4 1983009808
  %v1015 = vunpack.c.0.s8 %v1014
  %v1016 = vlaneseq
  %v1017 = vshrl.u32 %v1016, 7
  %v1018 = vsub.s32 %v1015, %v1017
  %v1019 = vrot.slane %v1012, %v1018
  %v1020 = vcombine.low %v733, %v735
  %v1022 = vunpack.c.l.s4 1983009808
  %v1023 = vunpack.c.0.s8 %v1022
  %v1024 = vlaneseq
  %v1025 = vshrl.u32 %v1024, 7
  %v1026 = vsub.s32 %v1023, %v1025
  %v1027 = vrot.slane %v1020, %v1026
  %v1028 = vcombine.low %v736, %v738
  %v1030 = vunpack.c.l.s4 1983009808
  %v1031 = vunpack.c.0.s8 %v1030
  %v1032 = vlaneseq
  %v1033 = vshrl.u32 %v1032, 7
  %v1034 = vsub.s32 %v1031, %v1033
  %v1035 = vrot.slane %v1028, %v1034
  %v1036 = vcombine.low %v737, %v739
  %v1038 = vunpack.c.l.s4 1983009808
  %v1039 = vunpack.c.0.s8 %v1038
  %v1040 = vlaneseq
  %v1041 = vshrl.u32 %v1040, 7
  %v1042 = vsub.s32 %v1039, %v1041
  %v1043 = vrot.slane %v1036, %v1042
  %v1044 = vcombine.low %v1019, %v1027
  %v1045 = vcombine.high %v1019, %v1027
  %v1047 = vunpack.c.l.s4 1934713408
  %v1048 = vunpack.c.0.s8 %v1047
  %v1049 = vlaneseq
  %v1050 = vshrl.u32 %v1049, 7
  %v1051 = vsub.s32 %v1048, %v1050
  %v1052 = vrot.slane %v1044, %v1051
  %v1054 = vunpack.c.l.s4 1934713408
  %v1055 = vunpack.c.0.s8 %v1054
  %v1056 = vlaneseq
  %v1057 = vshrl.u32 %v1056, 7
  %v1058 = vsub.s32 %v1055, %v1057
  %v1059 = vrot.slane %v1045, %v1058
  %v1060 = vcombine.low %v1035, %v1043
  %v1061 = vcombine.high %v1035, %v1043
  %v1063 = vunpack.c.l.s4 1934713408
  %v1064 = vunpack.c.0.s8 %v1063
  %v1065 = vlaneseq
  %v1066 = vshrl.u32 %v1065, 7
  %v1067 = vsub.s32 %v1064, %v1066
  %v1068 = vrot.slane %v1060, %v1067
  %v1070 = vunpack.c.l.s4 1934713408
  %v1071 = vunpack.c.0.s8 %v1070
  %v1072 = vlaneseq
  %v1073 = vshrl.u32 %v1072, 7
  %v1074 = vsub.s32 %v1071, %v1073
  %v1075 = vrot.slane %v1061, %v1074
  %v1076 = vcombine.low %v1052, %v1068
  %v1077 = vcombine.high %v1052, %v1068
  %v1078 = vcombine.low %v1059, %v1075
  %v1079 = vcombine.high %v1059, %v1075
  %v1080 = vcombine.low %v936, %v938
  %v1082 = vunpack.c.l.s4 1983009808
  %v1083 = vunpack.c.0.s8 %v1082
  %v1084 = vlaneseq
  %v1085 = vshrl.u32 %v1084, 7
  %v1086 = vsub.s32 %v1083, %v1085
  %v1087 = vrot.slane %v1080, %v1086
  %v1088 = vcombine.low %v937, %v939
  %v1090 = vunpack.c.l.s4 1983009808
  %v1091 = vunpack.c.0.s8 %v1090
  %v1092 = vlaneseq
  %v1093 = vshrl.u32 %v1092, 7
  %v1094 = vsub.s32 %v1091, %v1093
  %v1095 = vrot.slane %v1088, %v1094
  %v1096 = vcombine.low %v940, %v942
  %v1098 = vunpack.c.l.s4 1983009808
  %v1099 = vunpack.c.0.s8 %v1098
  %v1100 = vlaneseq
  %v1101 = vshrl.u32 %v1100, 7
  %v1102 = vsub.s32 %v1099, %v1101
  %v1103 = vrot.slane %v1096, %v1102
  %v1104 = vcombine.low %v941, %v943
  %v1106 = vunpack.c.l.s4 1983009808
  %v1107 = vunpack.c.0.s8 %v1106
  %v1108 = vlaneseq
  %v1109 = vshrl.u32 %v1108, 7
  %v1110 = vsub.s32 %v1107, %v1109
  %v1111 = vrot.slane %v1104, %v1110
  %v1112 = vcombine.low %v1087, %v1095
  %v1113 = vcombine.high %v1087, %v1095
  %v1115 = vunpack.c.l.s4 1934713408
  %v1116 = vunpack.c.0.s8 %v1115
  %v1117 = vlaneseq
  %v1118 = vshrl.u32 %v1117, 7
  %v1119 = vsub.s32 %v1116, %v1118
  %v1120 = vrot.slane %v1112, %v1119
  %v1122 = vunpack.c.l.s4 1934713408
  %v1123 = vunpack.c.0.s8 %v1122
  %v1124 = vlaneseq
  %v1125 = vshrl.u32 %v1124, 7
  %v1126 = vsub.s32 %v1123, %v1125
  %v1127 = vrot.slane %v1113, %v1126
  %v1128 = vcombine.low %v1103, %v1111
  %v1129 = vcombine.high %v1103, %v1111
  %v1131 = vunpack.c.l.s4 1934713408
  %v1132 = vunpack.c.0.s8 %v1131
  %v1133 = vlaneseq
  %v1134 = vshrl.u32 %v1133, 7
  %v1135 = vsub.s32 %v1132, %v1134
  %v1136 = vrot.slane %v1128, %v1135
  %v1138 = vunpack.c.l.s4 1934713408
  %v1139 = vunpack.c.0.s8 %v1138
  %v1140 = vlaneseq
  %v1141 = vshrl.u32 %v1140, 7
  %v1142 = vsub.s32 %v1139, %v1141
  %v1143 = vrot.slane %v1129, %v1142
  %v1144 = vcombine.low %v1120, %v1136
  %v1145 = vcombine.high %v1120, %v1136
  %v1146 = vcombine.low %v1127, %v1143
  %v1147 = vcombine.high %v1127, %v1143
  %v1164 = vrot.slane %v732, 4
  %v1165 = vrot.slane %v733, 4
  %v1166 = vrot.slane %v734, 4
  %v1167 = vrot.slane %v735, 4
  %v1168 = vrot.slane %v736, 4
  %v1169 = vrot.slane %v737, 4
  %v1170 = vrot.slane %v738, 4
  %v1171 = vrot.slane %v739, 4
  %v1172 = vrot.slane %v936, 4
  %v1173 = vrot.slane %v937, 4
  %v1174 = vrot.slane %v938, 4
  %v1175 = vrot.slane %v939, 4
  %v1176 = vrot.slane %v940, 4
  %v1177 = vrot.slane %v941, 4
  %v1178 = vrot.slane %v942, 4
  %v1179 = vrot.slane %v943, 4
  %v1196 = vcombine.low %v1164, %v1166
  %v1198 = vunpack.c.l.s4 1983009808
  %v1199 = vunpack.c.0.s8 %v1198
  %v1200 = vlaneseq
  %v1201 = vshrl.u32 %v1200, 7
  %v1202 = vsub.s32 %v1199, %v1201
  %v1203 = vrot.slane %v1196, %v1202
  %v1204 = vcombine.low %v1165, %v1167
  %v1206 = vunpack.c.l.s4 1983009808
  %v1207 = vunpack.c.0.s8 %v1206
  %v1208 = vlaneseq
  %v1209 = vshrl.u32 %v1208, 7
  %v1210 = vsub.s32 %v1207, %v1209
  %v1211 = vrot.slane %v1204, %v1210
  %v1212 = vcombine.low %v1168, %v1170
  %v1214 = vunpack.c.l.s4 1983009808
  %v1215 = vunpack.c.0.s8 %v1214
  %v1216 = vlaneseq
  %v1217 = vshrl.u32 %v1216, 7
  %v1218 = vsub.s32 %v1215, %v1217
  %v1219 = vrot.slane %v1212, %v1218
  %v1220 = vcombine.low %v1169, %v1171
  %v1222 = vunpack.c.l.s4 1983009808
  %v1223 = vunpack.c.0.s8 %v1222
  %v1224 = vlaneseq
  %v1225 = vshrl.u32 %v1224, 7
  %v1226 = vsub.s32 %v1223, %v1225
  %v1227 = vrot.slane %v1220, %v1226
  %v1228 = vcombine.low %v1203, %v1211
  %v1229 = vcombine.high %v1203, %v1211
  %v1231 = vunpack.c.l.s4 1934713408
  %v1232 = vunpack.c.0.s8 %v1231
  %v1233 = vlaneseq
  %v1234 = vshrl.u32 %v1233, 7
  %v1235 = vsub.s32 %v1232, %v1234
  %v1236 = vrot.slane %v1228, %v1235
  %v1238 = vunpack.c.l.s4 1934713408
  %v1239 = vunpack.c.0.s8 %v1238
  %v1240 = vlaneseq
  %v1241 = vshrl.u32 %v1240, 7
  %v1242 = vsub.s32 %v1239, %v1241
  %v1243 = vrot.slane %v1229, %v1242
  %v1244 = vcombine.low %v1219, %v1227
  %v1245 = vcombine.high %v1219, %v1227
  %v1247 = vunpack.c.l.s4 1934713408
  %v1248 = vunpack.c.0.s8 %v1247
  %v1249 = vlaneseq
  %v1250 = vshrl.u32 %v1249, 7
  %v1251 = vsub.s32 %v1248, %v1250
  %v1252 = vrot.slane %v1244, %v1251
  %v1254 = vunpack.c.l.s4 1934713408
  %v1255 = vunpack.c.0.s8 %v1254
  %v1256 = vlaneseq
  %v1257 = vshrl.u32 %v1256, 7
  %v1258 = vsub.s32 %v1255, %v1257
  %v1259 = vrot.slane %v1245, %v1258
  %v1260 = vcombine.low %v1236, %v1252
  %v1261 = vcombine.high %v1236, %v1252
  %v1262 = vcombine.low %v1243, %v1259
  %v1263 = vcombine.high %v1243, %v1259
  %v1264 = vcombine.low %v1172, %v1174
  %v1266 = vunpack.c.l.s4 1983009808
  %v1267 = vunpack.c.0.s8 %v1266
  %v1268 = vlaneseq
  %v1269 = vshrl.u32 %v1268, 7
  %v1270 = vsub.s32 %v1267, %v1269
  %v1271 = vrot.slane %v1264, %v1270
  %v1272 = vcombine.low %v1173, %v1175
  %v1274 = vunpack.c.l.s4 1983009808
  %v1275 = vunpack.c.0.s8 %v1274
  %v1276 = vlaneseq
  %v1277 = vshrl.u32 %v1276, 7
  %v1278 = vsub.s32 %v1275, %v1277
  %v1279 = vrot.slane %v1272, %v1278
  %v1280 = vcombine.low %v1176, %v1178
  %v1282 = vunpack.c.l.s4 1983009808
  %v1283 = vunpack.c.0.s8 %v1282
  %v1284 = vlaneseq
  %v1285 = vshrl.u32 %v1284, 7
  %v1286 = vsub.s32 %v1283, %v1285
  %v1287 = vrot.slane %v1280, %v1286
  %v1288 = vcombine.low %v1177, %v1179
  %v1290 = vunpack.c.l.s4 1983009808
  %v1291 = vunpack.c.0.s8 %v1290
  %v1292 = vlaneseq
  %v1293 = vshrl.u32 %v1292, 7
  %v1294 = vsub.s32 %v1291, %v1293
  %v1295 = vrot.slane %v1288, %v1294
  %v1296 = vcombine.low %v1271, %v1279
  %v1297 = vcombine.high %v1271, %v1279
  %v1299 = vunpack.c.l.s4 1934713408
  %v1300 = vunpack.c.0.s8 %v1299
  %v1301 = vlaneseq
  %v1302 = vshrl.u32 %v1301, 7
  %v1303 = vsub.s32 %v1300, %v1302
  %v1304 = vrot.slane %v1296, %v1303
  %v1306 = vunpack.c.l.s4 1934713408
  %v1307 = vunpack.c.0.s8 %v1306
  %v1308 = vlaneseq
  %v1309 = vshrl.u32 %v1308, 7
  %v1310 = vsub.s32 %v1307, %v1309
  %v1311 = vrot.slane %v1297, %v1310
  %v1312 = vcombine.low %v1287, %v1295
  %v1313 = vcombine.high %v1287, %v1295
  %v1315 = vunpack.c.l.s4 1934713408
  %v1316 = vunpack.c.0.s8 %v1315
  %v1317 = vlaneseq
  %v1318 = vshrl.u32 %v1317, 7
  %v1319 = vsub.s32 %v1316, %v1318
  %v1320 = vrot.slane %v1312, %v1319
  %v1322 = vunpack.c.l.s4 1934713408
  %v1323 = vunpack.c.0.s8 %v1322
  %v1324 = vlaneseq
  %v1325 = vshrl.u32 %v1324, 7
  %v1326 = vsub.s32 %v1323, %v1325
  %v1327 = vrot.slane %v1313, %v1326
  %v1328 = vcombine.low %v1304, %v1320
  %v1329 = vcombine.high %v1304, %v1320
  %v1330 = vcombine.low %v1311, %v1327
  %v1331 = vcombine.high %v1311, %v1327
  %v1332 = vcombine.low %v780, %v787
  %v1334 = vunpack.c.l.s4 1983009808
  %v1335 = vunpack.c.0.s8 %v1334
  %v1336 = vlaneseq
  %v1337 = vshrl.u32 %v1336, 7
  %v1338 = vsub.s32 %v1335, %v1337
  %v1339 = vrot.slane %v1332, %v1338
  %v1340 = vcombine.low %v804, %v805
  %v1342 = vunpack.c.l.s4 1983009808
  %v1343 = vunpack.c.0.s8 %v1342
  %v1344 = vlaneseq
  %v1345 = vshrl.u32 %v1344, 7
  %v1346 = vsub.s32 %v1343, %v1345
  %v1347 = vrot.slane %v1340, %v1346
  %v1348 = vcombine.low %v796, %v803
  %v1350 = vunpack.c.l.s4 1983009808
  %v1351 = vunpack.c.0.s8 %v1350
  %v1352 = vlaneseq
  %v1353 = vshrl.u32 %v1352, 7
  %v1354 = vsub.s32 %v1351, %v1353
  %v1355 = vrot.slane %v1348, %v1354
  %v1356 = vcombine.low %v806, %v807
  %v1358 = vunpack.c.l.s4 1983009808
  %v1359 = vunpack.c.0.s8 %v1358
  %v1360 = vlaneseq
  %v1361 = vshrl.u32 %v1360, 7
  %v1362 = vsub.s32 %v1359, %v1361
  %v1363 = vrot.slane %v1356, %v1362
  %v1364 = vcombine.low %v1339, %v1347
  %v1365 = vcombine.high %v1339, %v1347
  %v1367 = vunpack.c.l.s4 1934713408
  %v1368 = vunpack.c.0.s8 %v1367
  %v1369 = vlaneseq
  %v1370 = vshrl.u32 %v1369, 7
  %v1371 = vsub.s32 %v1368, %v1370
  %v1372 = vrot.slane %v1364, %v1371
  %v1374 = vunpack.c.l.s4 1934713408
  %v1375 = vunpack.c.0.s8 %v1374
  %v1376 = vlaneseq
  %v1377 = vshrl.u32 %v1376, 7
  %v1378 = vsub.s32 %v1375, %v1377
  %v1379 = vrot.slane %v1365, %v1378
  %v1380 = vcombine.low %v1355, %v1363
  %v1381 = vcombine.high %v1355, %v1363
  %v1383 = vunpack.c.l.s4 1934713408
  %v1384 = vunpack.c.0.s8 %v1383
  %v1385 = vlaneseq
  %v1386 = vshrl.u32 %v1385, 7
  %v1387 = vsub.s32 %v1384, %v1386
  %v1388 = vrot.slane %v1380, %v1387
  %v1390 = vunpack.c.l.s4 1934713408
  %v1391 = vunpack.c.0.s8 %v1390
  %v1392 = vlaneseq
  %v1393 = vshrl.u32 %v1392, 7
  %v1394 = vsub.s32 %v1391, %v1393
  %v1395 = vrot.slane %v1381, %v1394
  %v1396 = vcombine.low %v1372, %v1388
  %v1397 = vcombine.high %v1372, %v1388
  %v1398 = vcombine.low %v1379, %v1395
  %v1399 = vcombine.high %v1379, %v1395
  %v1400 = vcombine.low %v984, %v991
  %v1402 = vunpack.c.l.s4 1983009808
  %v1403 = vunpack.c.0.s8 %v1402
  %v1404 = vlaneseq
  %v1405 = vshrl.u32 %v1404, 7
  %v1406 = vsub.s32 %v1403, %v1405
  %v1407 = vrot.slane %v1400, %v1406
  %v1408 = vcombine.low %v1008, %v1009
  %v1410 = vunpack.c.l.s4 1983009808
  %v1411 = vunpack.c.0.s8 %v1410
  %v1412 = vlaneseq
  %v1413 = vshrl.u32 %v1412, 7
  %v1414 = vsub.s32 %v1411, %v1413
  %v1415 = vrot.slane %v1408, %v1414
  %v1416 = vcombine.low %v1000, %v1007
  %v1418 = vunpack.c.l.s4 1983009808
  %v1419 = vunpack.c.0.s8 %v1418
  %v1420 = vlaneseq
  %v1421 = vshrl.u32 %v1420, 7
  %v1422 = vsub.s32 %v1419, %v1421
  %v1423 = vrot.slane %v1416, %v1422
  %v1424 = vcombine.low %v1010, %v1011
  %v1426 = vunpack.c.l.s4 1983009808
  %v1427 = vunpack.c.0.s8 %v1426
  %v1428 = vlaneseq
  %v1429 = vshrl.u32 %v1428, 7
  %v1430 = vsub.s32 %v1427, %v1429
  %v1431 = vrot.slane %v1424, %v1430
  %v1432 = vcombine.low %v1407, %v1415
  %v1433 = vcombine.high %v1407, %v1415
  %v1435 = vunpack.c.l.s4 1934713408
  %v1436 = vunpack.c.0.s8 %v1435
  %v1437 = vlaneseq
  %v1438 = vshrl.u32 %v1437, 7
  %v1439 = vsub.s32 %v1436, %v1438
  %v1440 = vrot.slane %v1432, %v1439
  %v1442 = vunpack.c.l.s4 1934713408
  %v1443 = vunpack.c.0.s8 %v1442
  %v1444 = vlaneseq
  %v1445 = vshrl.u32 %v1444, 7
  %v1446 = vsub.s32 %v1443, %v1445
  %v1447 = vrot.slane %v1433, %v1446
  %v1448 = vcombine.low %v1423, %v1431
  %v1449 = vcombine.high %v1423, %v1431
  %v1451 = vunpack.c.l.s4 1934713408
  %v1452 = vunpack.c.0.s8 %v1451
  %v1453 = vlaneseq
  %v1454 = vshrl.u32 %v1453, 7
  %v1455 = vsub.s32 %v1452, %v1454
  %v1456 = vrot.slane %v1448, %v1455
  %v1458 = vunpack.c.l.s4 1934713408
  %v1459 = vunpack.c.0.s8 %v1458
  %v1460 = vlaneseq
  %v1461 = vshrl.u32 %v1460, 7
  %v1462 = vsub.s32 %v1459, %v1461
  %v1463 = vrot.slane %v1449, %v1462
  %v1464 = vcombine.low %v1440, %v1456
  %v1465 = vcombine.high %v1440, %v1456
  %v1466 = vcombine.low %v1447, %v1463
  %v1467 = vcombine.high %v1447, %v1463
  %v1468 = vpack.c.bf16 %v1076, %v1076
  %v1469 = vpack.c.bf16 %v1077, %v1077
  %v1470 = vpack.c.bf16 %v1078, %v1078
  %v1471 = vpack.c.bf16 %v1079, %v1079
  %v1472 = vpack.c.bf16 %v1144, %v1144
  %v1473 = vpack.c.bf16 %v1145, %v1145
  %v1474 = vpack.c.bf16 %v1146, %v1146
  %v1475 = vpack.c.bf16 %v1147, %v1147
  %v1476 = vpack.c.bf16 %v1260, %v1260
  %v1477 = vpack.c.bf16 %v1261, %v1261
  %v1478 = vpack.c.bf16 %v1262, %v1262
  %v1479 = vpack.c.bf16 %v1263, %v1263
  %v1480 = vpack.c.bf16 %v1328, %v1328
  %v1481 = vpack.c.bf16 %v1329, %v1329
  %v1482 = vpack.c.bf16 %v1330, %v1330
  %v1483 = vpack.c.bf16 %v1331, %v1331
  %v1485 = vsel %vm86, %v1468, 0
  %v1488 = vsel %vm86, %v1476, 0
  %1490 = vmatprep.subr.bf16.mxu0 0
  %1491 = vmatpush1.bf16.xpose.msra.mxu0 0
  %1492 = vmatprep.subr.bf16.mxu0 0
  %1493 = vmatpush1.bf16.xpose.msra.mxu0 0
  %1494 = vmatprep.subr.bf16.mxu0 0
  %1495 = vmatpush1.bf16.xpose.msra.mxu0 0
  %1496 = vmatprep.subr.bf16.mxu0 0
  %1497 = vmatpush1.bf16.xpose.msra.mxu0 0
  %1498 = vmatprep.subr.bf16.mxu0 0
  %1499 = vmatpush1.bf16.xpose.msra.mxu0 0
  %1500 = vmatprep.subr.bf16.mxu0 0
  %1501 = vmatpush1.bf16.xpose.msra.mxu0 0
  %1502 = vmatprep.subr.bf16.mxu0 0
  %1503 = vmatpush1.bf16.xpose.msra.mxu0 0
  %1504 = vmatprep.subr.bf16.mxu0 0
  %1505 = vmatpush1.bf16.xpose.msra.mxu0 %v1488
  %1506 = vmatprep.subr.bf16.mxu0 0
  %1507 = vmatpush2.bf16.xpose.msra.mxu0 0
  %1508 = vmatprep.subr.bf16.mxu0 0
  %1509 = vmatpush2.bf16.xpose.msra.mxu0 0
  %1510 = vmatprep.subr.bf16.mxu0 0
  %1511 = vmatpush2.bf16.xpose.msra.mxu0 0
  %1512 = vmatprep.subr.bf16.mxu0 0
  %1513 = vmatpush2.bf16.xpose.msra.mxu0 0
  %1514 = vmatprep.subr.bf16.mxu0 0
  %1515 = vmatpush2.bf16.xpose.msra.mxu0 0
  %1516 = vmatprep.subr.bf16.mxu0 0
  %1517 = vmatpush2.bf16.xpose.msra.mxu0 0
  %1518 = vmatprep.subr.bf16.mxu0 0
  %1519 = vmatpush2.bf16.xpose.msra.mxu0 0
  %1520 = vmatprep.subr.bf16.mxu0 0
  %1521 = vmatpush2.bf16.xpose.msra.mxu0 0
  %1522 = vmatprep.mubr.bf16.mxu0 0
  %1523 = vmatmul.mubr.bf16.gmra.mxu0 %v1485
  %v1524 = vpop.f32.mrf.mxu0
  %v1525 = vadd.f32 0.0, %v1524
  %v1526 = vpop.f32.mrf.mxu0
  %v1527 = vpop.f32.mrf.mxu0
  %v1528 = vpop.f32.mrf.mxu0
  %1529 = vdwg.mxu0
  %v1531 = vsel %vm86, %v1469, 0
  %v1534 = vsel %vm86, %v1477, 0
  %1536 = vmatprep.subr.bf16.mxu0 0
  %1537 = vmatpush1.bf16.xpose.msra.mxu0 0
  %1538 = vmatprep.subr.bf16.mxu0 0
  %1539 = vmatpush1.bf16.xpose.msra.mxu0 0
  %1540 = vmatprep.subr.bf16.mxu0 0
  %1541 = vmatpush1.bf16.xpose.msra.mxu0 0
  %1542 = vmatprep.subr.bf16.mxu0 0
  %1543 = vmatpush1.bf16.xpose.msra.mxu0 0
  %1544 = vmatprep.subr.bf16.mxu0 0
  %1545 = vmatpush1.bf16.xpose.msra.mxu0 0
  %1546 = vmatprep.subr.bf16.mxu0 0
  %1547 = vmatpush1.bf16.xpose.msra.mxu0 0
  %1548 = vmatprep.subr.bf16.mxu0 0
  %1549 = vmatpush1.bf16.xpose.msra.mxu0 0
  %1550 = vmatprep.subr.bf16.mxu0 0
  %1551 = vmatpush1.bf16.xpose.msra.mxu0 %v1534
  %1552 = vmatprep.subr.bf16.mxu0 0
  %1553 = vmatpush2.bf16.xpose.msra.mxu0 0
  %1554 = vmatprep.subr.bf16.mxu0 0
  %1555 = vmatpush2.bf16.xpose.msra.mxu0 0
  %1556 = vmatprep.subr.bf16.mxu0 0
  %1557 = vmatpush2.bf16.xpose.msra.mxu0 0
  %1558 = vmatprep.subr.bf16.mxu0 0
  %1559 = vmatpush2.bf16.xpose.msra.mxu0 0
  %1560 = vmatprep.subr.bf16.mxu0 0
  %1561 = vmatpush2.bf16.xpose.msra.mxu0 0
  %1562 = vmatprep.subr.bf16.mxu0 0
  %1563 = vmatpush2.bf16.xpose.msra.mxu0 0
  %1564 = vmatprep.subr.bf16.mxu0 0
  %1565 = vmatpush2.bf16.xpose.msra.mxu0 0
  %1566 = vmatprep.subr.bf16.mxu0 0
  %1567 = vmatpush2.bf16.xpose.msra.mxu0 0
  %1568 = vmatprep.mubr.bf16.mxu0 0
  %1569 = vmatmul.mubr.bf16.gmra.mxu0 %v1531
  %v1570 = vpop.f32.mrf.mxu0
  %v1571 = vadd.f32 0.0, %v1570
  %v1572 = vpop.f32.mrf.mxu0
  %v1573 = vpop.f32.mrf.mxu0
  %v1574 = vpop.f32.mrf.mxu0
  %1575 = vdwg.mxu0
  %v1577 = vsel %vm86, %v1470, 0
  %v1580 = vsel %vm86, %v1478, 0
  %1582 = vmatprep.subr.bf16.mxu0 0
  %1583 = vmatpush1.bf16.xpose.msra.mxu0 0
  %1584 = vmatprep.subr.bf16.mxu0 0
  %1585 = vmatpush1.bf16.xpose.msra.mxu0 0
  %1586 = vmatprep.subr.bf16.mxu0 0
  %1587 = vmatpush1.bf16.xpose.msra.mxu0 0
  %1588 = vmatprep.subr.bf16.mxu0 0
  %1589 = vmatpush1.bf16.xpose.msra.mxu0 0
  %1590 = vmatprep.subr.bf16.mxu0 0
  %1591 = vmatpush1.bf16.xpose.msra.mxu0 0
  %1592 = vmatprep.subr.bf16.mxu0 0
  %1593 = vmatpush1.bf16.xpose.msra.mxu0 0
  %1594 = vmatprep.subr.bf16.mxu0 0
  %1595 = vmatpush1.bf16.xpose.msra.mxu0 0
  %1596 = vmatprep.subr.bf16.mxu0 0
  %1597 = vmatpush1.bf16.xpose.msra.mxu0 %v1580
  %1598 = vmatprep.subr.bf16.mxu0 0
  %1599 = vmatpush2.bf16.xpose.msra.mxu0 0
  %1600 = vmatprep.subr.bf16.mxu0 0
  %1601 = vmatpush2.bf16.xpose.msra.mxu0 0
  %1602 = vmatprep.subr.bf16.mxu0 0
  %1603 = vmatpush2.bf16.xpose.msra.mxu0 0
  %1604 = vmatprep.subr.bf16.mxu0 0
  %1605 = vmatpush2.bf16.xpose.msra.mxu0 0
  %1606 = vmatprep.subr.bf16.mxu0 0
  %1607 = vmatpush2.bf16.xpose.msra.mxu0 0
  %1608 = vmatprep.subr.bf16.mxu0 0
  %1609 = vmatpush2.bf16.xpose.msra.mxu0 0
  %1610 = vmatprep.subr.bf16.mxu0 0
  %1611 = vmatpush2.bf16.xpose.msra.mxu0 0
  %1612 = vmatprep.subr.bf16.mxu0 0
  %1613 = vmatpush2.bf16.xpose.msra.mxu0 0
  %1614 = vmatprep.mubr.bf16.mxu0 0
  %1615 = vmatmul.mubr.bf16.gmra.mxu0 %v1577
  %v1616 = vpop.f32.mrf.mxu0
  %v1617 = vadd.f32 0.0, %v1616
  %v1618 = vpop.f32.mrf.mxu0
  %v1619 = vpop.f32.mrf.mxu0
  %v1620 = vpop.f32.mrf.mxu0
  %1621 = vdwg.mxu0
  %v1623 = vsel %vm86, %v1471, 0
  %v1626 = vsel %vm86, %v1479, 0
  %1628 = vmatprep.subr.bf16.mxu0 0
  %1629 = vmatpush1.bf16.xpose.msra.mxu0 0
  %1630 = vmatprep.subr.bf16.mxu0 0
  %1631 = vmatpush1.bf16.xpose.msra.mxu0 0
  %1632 = vmatprep.subr.bf16.mxu0 0
  %1633 = vmatpush1.bf16.xpose.msra.mxu0 0
  %1634 = vmatprep.subr.bf16.mxu0 0
  %1635 = vmatpush1.bf16.xpose.msra.mxu0 0
  %1636 = vmatprep.subr.bf16.mxu0 0
  %1637 = vmatpush1.bf16.xpose.msra.mxu0 0
  %1638 = vmatprep.subr.bf16.mxu0 0
  %1639 = vmatpush1.bf16.xpose.msra.mxu0 0
  %1640 = vmatprep.subr.bf16.mxu0 0
  %1641 = vmatpush1.bf16.xpose.msra.mxu0 0
  %1642 = vmatprep.subr.bf16.mxu0 0
  %1643 = vmatpush1.bf16.xpose.msra.mxu0 %v1626
  %1644 = vmatprep.subr.bf16.mxu0 0
  %1645 = vmatpush2.bf16.xpose.msra.mxu0 0
  %1646 = vmatprep.subr.bf16.mxu0 0
  %1647 = vmatpush2.bf16.xpose.msra.mxu0 0
  %1648 = vmatprep.subr.bf16.mxu0 0
  %1649 = vmatpush2.bf16.xpose.msra.mxu0 0
  %1650 = vmatprep.subr.bf16.mxu0 0
  %1651 = vmatpush2.bf16.xpose.msra.mxu0 0
  %1652 = vmatprep.subr.bf16.mxu0 0
  %1653 = vmatpush2.bf16.xpose.msra.mxu0 0
  %1654 = vmatprep.subr.bf16.mxu0 0
  %1655 = vmatpush2.bf16.xpose.msra.mxu0 0
  %1656 = vmatprep.subr.bf16.mxu0 0
  %1657 = vmatpush2.bf16.xpose.msra.mxu0 0
  %1658 = vmatprep.subr.bf16.mxu0 0
  %1659 = vmatpush2.bf16.xpose.msra.mxu0 0
  %1660 = vmatprep.mubr.bf16.mxu0 0
  %1661 = vmatmul.mubr.bf16.gmra.mxu0 %v1623
  %v1662 = vpop.f32.mrf.mxu0
  %v1663 = vadd.f32 0.0, %v1662
  %v1664 = vpop.f32.mrf.mxu0
  %v1665 = vpop.f32.mrf.mxu0
  %v1666 = vpop.f32.mrf.mxu0
  %1667 = vdwg.mxu0
  %v1669 = vsel %vm86, %v1472, 0
  %v1672 = vsel %vm86, %v1480, 0
  %1674 = vmatprep.subr.bf16.mxu0 0
  %1675 = vmatpush1.bf16.xpose.msra.mxu0 0
  %1676 = vmatprep.subr.bf16.mxu0 0
  %1677 = vmatpush1.bf16.xpose.msra.mxu0 0
  %1678 = vmatprep.subr.bf16.mxu0 0
  %1679 = vmatpush1.bf16.xpose.msra.mxu0 0
  %1680 = vmatprep.subr.bf16.mxu0 0
  %1681 = vmatpush1.bf16.xpose.msra.mxu0 0
  %1682 = vmatprep.subr.bf16.mxu0 0
  %1683 = vmatpush1.bf16.xpose.msra.mxu0 0
  %1684 = vmatprep.subr.bf16.mxu0 0
  %1685 = vmatpush1.bf16.xpose.msra.mxu0 0
  %1686 = vmatprep.subr.bf16.mxu0 0
  %1687 = vmatpush1.bf16.xpose.msra.mxu0 0
  %1688 = vmatprep.subr.bf16.mxu0 0
  %1689 = vmatpush1.bf16.xpose.msra.mxu0 %v1672
  %1690 = vmatprep.subr.bf16.mxu0 0
  %1691 = vmatpush2.bf16.xpose.msra.mxu0 0
  %1692 = vmatprep.subr.bf16.mxu0 0
  %1693 = vmatpush2.bf16.xpose.msra.mxu0 0
  %1694 = vmatprep.subr.bf16.mxu0 0
  %1695 = vmatpush2.bf16.xpose.msra.mxu0 0
  %1696 = vmatprep.subr.bf16.mxu0 0
  %1697 = vmatpush2.bf16.xpose.msra.mxu0 0
  %1698 = vmatprep.subr.bf16.mxu0 0
  %1699 = vmatpush2.bf16.xpose.msra.mxu0 0
  %1700 = vmatprep.subr.bf16.mxu0 0
  %1701 = vmatpush2.bf16.xpose.msra.mxu0 0
  %1702 = vmatprep.subr.bf16.mxu0 0
  %1703 = vmatpush2.bf16.xpose.msra.mxu0 0
  %1704 = vmatprep.subr.bf16.mxu0 0
  %1705 = vmatpush2.bf16.xpose.msra.mxu0 0
  %1706 = vmatprep.mubr.bf16.mxu0 0
  %1707 = vmatmul.mubr.bf16.gmra.mxu0 %v1669
  %v1708 = vpop.f32.mrf.mxu0
  %v1709 = vadd.f32 0.0, %v1708
  %v1710 = vpop.f32.mrf.mxu0
  %v1711 = vpop.f32.mrf.mxu0
  %v1712 = vpop.f32.mrf.mxu0
  %1713 = vdwg.mxu0
  %v1715 = vsel %vm86, %v1473, 0
  %v1718 = vsel %vm86, %v1481, 0
  %1720 = vmatprep.subr.bf16.mxu0 0
  %1721 = vmatpush1.bf16.xpose.msra.mxu0 0
  %1722 = vmatprep.subr.bf16.mxu0 0
  %1723 = vmatpush1.bf16.xpose.msra.mxu0 0
  %1724 = vmatprep.subr.bf16.mxu0 0
  %1725 = vmatpush1.bf16.xpose.msra.mxu0 0
  %1726 = vmatprep.subr.bf16.mxu0 0
  %1727 = vmatpush1.bf16.xpose.msra.mxu0 0
  %1728 = vmatprep.subr.bf16.mxu0 0
  %1729 = vmatpush1.bf16.xpose.msra.mxu0 0
  %1730 = vmatprep.subr.bf16.mxu0 0
  %1731 = vmatpush1.bf16.xpose.msra.mxu0 0
  %1732 = vmatprep.subr.bf16.mxu0 0
  %1733 = vmatpush1.bf16.xpose.msra.mxu0 0
  %1734 = vmatprep.subr.bf16.mxu0 0
  %1735 = vmatpush1.bf16.xpose.msra.mxu0 %v1718
  %1736 = vmatprep.subr.bf16.mxu0 0
  %1737 = vmatpush2.bf16.xpose.msra.mxu0 0
  %1738 = vmatprep.subr.bf16.mxu0 0
  %1739 = vmatpush2.bf16.xpose.msra.mxu0 0
  %1740 = vmatprep.subr.bf16.mxu0 0
  %1741 = vmatpush2.bf16.xpose.msra.mxu0 0
  %1742 = vmatprep.subr.bf16.mxu0 0
  %1743 = vmatpush2.bf16.xpose.msra.mxu0 0
  %1744 = vmatprep.subr.bf16.mxu0 0
  %1745 = vmatpush2.bf16.xpose.msra.mxu0 0
  %1746 = vmatprep.subr.bf16.mxu0 0
  %1747 = vmatpush2.bf16.xpose.msra.mxu0 0
  %1748 = vmatprep.subr.bf16.mxu0 0
  %1749 = vmatpush2.bf16.xpose.msra.mxu0 0
  %1750 = vmatprep.subr.bf16.mxu0 0
  %1751 = vmatpush2.bf16.xpose.msra.mxu0 0
  %1752 = vmatprep.mubr.bf16.mxu0 0
  %1753 = vmatmul.mubr.bf16.gmra.mxu0 %v1715
  %v1754 = vpop.f32.mrf.mxu0
  %v1755 = vadd.f32 0.0, %v1754
  %v1756 = vpop.f32.mrf.mxu0
  %v1757 = vpop.f32.mrf.mxu0
  %v1758 = vpop.f32.mrf.mxu0
  %1759 = vdwg.mxu0
  %v1761 = vsel %vm86, %v1474, 0
  %v1764 = vsel %vm86, %v1482, 0
  %1766 = vmatprep.subr.bf16.mxu0 0
  %1767 = vmatpush1.bf16.xpose.msra.mxu0 0
  %1768 = vmatprep.subr.bf16.mxu0 0
  %1769 = vmatpush1.bf16.xpose.msra.mxu0 0
  %1770 = vmatprep.subr.bf16.mxu0 0
  %1771 = vmatpush1.bf16.xpose.msra.mxu0 0
  %1772 = vmatprep.subr.bf16.mxu0 0
  %1773 = vmatpush1.bf16.xpose.msra.mxu0 0
  %1774 = vmatprep.subr.bf16.mxu0 0
  %1775 = vmatpush1.bf16.xpose.msra.mxu0 0
  %1776 = vmatprep.subr.bf16.mxu0 0
  %1777 = vmatpush1.bf16.xpose.msra.mxu0 0
  %1778 = vmatprep.subr.bf16.mxu0 0
  %1779 = vmatpush1.bf16.xpose.msra.mxu0 0
  %1780 = vmatprep.subr.bf16.mxu0 0
  %1781 = vmatpush1.bf16.xpose.msra.mxu0 %v1764
  %1782 = vmatprep.subr.bf16.mxu0 0
  %1783 = vmatpush2.bf16.xpose.msra.mxu0 0
  %1784 = vmatprep.subr.bf16.mxu0 0
  %1785 = vmatpush2.bf16.xpose.msra.mxu0 0
  %1786 = vmatprep.subr.bf16.mxu0 0
  %1787 = vmatpush2.bf16.xpose.msra.mxu0 0
  %1788 = vmatprep.subr.bf16.mxu0 0
  %1789 = vmatpush2.bf16.xpose.msra.mxu0 0
  %1790 = vmatprep.subr.bf16.mxu0 0
  %1791 = vmatpush2.bf16.xpose.msra.mxu0 0
  %1792 = vmatprep.subr.bf16.mxu0 0
  %1793 = vmatpush2.bf16.xpose.msra.mxu0 0
  %1794 = vmatprep.subr.bf16.mxu0 0
  %1795 = vmatpush2.bf16.xpose.msra.mxu0 0
  %1796 = vmatprep.subr.bf16.mxu0 0
  %1797 = vmatpush2.bf16.xpose.msra.mxu0 0
  %1798 = vmatprep.mubr.bf16.mxu0 0
  %1799 = vmatmul.mubr.bf16.gmra.mxu0 %v1761
  %v1800 = vpop.f32.mrf.mxu0
  %v1801 = vadd.f32 0.0, %v1800
  %v1802 = vpop.f32.mrf.mxu0
  %v1803 = vpop.f32.mrf.mxu0
  %v1804 = vpop.f32.mrf.mxu0
  %1805 = vdwg.mxu0
  %v1807 = vsel %vm86, %v1475, 0
  %v1810 = vsel %vm86, %v1483, 0
  %1812 = vmatprep.subr.bf16.mxu0 0
  %1813 = vmatpush1.bf16.xpose.msra.mxu0 0
  %1814 = vmatprep.subr.bf16.mxu0 0
  %1815 = vmatpush1.bf16.xpose.msra.mxu0 0
  %1816 = vmatprep.subr.bf16.mxu0 0
  %1817 = vmatpush1.bf16.xpose.msra.mxu0 0
  %1818 = vmatprep.subr.bf16.mxu0 0
  %1819 = vmatpush1.bf16.xpose.msra.mxu0 0
  %1820 = vmatprep.subr.bf16.mxu0 0
  %1821 = vmatpush1.bf16.xpose.msra.mxu0 0
  %1822 = vmatprep.subr.bf16.mxu0 0
  %1823 = vmatpush1.bf16.xpose.msra.mxu0 0
  %1824 = vmatprep.subr.bf16.mxu0 0
  %1825 = vmatpush1.bf16.xpose.msra.mxu0 0
  %1826 = vmatprep.subr.bf16.mxu0 0
  %1827 = vmatpush1.bf16.xpose.msra.mxu0 %v1810
  %1828 = vmatprep.subr.bf16.mxu0 0
  %1829 = vmatpush2.bf16.xpose.msra.mxu0 0
  %1830 = vmatprep.subr.bf16.mxu0 0
  %1831 = vmatpush2.bf16.xpose.msra.mxu0 0
  %1832 = vmatprep.subr.bf16.mxu0 0
  %1833 = vmatpush2.bf16.xpose.msra.mxu0 0
  %1834 = vmatprep.subr.bf16.mxu0 0
  %1835 = vmatpush2.bf16.xpose.msra.mxu0 0
  %1836 = vmatprep.subr.bf16.mxu0 0
  %1837 = vmatpush2.bf16.xpose.msra.mxu0 0
  %1838 = vmatprep.subr.bf16.mxu0 0
  %1839 = vmatpush2.bf16.xpose.msra.mxu0 0
  %1840 = vmatprep.subr.bf16.mxu0 0
  %1841 = vmatpush2.bf16.xpose.msra.mxu0 0
  %1842 = vmatprep.subr.bf16.mxu0 0
  %1843 = vmatpush2.bf16.xpose.msra.mxu0 0
  %1844 = vmatprep.mubr.bf16.mxu0 0
  %1845 = vmatmul.mubr.bf16.gmra.mxu0 %v1807
  %v1846 = vpop.f32.mrf.mxu0
  %v1847 = vadd.f32 0.0, %v1846
  %v1848 = vpop.f32.mrf.mxu0
  %v1849 = vpop.f32.mrf.mxu0
  %v1850 = vpop.f32.mrf.mxu0
  %1851 = vdwg.mxu0
  %v1852 = vmul.f32 %v1525, 0.35355338
  %v1853 = vmul.f32 %v1571, 0.35355338
  %v1854 = vmul.f32 %v1617, 0.35355338
  %v1855 = vmul.f32 %v1663, 0.35355338
  %v1856 = vmul.f32 %v1709, 0.35355338
  %v1857 = vmul.f32 %v1755, 0.35355338
  %v1858 = vmul.f32 %v1801, 0.35355338
  %v1859 = vmul.f32 %v1847, 0.35355338
  %v1860 = vlaneseq
  %v1861 = vshrl.u32 %v1860, 7
  %v1862 = vsub.s32 0, %v1861
  %v1863 = vrot.slane %v460, %v1862
  %v1864 = vlaneseq
  %v1865 = vshrl.u32 %v1864, 7
  %v1866 = vsub.s32 0, %v1865
  %v1867 = vrot.slane %v467, %v1866
  %v1870 = vadd.f32 %v1852, %v1863
  %v1871 = vadd.f32 %v1853, %v1863
  %v1872 = vadd.f32 %v1854, %v1863
  %v1873 = vadd.f32 %v1855, %v1863
  %v1874 = vadd.f32 %v1856, %v1867
  %v1875 = vadd.f32 %v1857, %v1867
  %v1876 = vadd.f32 %v1858, %v1867
  %v1877 = vadd.f32 %v1859, %v1867
  %v1878 = vsel %vm86, %v1870, -inf
  %1879 = vmax.xlane.f32.xlu0 %v1878
  %v1880 = vpop.xlane.xlu0 %1879
  %v1881 = vsel %vm86, %v1871, -inf
  %1882 = vmax.xlane.f32.xlu0 %v1881
  %v1883 = vpop.xlane.xlu0 %1882
  %v1884 = vsel %vm86, %v1872, -inf
  %1885 = vmax.xlane.f32.xlu0 %v1884
  %v1886 = vpop.xlane.xlu0 %1885
  %v1887 = vsel %vm86, %v1873, -inf
  %1888 = vmax.xlane.f32.xlu0 %v1887
  %v1889 = vpop.xlane.xlu0 %1888
  %v1890 = vsel %vm86, %v1874, -inf
  %1891 = vmax.xlane.f32.xlu0 %v1890
  %v1892 = vpop.xlane.xlu0 %1891
  %v1893 = vsel %vm86, %v1875, -inf
  %1894 = vmax.xlane.f32.xlu0 %v1893
  %v1895 = vpop.xlane.xlu0 %1894
  %v1896 = vsel %vm86, %v1876, -inf
  %1897 = vmax.xlane.f32.xlu0 %v1896
  %v1898 = vpop.xlane.xlu0 %1897
  %v1899 = vsel %vm86, %v1877, -inf
  %1900 = vmax.xlane.f32.xlu0 %v1899
  %v1901 = vpop.xlane.xlu0 %1900
  %v1902 = vsub.f32 %v1870, %v1880
  %v1903 = vsub.f32 %v1871, %v1883
  %v1904 = vsub.f32 %v1872, %v1886
  %v1905 = vsub.f32 %v1873, %v1889
  %v1906 = vsub.f32 %v1874, %v1892
  %v1907 = vsub.f32 %v1875, %v1895
  %v1908 = vsub.f32 %v1876, %v1898
  %v1909 = vsub.f32 %v1877, %v1901
  %v1910 = vmul.f32 %v1902, 1.442695
  %v1911 = vpow.pop %v1910
  %v1912 = vmul.f32 %v1903, 1.442695
  %v1913 = vpow.pop %v1912
  %v1914 = vmul.f32 %v1904, 1.442695
  %v1915 = vpow.pop %v1914
  %v1916 = vmul.f32 %v1905, 1.442695
  %v1917 = vpow.pop %v1916
  %v1918 = vmul.f32 %v1906, 1.442695
  %v1919 = vpow.pop %v1918
  %v1920 = vmul.f32 %v1907, 1.442695
  %v1921 = vpow.pop %v1920
  %v1922 = vmul.f32 %v1908, 1.442695
  %v1923 = vpow.pop %v1922
  %v1924 = vmul.f32 %v1909, 1.442695
  %v1925 = vpow.pop %v1924
  %v1926 = vsel %vm86, %v1911, 0.0
  %1927 = vadd.xlane.f32.xlu0 %v1926
  %v1928 = vpop.xlane.xlu0 %1927
  %v1929 = vsel %vm86, %v1913, 0.0
  %1930 = vadd.xlane.f32.xlu0 %v1929
  %v1931 = vpop.xlane.xlu0 %1930
  %v1932 = vsel %vm86, %v1915, 0.0
  %1933 = vadd.xlane.f32.xlu0 %v1932
  %v1934 = vpop.xlane.xlu0 %1933
  %v1935 = vsel %vm86, %v1917, 0.0
  %1936 = vadd.xlane.f32.xlu0 %v1935
  %v1937 = vpop.xlane.xlu0 %1936
  %v1938 = vsel %vm86, %v1919, 0.0
  %1939 = vadd.xlane.f32.xlu0 %v1938
  %v1940 = vpop.xlane.xlu0 %1939
  %v1941 = vsel %vm86, %v1921, 0.0
  %1942 = vadd.xlane.f32.xlu0 %v1941
  %v1943 = vpop.xlane.xlu0 %1942
  %v1944 = vsel %vm86, %v1923, 0.0
  %1945 = vadd.xlane.f32.xlu0 %v1944
  %v1946 = vpop.xlane.xlu0 %1945
  %v1947 = vsel %vm86, %v1925, 0.0
  %1948 = vadd.xlane.f32.xlu0 %v1947
  %v1949 = vpop.xlane.xlu0 %1948
  %v1950 = vrcp.pop %v1928
  %v1951 = vrcp.pop %v1931
  %v1952 = vrcp.pop %v1934
  %v1953 = vrcp.pop %v1937
  %v1954 = vrcp.pop %v1940
  %v1955 = vrcp.pop %v1943
  %v1956 = vrcp.pop %v1946
  %v1957 = vrcp.pop %v1949
  %v1958 = vmul.f32 %v1911, %v1950
  %v1959 = vmul.f32 %v1913, %v1951
  %v1960 = vmul.f32 %v1915, %v1952
  %v1961 = vmul.f32 %v1917, %v1953
  %v1962 = vmul.f32 %v1919, %v1954
  %v1963 = vmul.f32 %v1921, %v1955
  %v1964 = vmul.f32 %v1923, %v1956
  %v1965 = vmul.f32 %v1925, %v1957
  %v1966 = vpack.c.bf16 %v1958, %v1958
  %v1967 = vpack.c.bf16 %v1959, %v1959
  %v1968 = vpack.c.bf16 %v1960, %v1960
  %v1969 = vpack.c.bf16 %v1961, %v1961
  %v1970 = vpack.c.bf16 %v1962, %v1962
  %v1971 = vpack.c.bf16 %v1963, %v1963
  %v1972 = vpack.c.bf16 %v1964, %v1964
  %v1973 = vpack.c.bf16 %v1965, %v1965
  %v1974 = vpack.c.bf16 %v1396, %v1396
  %v1975 = vpack.c.bf16 %v1397, %v1397
  %v1976 = vpack.c.bf16 %v1398, %v1398
  %v1977 = vpack.c.bf16 %v1399, %v1399
  %v1978 = vpack.c.bf16 %v1464, %v1464
  %v1979 = vpack.c.bf16 %v1465, %v1465
  %v1980 = vpack.c.bf16 %v1466, %v1466
  %v1981 = vpack.c.bf16 %v1467, %v1467
  %v1983 = vsel %vm86, %v1966, 0
  %v1986 = vsel %vm307, %v1974, 0
  %1988 = vmatprep.subr.bf16.mxu0 0
  %1989 = vmatpush1.bf16.msra.mxu0 0
  %1990 = vmatprep.subr.bf16.mxu0 0
  %1991 = vmatpush1.bf16.msra.mxu0 0
  %1992 = vmatprep.subr.bf16.mxu0 0
  %1993 = vmatpush1.bf16.msra.mxu0 0
  %1994 = vmatprep.subr.bf16.mxu0 0
  %1995 = vmatpush1.bf16.msra.mxu0 0
  %1996 = vmatprep.subr.bf16.mxu0 0
  %1997 = vmatpush1.bf16.msra.mxu0 0
  %1998 = vmatprep.subr.bf16.mxu0 0
  %1999 = vmatpush1.bf16.msra.mxu0 0
  %2000 = vmatprep.subr.bf16.mxu0 0
  %2001 = vmatpush1.bf16.msra.mxu0 0
  %2002 = vmatprep.subr.bf16.mxu0 0
  %2003 = vmatpush1.bf16.msra.mxu0 %v1986
  %2004 = vmatprep.subr.bf16.mxu0 0
  %2005 = vmatpush2.bf16.msra.mxu0 0
  %2006 = vmatprep.subr.bf16.mxu0 0
  %2007 = vmatpush2.bf16.msra.mxu0 0
  %2008 = vmatprep.subr.bf16.mxu0 0
  %2009 = vmatpush2.bf16.msra.mxu0 0
  %2010 = vmatprep.subr.bf16.mxu0 0
  %2011 = vmatpush2.bf16.msra.mxu0 0
  %2012 = vmatprep.subr.bf16.mxu0 0
  %2013 = vmatpush2.bf16.msra.mxu0 0
  %2014 = vmatprep.subr.bf16.mxu0 0
  %2015 = vmatpush2.bf16.msra.mxu0 0
  %2016 = vmatprep.subr.bf16.mxu0 0
  %2017 = vmatpush2.bf16.msra.mxu0 0
  %2018 = vmatprep.subr.bf16.mxu0 0
  %2019 = vmatpush2.bf16.msra.mxu0 0
  %2020 = vmatprep.mubr.bf16.mxu0 0
  %2021 = vmatmul.mubr.bf16.gmra.mxu0 %v1983
  %v2022 = vpop.f32.mrf.mxu0
  %v2023 = vadd.f32 0.0, %v2022
  %v2024 = vpop.f32.mrf.mxu0
  %v2025 = vpop.f32.mrf.mxu0
  %v2026 = vpop.f32.mrf.mxu0
  %2027 = vdwg.mxu0
  %v2029 = vsel %vm86, %v1967, 0
  %v2032 = vsel %vm307, %v1975, 0
  %2034 = vmatprep.subr.bf16.mxu0 0
  %2035 = vmatpush1.bf16.msra.mxu0 0
  %2036 = vmatprep.subr.bf16.mxu0 0
  %2037 = vmatpush1.bf16.msra.mxu0 0
  %2038 = vmatprep.subr.bf16.mxu0 0
  %2039 = vmatpush1.bf16.msra.mxu0 0
  %2040 = vmatprep.subr.bf16.mxu0 0
  %2041 = vmatpush1.bf16.msra.mxu0 0
  %2042 = vmatprep.subr.bf16.mxu0 0
  %2043 = vmatpush1.bf16.msra.mxu0 0
  %2044 = vmatprep.subr.bf16.mxu0 0
  %2045 = vmatpush1.bf16.msra.mxu0 0
  %2046 = vmatprep.subr.bf16.mxu0 0
  %2047 = vmatpush1.bf16.msra.mxu0 0
  %2048 = vmatprep.subr.bf16.mxu0 0
  %2049 = vmatpush1.bf16.msra.mxu0 %v2032
  %2050 = vmatprep.subr.bf16.mxu0 0
  %2051 = vmatpush2.bf16.msra.mxu0 0
  %2052 = vmatprep.subr.bf16.mxu0 0
  %2053 = vmatpush2.bf16.msra.mxu0 0
  %2054 = vmatprep.subr.bf16.mxu0 0
  %2055 = vmatpush2.bf16.msra.mxu0 0
  %2056 = vmatprep.subr.bf16.mxu0 0
  %2057 = vmatpush2.bf16.msra.mxu0 0
  %2058 = vmatprep.subr.bf16.mxu0 0
  %2059 = vmatpush2.bf16.msra.mxu0 0
  %2060 = vmatprep.subr.bf16.mxu0 0
  %2061 = vmatpush2.bf16.msra.mxu0 0
  %2062 = vmatprep.subr.bf16.mxu0 0
  %2063 = vmatpush2.bf16.msra.mxu0 0
  %2064 = vmatprep.subr.bf16.mxu0 0
  %2065 = vmatpush2.bf16.msra.mxu0 0
  %2066 = vmatprep.mubr.bf16.mxu0 0
  %2067 = vmatmul.mubr.bf16.gmra.mxu0 %v2029
  %v2068 = vpop.f32.mrf.mxu0
  %v2069 = vadd.f32 0.0, %v2068
  %v2070 = vpop.f32.mrf.mxu0
  %v2071 = vpop.f32.mrf.mxu0
  %v2072 = vpop.f32.mrf.mxu0
  %2073 = vdwg.mxu0
  %v2075 = vsel %vm86, %v1968, 0
  %v2078 = vsel %vm307, %v1976, 0
  %2080 = vmatprep.subr.bf16.mxu0 0
  %2081 = vmatpush1.bf16.msra.mxu0 0
  %2082 = vmatprep.subr.bf16.mxu0 0
  %2083 = vmatpush1.bf16.msra.mxu0 0
  %2084 = vmatprep.subr.bf16.mxu0 0
  %2085 = vmatpush1.bf16.msra.mxu0 0
  %2086 = vmatprep.subr.bf16.mxu0 0
  %2087 = vmatpush1.bf16.msra.mxu0 0
  %2088 = vmatprep.subr.bf16.mxu0 0
  %2089 = vmatpush1.bf16.msra.mxu0 0
  %2090 = vmatprep.subr.bf16.mxu0 0
  %2091 = vmatpush1.bf16.msra.mxu0 0
  %2092 = vmatprep.subr.bf16.mxu0 0
  %2093 = vmatpush1.bf16.msra.mxu0 0
  %2094 = vmatprep.subr.bf16.mxu0 0
  %2095 = vmatpush1.bf16.msra.mxu0 %v2078
  %2096 = vmatprep.subr.bf16.mxu0 0
  %2097 = vmatpush2.bf16.msra.mxu0 0
  %2098 = vmatprep.subr.bf16.mxu0 0
  %2099 = vmatpush2.bf16.msra.mxu0 0
  %2100 = vmatprep.subr.bf16.mxu0 0
  %2101 = vmatpush2.bf16.msra.mxu0 0
  %2102 = vmatprep.subr.bf16.mxu0 0
  %2103 = vmatpush2.bf16.msra.mxu0 0
  %2104 = vmatprep.subr.bf16.mxu0 0
  %2105 = vmatpush2.bf16.msra.mxu0 0
  %2106 = vmatprep.subr.bf16.mxu0 0
  %2107 = vmatpush2.bf16.msra.mxu0 0
  %2108 = vmatprep.subr.bf16.mxu0 0
  %2109 = vmatpush2.bf16.msra.mxu0 0
  %2110 = vmatprep.subr.bf16.mxu0 0
  %2111 = vmatpush2.bf16.msra.mxu0 0
  %2112 = vmatprep.mubr.bf16.mxu0 0
  %2113 = vmatmul.mubr.bf16.gmra.mxu0 %v2075
  %v2114 = vpop.f32.mrf.mxu0
  %v2115 = vadd.f32 0.0, %v2114
  %v2116 = vpop.f32.mrf.mxu0
  %v2117 = vpop.f32.mrf.mxu0
  %v2118 = vpop.f32.mrf.mxu0
  %2119 = vdwg.mxu0
  %v2121 = vsel %vm86, %v1969, 0
  %v2124 = vsel %vm307, %v1977, 0
  %2126 = vmatprep.subr.bf16.mxu0 0
  %2127 = vmatpush1.bf16.msra.mxu0 0
  %2128 = vmatprep.subr.bf16.mxu0 0
  %2129 = vmatpush1.bf16.msra.mxu0 0
  %2130 = vmatprep.subr.bf16.mxu0 0
  %2131 = vmatpush1.bf16.msra.mxu0 0
  %2132 = vmatprep.subr.bf16.mxu0 0
  %2133 = vmatpush1.bf16.msra.mxu0 0
  %2134 = vmatprep.subr.bf16.mxu0 0
  %2135 = vmatpush1.bf16.msra.mxu0 0
  %2136 = vmatprep.subr.bf16.mxu0 0
  %2137 = vmatpush1.bf16.msra.mxu0 0
  %2138 = vmatprep.subr.bf16.mxu0 0
  %2139 = vmatpush1.bf16.msra.mxu0 0
  %2140 = vmatprep.subr.bf16.mxu0 0
  %2141 = vmatpush1.bf16.msra.mxu0 %v2124
  %2142 = vmatprep.subr.bf16.mxu0 0
  %2143 = vmatpush2.bf16.msra.mxu0 0
  %2144 = vmatprep.subr.bf16.mxu0 0
  %2145 = vmatpush2.bf16.msra.mxu0 0
  %2146 = vmatprep.subr.bf16.mxu0 0
  %2147 = vmatpush2.bf16.msra.mxu0 0
  %2148 = vmatprep.subr.bf16.mxu0 0
  %2149 = vmatpush2.bf16.msra.mxu0 0
  %2150 = vmatprep.subr.bf16.mxu0 0
  %2151 = vmatpush2.bf16.msra.mxu0 0
  %2152 = vmatprep.subr.bf16.mxu0 0
  %2153 = vmatpush2.bf16.msra.mxu0 0
  %2154 = vmatprep.subr.bf16.mxu0 0
  %2155 = vmatpush2.bf16.msra.mxu0 0
  %2156 = vmatprep.subr.bf16.mxu0 0
  %2157 = vmatpush2.bf16.msra.mxu0 0
  %2158 = vmatprep.mubr.bf16.mxu0 0
  %2159 = vmatmul.mubr.bf16.gmra.mxu0 %v2121
  %v2160 = vpop.f32.mrf.mxu0
  %v2161 = vadd.f32 0.0, %v2160
  %v2162 = vpop.f32.mrf.mxu0
  %v2163 = vpop.f32.mrf.mxu0
  %v2164 = vpop.f32.mrf.mxu0
  %2165 = vdwg.mxu0
  %v2167 = vsel %vm86, %v1970, 0
  %v2170 = vsel %vm307, %v1978, 0
  %2172 = vmatprep.subr.bf16.mxu0 0
  %2173 = vmatpush1.bf16.msra.mxu0 0
  %2174 = vmatprep.subr.bf16.mxu0 0
  %2175 = vmatpush1.bf16.msra.mxu0 0
  %2176 = vmatprep.subr.bf16.mxu0 0
  %2177 = vmatpush1.bf16.msra.mxu0 0
  %2178 = vmatprep.subr.bf16.mxu0 0
  %2179 = vmatpush1.bf16.msra.mxu0 0
  %2180 = vmatprep.subr.bf16.mxu0 0
  %2181 = vmatpush1.bf16.msra.mxu0 0
  %2182 = vmatprep.subr.bf16.mxu0 0
  %2183 = vmatpush1.bf16.msra.mxu0 0
  %2184 = vmatprep.subr.bf16.mxu0 0
  %2185 = vmatpush1.bf16.msra.mxu0 0
  %2186 = vmatprep.subr.bf16.mxu0 0
  %2187 = vmatpush1.bf16.msra.mxu0 %v2170
  %2188 = vmatprep.subr.bf16.mxu0 0
  %2189 = vmatpush2.bf16.msra.mxu0 0
  %2190 = vmatprep.subr.bf16.mxu0 0
  %2191 = vmatpush2.bf16.msra.mxu0 0
  %2192 = vmatprep.subr.bf16.mxu0 0
  %2193 = vmatpush2.bf16.msra.mxu0 0
  %2194 = vmatprep.subr.bf16.mxu0 0
  %2195 = vmatpush2.bf16.msra.mxu0 0
  %2196 = vmatprep.subr.bf16.mxu0 0
  %2197 = vmatpush2.bf16.msra.mxu0 0
  %2198 = vmatprep.subr.bf16.mxu0 0
  %2199 = vmatpush2.bf16.msra.mxu0 0
  %2200 = vmatprep.subr.bf16.mxu0 0
  %2201 = vmatpush2.bf16.msra.mxu0 0
  %2202 = vmatprep.subr.bf16.mxu0 0
  %2203 = vmatpush2.bf16.msra.mxu0 0
  %2204 = vmatprep.mubr.bf16.mxu0 0
  %2205 = vmatmul.mubr.bf16.gmra.mxu0 %v2167
  %v2206 = vpop.f32.mrf.mxu0
  %v2207 = vadd.f32 0.0, %v2206
  %v2208 = vpop.f32.mrf.mxu0
  %v2209 = vpop.f32.mrf.mxu0
  %v2210 = vpop.f32.mrf.mxu0
  %2211 = vdwg.mxu0
  %v2213 = vsel %vm86, %v1971, 0
  %v2216 = vsel %vm307, %v1979, 0
  %2218 = vmatprep.subr.bf16.mxu0 0
  %2219 = vmatpush1.bf16.msra.mxu0 0
  %2220 = vmatprep.subr.bf16.mxu0 0
  %2221 = vmatpush1.bf16.msra.mxu0 0
  %2222 = vmatprep.subr.bf16.mxu0 0
  %2223 = vmatpush1.bf16.msra.mxu0 0
  %2224 = vmatprep.subr.bf16.mxu0 0
  %2225 = vmatpush1.bf16.msra.mxu0 0
  %2226 = vmatprep.subr.bf16.mxu0 0
  %2227 = vmatpush1.bf16.msra.mxu0 0
  %2228 = vmatprep.subr.bf16.mxu0 0
  %2229 = vmatpush1.bf16.msra.mxu0 0
  %2230 = vmatprep.subr.bf16.mxu0 0
  %2231 = vmatpush1.bf16.msra.mxu0 0
  %2232 = vmatprep.subr.bf16.mxu0 0
  %2233 = vmatpush1.bf16.msra.mxu0 %v2216
  %2234 = vmatprep.subr.bf16.mxu0 0
  %2235 = vmatpush2.bf16.msra.mxu0 0
  %2236 = vmatprep.subr.bf16.mxu0 0
  %2237 = vmatpush2.bf16.msra.mxu0 0
  %2238 = vmatprep.subr.bf16.mxu0 0
  %2239 = vmatpush2.bf16.msra.mxu0 0
  %2240 = vmatprep.subr.bf16.mxu0 0
  %2241 = vmatpush2.bf16.msra.mxu0 0
  %2242 = vmatprep.subr.bf16.mxu0 0
  %2243 = vmatpush2.bf16.msra.mxu0 0
  %2244 = vmatprep.subr.bf16.mxu0 0
  %2245 = vmatpush2.bf16.msra.mxu0 0
  %2246 = vmatprep.subr.bf16.mxu0 0
  %2247 = vmatpush2.bf16.msra.mxu0 0
  %2248 = vmatprep.subr.bf16.mxu0 0
  %2249 = vmatpush2.bf16.msra.mxu0 0
  %2250 = vmatprep.mubr.bf16.mxu0 0
  %2251 = vmatmul.mubr.bf16.gmra.mxu0 %v2213
  %v2252 = vpop.f32.mrf.mxu0
  %v2253 = vadd.f32 0.0, %v2252
  %v2254 = vpop.f32.mrf.mxu0
  %v2255 = vpop.f32.mrf.mxu0
  %v2256 = vpop.f32.mrf.mxu0
  %2257 = vdwg.mxu0
  %v2259 = vsel %vm86, %v1972, 0
  %v2262 = vsel %vm307, %v1980, 0
  %2264 = vmatprep.subr.bf16.mxu0 0
  %2265 = vmatpush1.bf16.msra.mxu0 0
  %2266 = vmatprep.subr.bf16.mxu0 0
  %2267 = vmatpush1.bf16.msra.mxu0 0
  %2268 = vmatprep.subr.bf16.mxu0 0
  %2269 = vmatpush1.bf16.msra.mxu0 0
  %2270 = vmatprep.subr.bf16.mxu0 0
  %2271 = vmatpush1.bf16.msra.mxu0 0
  %2272 = vmatprep.subr.bf16.mxu0 0
  %2273 = vmatpush1.bf16.msra.mxu0 0
  %2274 = vmatprep.subr.bf16.mxu0 0
  %2275 = vmatpush1.bf16.msra.mxu0 0
  %2276 = vmatprep.subr.bf16.mxu0 0
  %2277 = vmatpush1.bf16.msra.mxu0 0
  %2278 = vmatprep.subr.bf16.mxu0 0
  %2279 = vmatpush1.bf16.msra.mxu0 %v2262
  %2280 = vmatprep.subr.bf16.mxu0 0
  %2281 = vmatpush2.bf16.msra.mxu0 0
  %2282 = vmatprep.subr.bf16.mxu0 0
  %2283 = vmatpush2.bf16.msra.mxu0 0
  %2284 = vmatprep.subr.bf16.mxu0 0
  %2285 = vmatpush2.bf16.msra.mxu0 0
  %2286 = vmatprep.subr.bf16.mxu0 0
  %2287 = vmatpush2.bf16.msra.mxu0 0
  %2288 = vmatprep.subr.bf16.mxu0 0
  %2289 = vmatpush2.bf16.msra.mxu0 0
  %2290 = vmatprep.subr.bf16.mxu0 0
  %2291 = vmatpush2.bf16.msra.mxu0 0
  %2292 = vmatprep.subr.bf16.mxu0 0
  %2293 = vmatpush2.bf16.msra.mxu0 0
  %2294 = vmatprep.subr.bf16.mxu0 0
  %2295 = vmatpush2.bf16.msra.mxu0 0
  %2296 = vmatprep.mubr.bf16.mxu0 0
  %2297 = vmatmul.mubr.bf16.gmra.mxu0 %v2259
  %v2298 = vpop.f32.mrf.mxu0
  %v2299 = vadd.f32 0.0, %v2298
  %v2300 = vpop.f32.mrf.mxu0
  %v2301 = vpop.f32.mrf.mxu0
  %v2302 = vpop.f32.mrf.mxu0
  %2303 = vdwg.mxu0
  %v2305 = vsel %vm86, %v1973, 0
  %v2308 = vsel %vm307, %v1981, 0
  %2310 = vmatprep.subr.bf16.mxu0 0
  %2311 = vmatpush1.bf16.msra.mxu0 0
  %2312 = vmatprep.subr.bf16.mxu0 0
  %2313 = vmatpush1.bf16.msra.mxu0 0
  %2314 = vmatprep.subr.bf16.mxu0 0
  %2315 = vmatpush1.bf16.msra.mxu0 0
  %2316 = vmatprep.subr.bf16.mxu0 0
  %2317 = vmatpush1.bf16.msra.mxu0 0
  %2318 = vmatprep.subr.bf16.mxu0 0
  %2319 = vmatpush1.bf16.msra.mxu0 0
  %2320 = vmatprep.subr.bf16.mxu0 0
  %2321 = vmatpush1.bf16.msra.mxu0 0
  %2322 = vmatprep.subr.bf16.mxu0 0
  %2323 = vmatpush1.bf16.msra.mxu0 0
  %2324 = vmatprep.subr.bf16.mxu0 0
  %2325 = vmatpush1.bf16.msra.mxu0 %v2308
  %2326 = vmatprep.subr.bf16.mxu0 0
  %2327 = vmatpush2.bf16.msra.mxu0 0
  %2328 = vmatprep.subr.bf16.mxu0 0
  %2329 = vmatpush2.bf16.msra.mxu0 0
  %2330 = vmatprep.subr.bf16.mxu0 0
  %2331 = vmatpush2.bf16.msra.mxu0 0
  %2332 = vmatprep.subr.bf16.mxu0 0
  %2333 = vmatpush2.bf16.msra.mxu0 0
  %2334 = vmatprep.subr.bf16.mxu0 0
  %2335 = vmatpush2.bf16.msra.mxu0 0
  %2336 = vmatprep.subr.bf16.mxu0 0
  %2337 = vmatpush2.bf16.msra.mxu0 0
  %2338 = vmatprep.subr.bf16.mxu0 0
  %2339 = vmatpush2.bf16.msra.mxu0 0
  %2340 = vmatprep.subr.bf16.mxu0 0
  %2341 = vmatpush2.bf16.msra.mxu0 0
  %2342 = vmatprep.mubr.bf16.mxu0 0
  %2343 = vmatmul.mubr.bf16.gmra.mxu0 %v2305
  %v2344 = vpop.f32.mrf.mxu0
  %v2345 = vadd.f32 0.0, %v2344
  %v2346 = vpop.f32.mrf.mxu0
  %v2347 = vpop.f32.mrf.mxu0
  %v2348 = vpop.f32.mrf.mxu0
  %2349 = vdwg.mxu0
  %v2350 = vcombine.low %v2023, %v2115
  %v2351 = vcombine.high %v2023, %v2115
  %v2353 = vunpack.c.l.s4 1983009808
  %v2354 = vunpack.c.0.s8 %v2353
  %v2355 = vlaneseq
  %v2356 = vshrl.u32 %v2355, 7
  %v2357 = vsub.s32 %v2354, %v2356
  %v2358 = vrot.slane %v2350, %v2357
  %v2360 = vunpack.c.l.s4 1983009808
  %v2361 = vunpack.c.0.s8 %v2360
  %v2362 = vlaneseq
  %v2363 = vshrl.u32 %v2362, 7
  %v2364 = vsub.s32 %v2361, %v2363
  %v2365 = vrot.slane %v2351, %v2364
  %v2366 = vcombine.low %v2069, %v2161
  %v2367 = vcombine.high %v2069, %v2161
  %v2369 = vunpack.c.l.s4 1983009808
  %v2370 = vunpack.c.0.s8 %v2369
  %v2371 = vlaneseq
  %v2372 = vshrl.u32 %v2371, 7
  %v2373 = vsub.s32 %v2370, %v2372
  %v2374 = vrot.slane %v2366, %v2373
  %v2376 = vunpack.c.l.s4 1983009808
  %v2377 = vunpack.c.0.s8 %v2376
  %v2378 = vlaneseq
  %v2379 = vshrl.u32 %v2378, 7
  %v2380 = vsub.s32 %v2377, %v2379
  %v2381 = vrot.slane %v2367, %v2380
  %v2382 = vcombine.low %v2358, %v2374
  %v2383 = vcombine.high %v2358, %v2374
  %v2385 = vunpack.c.l.s4 1934713408
  %v2386 = vunpack.c.0.s8 %v2385
  %v2387 = vlaneseq
  %v2388 = vshrl.u32 %v2387, 7
  %v2389 = vsub.s32 %v2386, %v2388
  %v2390 = vrot.slane %v2382, %v2389
  %v2392 = vunpack.c.l.s4 1934713408
  %v2393 = vunpack.c.0.s8 %v2392
  %v2394 = vlaneseq
  %v2395 = vshrl.u32 %v2394, 7
  %v2396 = vsub.s32 %v2393, %v2395
  %v2397 = vrot.slane %v2383, %v2396
  %v2398 = vcombine.low %v2365, %v2381
  %v2399 = vcombine.high %v2365, %v2381
  %v2401 = vunpack.c.l.s4 1934713408
  %v2402 = vunpack.c.0.s8 %v2401
  %v2403 = vlaneseq
  %v2404 = vshrl.u32 %v2403, 7
  %v2405 = vsub.s32 %v2402, %v2404
  %v2406 = vrot.slane %v2398, %v2405
  %v2408 = vunpack.c.l.s4 1934713408
  %v2409 = vunpack.c.0.s8 %v2408
  %v2410 = vlaneseq
  %v2411 = vshrl.u32 %v2410, 7
  %v2412 = vsub.s32 %v2409, %v2411
  %v2413 = vrot.slane %v2399, %v2412
  %v2414 = vcombine.high %v2390, 0.0
  %v2415 = vcombine.high %v2397, 0.0
  %v2416 = vcombine.high %v2406, 0.0
  %v2417 = vcombine.high %v2413, 0.0
  %v2418 = vcombine.low %v2207, %v2299
  %v2419 = vcombine.high %v2207, %v2299
  %v2421 = vunpack.c.l.s4 1983009808
  %v2422 = vunpack.c.0.s8 %v2421
  %v2423 = vlaneseq
  %v2424 = vshrl.u32 %v2423, 7
  %v2425 = vsub.s32 %v2422, %v2424
  %v2426 = vrot.slane %v2418, %v2425
  %v2428 = vunpack.c.l.s4 1983009808
  %v2429 = vunpack.c.0.s8 %v2428
  %v2430 = vlaneseq
  %v2431 = vshrl.u32 %v2430, 7
  %v2432 = vsub.s32 %v2429, %v2431
  %v2433 = vrot.slane %v2419, %v2432
  %v2434 = vcombine.low %v2253, %v2345
  %v2435 = vcombine.high %v2253, %v2345
  %v2437 = vunpack.c.l.s4 1983009808
  %v2438 = vunpack.c.0.s8 %v2437
  %v2439 = vlaneseq
  %v2440 = vshrl.u32 %v2439, 7
  %v2441 = vsub.s32 %v2438, %v2440
  %v2442 = vrot.slane %v2434, %v2441
  %v2444 = vunpack.c.l.s4 1983009808
  %v2445 = vunpack.c.0.s8 %v2444
  %v2446 = vlaneseq
  %v2447 = vshrl.u32 %v2446, 7
  %v2448 = vsub.s32 %v2445, %v2447
  %v2449 = vrot.slane %v2435, %v2448
  %v2450 = vcombine.low %v2426, %v2442
  %v2451 = vcombine.high %v2426, %v2442
  %v2453 = vunpack.c.l.s4 1934713408
  %v2454 = vunpack.c.0.s8 %v2453
  %v2455 = vlaneseq
  %v2456 = vshrl.u32 %v2455, 7
  %v2457 = vsub.s32 %v2454, %v2456
  %v2458 = vrot.slane %v2450, %v2457
  %v2460 = vunpack.c.l.s4 1934713408
  %v2461 = vunpack.c.0.s8 %v2460
  %v2462 = vlaneseq
  %v2463 = vshrl.u32 %v2462, 7
  %v2464 = vsub.s32 %v2461, %v2463
  %v2465 = vrot.slane %v2451, %v2464
  %v2466 = vcombine.low %v2433, %v2449
  %v2467 = vcombine.high %v2433, %v2449
  %v2469 = vunpack.c.l.s4 1934713408
  %v2470 = vunpack.c.0.s8 %v2469
  %v2471 = vlaneseq
  %v2472 = vshrl.u32 %v2471, 7
  %v2473 = vsub.s32 %v2470, %v2472
  %v2474 = vrot.slane %v2466, %v2473
  %v2476 = vunpack.c.l.s4 1934713408
  %v2477 = vunpack.c.0.s8 %v2476
  %v2478 = vlaneseq
  %v2479 = vshrl.u32 %v2478, 7
  %v2480 = vsub.s32 %v2477, %v2479
  %v2481 = vrot.slane %v2467, %v2480
  %v2482 = vcombine.high %v2458, 0.0
  %v2483 = vcombine.high %v2465, 0.0
  %v2484 = vcombine.high %v2474, 0.0
  %v2485 = vcombine.high %v2481, 0.0
  %v2486 = vcombine.low %v2390, %v2397
  %v2488 = vunpack.c.l.s4 1983009808
  %v2489 = vunpack.c.0.s8 %v2488
  %v2490 = vlaneseq
  %v2491 = vshrl.u32 %v2490, 7
  %v2492 = vsub.s32 %v2489, %v2491
  %v2493 = vrot.slane %v2486, %v2492
  %v2494 = vcombine.low %v2414, %v2415
  %v2496 = vunpack.c.l.s4 1983009808
  %v2497 = vunpack.c.0.s8 %v2496
  %v2498 = vlaneseq
  %v2499 = vshrl.u32 %v2498, 7
  %v2500 = vsub.s32 %v2497, %v2499
  %v2501 = vrot.slane %v2494, %v2500
  %v2502 = vcombine.low %v2406, %v2413
  %v2504 = vunpack.c.l.s4 1983009808
  %v2505 = vunpack.c.0.s8 %v2504
  %v2506 = vlaneseq
  %v2507 = vshrl.u32 %v2506, 7
  %v2508 = vsub.s32 %v2505, %v2507
  %v2509 = vrot.slane %v2502, %v2508
  %v2510 = vcombine.low %v2416, %v2417
  %v2512 = vunpack.c.l.s4 1983009808
  %v2513 = vunpack.c.0.s8 %v2512
  %v2514 = vlaneseq
  %v2515 = vshrl.u32 %v2514, 7
  %v2516 = vsub.s32 %v2513, %v2515
  %v2517 = vrot.slane %v2510, %v2516
  %v2518 = vcombine.low %v2493, %v2501
  %v2519 = vcombine.high %v2493, %v2501
  %v2521 = vunpack.c.l.s4 1934713408
  %v2522 = vunpack.c.0.s8 %v2521
  %v2523 = vlaneseq
  %v2524 = vshrl.u32 %v2523, 7
  %v2525 = vsub.s32 %v2522, %v2524
  %v2526 = vrot.slane %v2518, %v2525
  %v2528 = vunpack.c.l.s4 1934713408
  %v2529 = vunpack.c.0.s8 %v2528
  %v2530 = vlaneseq
  %v2531 = vshrl.u32 %v2530, 7
  %v2532 = vsub.s32 %v2529, %v2531
  %v2533 = vrot.slane %v2519, %v2532
  %v2534 = vcombine.low %v2509, %v2517
  %v2535 = vcombine.high %v2509, %v2517
  %v2537 = vunpack.c.l.s4 1934713408
  %v2538 = vunpack.c.0.s8 %v2537
  %v2539 = vlaneseq
  %v2540 = vshrl.u32 %v2539, 7
  %v2541 = vsub.s32 %v2538, %v2540
  %v2542 = vrot.slane %v2534, %v2541
  %v2544 = vunpack.c.l.s4 1934713408
  %v2545 = vunpack.c.0.s8 %v2544
  %v2546 = vlaneseq
  %v2547 = vshrl.u32 %v2546, 7
  %v2548 = vsub.s32 %v2545, %v2547
  %v2549 = vrot.slane %v2535, %v2548
  %v2550 = vcombine.low %v2526, %v2542
  %v2551 = vcombine.high %v2526, %v2542
  %v2552 = vcombine.low %v2533, %v2549
  %v2553 = vcombine.high %v2533, %v2549
  %v2554 = vcombine.low %v2458, %v2465
  %v2556 = vunpack.c.l.s4 1983009808
  %v2557 = vunpack.c.0.s8 %v2556
  %v2558 = vlaneseq
  %v2559 = vshrl.u32 %v2558, 7
  %v2560 = vsub.s32 %v2557, %v2559
  %v2561 = vrot.slane %v2554, %v2560
  %v2562 = vcombine.low %v2482, %v2483
  %v2564 = vunpack.c.l.s4 1983009808
  %v2565 = vunpack.c.0.s8 %v2564
  %v2566 = vlaneseq
  %v2567 = vshrl.u32 %v2566, 7
  %v2568 = vsub.s32 %v2565, %v2567
  %v2569 = vrot.slane %v2562, %v2568
  %v2570 = vcombine.low %v2474, %v2481
  %v2572 = vunpack.c.l.s4 1983009808
  %v2573 = vunpack.c.0.s8 %v2572
  %v2574 = vlaneseq
  %v2575 = vshrl.u32 %v2574, 7
  %v2576 = vsub.s32 %v2573, %v2575
  %v2577 = vrot.slane %v2570, %v2576
  %v2578 = vcombine.low %v2484, %v2485
  %v2580 = vunpack.c.l.s4 1983009808
  %v2581 = vunpack.c.0.s8 %v2580
  %v2582 = vlaneseq
  %v2583 = vshrl.u32 %v2582, 7
  %v2584 = vsub.s32 %v2581, %v2583
  %v2585 = vrot.slane %v2578, %v2584
  %v2586 = vcombine.low %v2561, %v2569
  %v2587 = vcombine.high %v2561, %v2569
  %v2589 = vunpack.c.l.s4 1934713408
  %v2590 = vunpack.c.0.s8 %v2589
  %v2591 = vlaneseq
  %v2592 = vshrl.u32 %v2591, 7
  %v2593 = vsub.s32 %v2590, %v2592
  %v2594 = vrot.slane %v2586, %v2593
  %v2596 = vunpack.c.l.s4 1934713408
  %v2597 = vunpack.c.0.s8 %v2596
  %v2598 = vlaneseq
  %v2599 = vshrl.u32 %v2598, 7
  %v2600 = vsub.s32 %v2597, %v2599
  %v2601 = vrot.slane %v2587, %v2600
  %v2602 = vcombine.low %v2577, %v2585
  %v2603 = vcombine.high %v2577, %v2585
  %v2605 = vunpack.c.l.s4 1934713408
  %v2606 = vunpack.c.0.s8 %v2605
  %v2607 = vlaneseq
  %v2608 = vshrl.u32 %v2607, 7
  %v2609 = vsub.s32 %v2606, %v2608
  %v2610 = vrot.slane %v2602, %v2609
  %v2612 = vunpack.c.l.s4 1934713408
  %v2613 = vunpack.c.0.s8 %v2612
  %v2614 = vlaneseq
  %v2615 = vshrl.u32 %v2614, 7
  %v2616 = vsub.s32 %v2613, %v2615
  %v2617 = vrot.slane %v2603, %v2616
  %v2618 = vcombine.low %v2594, %v2610
  %v2619 = vcombine.high %v2594, %v2610
  %v2620 = vcombine.low %v2601, %v2617
  %v2621 = vcombine.high %v2601, %v2617
  %2624 = vrot.lane.b32.xlu0 %v2551, 8
  %v2625 = vpop.permute.xlu0 %2624
  %2626 = vrot.lane.b32.xlu0 %v2619, 8
  %v2627 = vpop.permute.xlu0 %2626
  %2632 = vrot.lane.b32.xlu0 %v2552, 16
  %v2633 = vpop.permute.xlu0 %2632
  %2634 = vrot.lane.b32.xlu0 %v2620, 16
  %v2635 = vpop.permute.xlu0 %2634
  %2640 = vrot.lane.b32.xlu0 %v2553, 24
  %v2641 = vpop.permute.xlu0 %2640
  %2642 = vrot.lane.b32.xlu0 %v2621, 24
  %v2643 = vpop.permute.xlu0 %2642
  %v2646 = vsel %vm86, %v2550, %v2625
  %v2647 = vsel %vm86, %v2618, %v2627
  %v2648 = vsel %vm218, %v2646, %v2633
  %v2649 = vsel %vm218, %v2647, %v2635
  %vm2650 = vcmask 195584
  %v2651 = vsel %vm2650, %v2648, %v2641
  %v2652 = vsel %vm2650, %v2649, %v2643
  %v2653 = vld [vmem:[%s9] sm:$0xf]
  %v2654 = vld [vmem:[%s9 + $0x4] sm:$0xf]
  %v2655 = vld [vmem:[%s9 + $0x8] sm:$0xf]
  %v2656 = vld [vmem:[%s9 + $0xc] sm:$0xf]
  %v2657 = vpack.c.bf16 %v2652, %v2651
  %v2658 = vld [vmem:[%s10] sm:$0x1]
  %v2660 = vlaneseq
  %v2661 = vshrl.u32 %v2660, 7
  %v2662 = vsub.s32 0, %v2661
  %v2663 = vrot.slane %v2658, %v2662
  %v2669 = vunpack.c.l.b16 %v2653
  %v2670 = vunpack.c.l.b16 %v2654
  %v2671 = vunpack.c.l.b16 %v2655
  %v2672 = vunpack.c.l.b16 %v2656
  %v2673 = vpack.c.b16 %v2670, %v2669
  %v2674 = vpack.c.b16 %v2672, %v2671
  %v2678 = vsel %vm397, %v2657, 0
  %2680 = vmatprep.subr.bf16.mxu0 0
  %2681 = vmatpush1.bf16.msra.mxu0 0
  %2682 = vmatprep.subr.bf16.mxu0 0
  %2683 = vmatpush1.bf16.msra.mxu0 0
  %2684 = vmatprep.subr.bf16.mxu0 0
  %2685 = vmatpush1.bf16.msra.mxu0 0
  %2686 = vmatprep.subr.bf16.mxu0 0
  %2687 = vmatpush1.bf16.msra.mxu0 0
  %2688 = vmatprep.subr.bf16.mxu0 0
  %2689 = vmatpush1.bf16.msra.mxu0 0
  %2690 = vmatprep.subr.bf16.mxu0 0
  %2691 = vmatpush1.bf16.msra.mxu0 0
  %2692 = vmatprep.subr.bf16.mxu0 0
  %2693 = vmatpush1.bf16.msra.mxu0 %v2674
  %2694 = vmatprep.subr.bf16.mxu0 0
  %2695 = vmatpush1.bf16.msra.mxu0 %v2673
  %2696 = vmatprep.subr.bf16.mxu0 0
  %2697 = vmatpush2.bf16.msra.mxu0 0
  %2698 = vmatprep.subr.bf16.mxu0 0
  %2699 = vmatpush2.bf16.msra.mxu0 0
  %2700 = vmatprep.subr.bf16.mxu0 0
  %2701 = vmatpush2.bf16.msra.mxu0 0
  %2702 = vmatprep.subr.bf16.mxu0 0
  %2703 = vmatpush2.bf16.msra.mxu0 0
  %2704 = vmatprep.subr.bf16.mxu0 0
  %2705 = vmatpush2.bf16.msra.mxu0 0
  %2706 = vmatprep.subr.bf16.mxu0 0
  %2707 = vmatpush2.bf16.msra.mxu0 0
  %2708 = vmatprep.subr.bf16.mxu0 0
  %2709 = vmatpush2.bf16.msra.mxu0 0
  %2710 = vmatprep.subr.bf16.mxu0 0
  %2711 = vmatpush2.bf16.msra.mxu0 0
  %2712 = vmatprep.mubr.bf16.mxu0 0
  %2713 = vmatmul.mubr.bf16.gmra.mxu0 %v2678
  %v2714 = vpop.f32.mrf.mxu0
  %v2715 = vadd.f32 %v2663, %v2714
  %v2716 = vpop.f32.mrf.mxu0
  %v2717 = vpop.f32.mrf.mxu0
  %v2718 = vadd.f32 %v2663, %v2717
  %v2719 = vpop.f32.mrf.mxu0
  %2720 = vdwg.mxu0
  %v2721 = vadd.f32 %v439, %v2715
  %v2722 = vadd.f32 %v440, %v2718
  %v2723 = vld [vmem:[%s11] sm:$0x1]
  %v2724 = vld [vmem:[%s12] sm:$0x1]
  %v2725 = vsel %vm397, %v2721, 0.0
  %2726 = vadd.xlane.f32.xlu0 %v2725
  %v2727 = vpop.xlane.xlu0 %2726
  %v2728 = vsel %vm397, %v2722, 0.0
  %2729 = vadd.xlane.f32.xlu0 %v2728
  %v2730 = vpop.xlane.xlu0 %2729
  %v2731 = vmul.f32 %v2727, %v404
  %v2732 = vmul.f32 %v2730, %v404
  %v2733 = vsub.f32 %v2721, %v2731
  %v2734 = vsub.f32 %v2722, %v2732
  %v2735 = vmul.f32 %v2733, %v2733
  %v2736 = vmul.f32 %v2734, %v2734
  %v2737 = vsel %vm397, %v2735, 0.0
  %2738 = vadd.xlane.f32.xlu0 %v2737
  %v2739 = vpop.xlane.xlu0 %2738
  %v2740 = vsel %vm397, %v2736, 0.0
  %2741 = vadd.xlane.f32.xlu0 %v2740
  %v2742 = vpop.xlane.xlu0 %2741
  %v2743 = vmul.f32 %v2739, %v404
  %v2744 = vmul.f32 %v2742, %v404
  %v2745 = vadd.f32 %v2743, 1e-05
  %v2746 = vadd.f32 %v2744, 1e-05
  %v2747 = vrsqrt.pop %v2745
  %v2748 = vrsqrt.pop %v2746
  %v2749 = vmul.f32 %v2733, %v2747
  %v2750 = vmul.f32 %v2734, %v2748
  %v2752 = vlaneseq
  %v2753 = vshrl.u32 %v2752, 7
  %v2754 = vsub.s32 0, %v2753
  %v2755 = vrot.slane %v2723, %v2754
  %v2757 = vmul.f32 %v2749, %v2755
  %v2758 = vmul.f32 %v2750, %v2755
  %v2760 = vlaneseq
  %v2761 = vshrl.u32 %v2760, 7
  %v2762 = vsub.s32 0, %v2761
  %v2763 = vrot.slane %v2724, %v2762
  %v2765 = vadd.f32 %v2757, %v2763
  %v2766 = vadd.f32 %v2758, %v2763
  %v2767 = vld [vmem:[%s13] sm:$0xf]
  %v2768 = vld [vmem:[%s13 + $0x4] sm:$0xf]
  %v2769 = vld [vmem:[%s13 + $0x8] sm:$0xf]
  %v2770 = vld [vmem:[%s13 + $0xc] sm:$0xf]
  %v2771 = vpack.c.bf16 %v2766, %v2765
  %v2772 = vld [vmem:[%s14] sm:$0x1]
  %v2774 = vlaneseq
  %v2775 = vshrl.u32 %v2774, 7
  %v2776 = vsub.s32 0, %v2775
  %v2777 = vrot.slane %v2772, %v2776
  %v2783 = vunpack.c.l.b16 %v2767
  %v2784 = vunpack.c.l.b16 %v2768
  %v2785 = vunpack.c.l.b16 %v2769
  %v2786 = vunpack.c.l.b16 %v2770
  %v2787 = vpack.c.b16 %v2784, %v2783
  %v2788 = vpack.c.b16 %v2786, %v2785
  %v2792 = vsel %vm397, %v2771, 0
  %2794 = vmatprep.subr.bf16.mxu0 0
  %2795 = vmatpush1.bf16.msra.mxu0 0
  %2796 = vmatprep.subr.bf16.mxu0 0
  %2797 = vmatpush1.bf16.msra.mxu0 0
  %2798 = vmatprep.subr.bf16.mxu0 0
  %2799 = vmatpush1.bf16.msra.mxu0 0
  %2800 = vmatprep.subr.bf16.mxu0 0
  %2801 = vmatpush1.bf16.msra.mxu0 0
  %2802 = vmatprep.subr.bf16.mxu0 0
  %2803 = vmatpush1.bf16.msra.mxu0 0
  %2804 = vmatprep.subr.bf16.mxu0 0
  %2805 = vmatpush1.bf16.msra.mxu0 0
  %2806 = vmatprep.subr.bf16.mxu0 0
  %2807 = vmatpush1.bf16.msra.mxu0 %v2788
  %2808 = vmatprep.subr.bf16.mxu0 0
  %2809 = vmatpush1.bf16.msra.mxu0 %v2787
  %2810 = vmatprep.subr.bf16.mxu0 0
  %2811 = vmatpush2.bf16.msra.mxu0 0
  %2812 = vmatprep.subr.bf16.mxu0 0
  %2813 = vmatpush2.bf16.msra.mxu0 0
  %2814 = vmatprep.subr.bf16.mxu0 0
  %2815 = vmatpush2.bf16.msra.mxu0 0
  %2816 = vmatprep.subr.bf16.mxu0 0
  %2817 = vmatpush2.bf16.msra.mxu0 0
  %2818 = vmatprep.subr.bf16.mxu0 0
  %2819 = vmatpush2.bf16.msra.mxu0 0
  %2820 = vmatprep.subr.bf16.mxu0 0
  %2821 = vmatpush2.bf16.msra.mxu0 0
  %2822 = vmatprep.subr.bf16.mxu0 0
  %2823 = vmatpush2.bf16.msra.mxu0 0
  %2824 = vmatprep.subr.bf16.mxu0 0
  %2825 = vmatpush2.bf16.msra.mxu0 0
  %2826 = vmatprep.mubr.bf16.mxu0 0
  %2827 = vmatmul.mubr.bf16.gmra.mxu0 %v2792
  %v2828 = vpop.f32.mrf.mxu0
  %v2829 = vadd.f32 %v2777, %v2828
  %v2830 = vpop.f32.mrf.mxu0
  %v2831 = vpop.f32.mrf.mxu0
  %v2832 = vadd.f32 %v2777, %v2831
  %v2833 = vpop.f32.mrf.mxu0
  %2834 = vdwg.mxu0
  %v2835 = vmul.f32 %v2829, %v2829
  %v2836 = vmul.f32 %v2832, %v2832
  %v2837 = vmul.f32 %v2829, %v2835
  %v2838 = vmul.f32 %v2832, %v2836
  %v2839 = vmul.f32 %v2837, 0.044715
  %v2840 = vmul.f32 %v2838, 0.044715
  %v2841 = vadd.f32 %v2829, %v2839
  %v2842 = vadd.f32 %v2832, %v2840
  %v2843 = vmul.f32 %v2841, 0.7978846
  %v2844 = vmul.f32 %v2842, 0.7978846
  %v2845 = vtanh.pop %v2843
  %v2846 = vtanh.pop %v2844
  %v2847 = vadd.f32 %v2845, 1.0
  %v2848 = vadd.f32 %v2846, 1.0
  %v2849 = vmul.f32 %v2847, 0.5
  %v2850 = vmul.f32 %v2848, 0.5
  %v2851 = vmul.f32 %v2829, %v2849
  %v2852 = vmul.f32 %v2832, %v2850
  %v2853 = vld [vmem:[%s15] sm:$0xf]
  %v2854 = vld [vmem:[%s15 + $0x4] sm:$0xf]
  %v2855 = vld [vmem:[%s15 + $0x8] sm:$0xf]
  %v2856 = vld [vmem:[%s15 + $0xc] sm:$0xf]
  %v2857 = vld [vmem:[%s15 + $0x10] sm:$0xf]
  %v2858 = vld [vmem:[%s15 + $0x14] sm:$0xf]
  %v2859 = vld [vmem:[%s15 + $0x18] sm:$0xf]
  %v2860 = vld [vmem:[%s15 + $0x1c] sm:$0xf]
  %v2861 = vpack.c.bf16 %v2852, %v2851
  %v2862 = vld [vmem:[%s16] sm:$0x1]
  %v2864 = vlaneseq
  %v2865 = vshrl.u32 %v2864, 7
  %v2866 = vsub.s32 0, %v2865
  %v2867 = vrot.slane %v2862, %v2866
  %v2877 = vunpack.c.l.b16 %v2853
  %v2878 = vunpack.c.l.b16 %v2854
  %v2879 = vunpack.c.l.b16 %v2855
  %v2880 = vunpack.c.l.b16 %v2856
  %v2881 = vunpack.c.l.b16 %v2857
  %v2882 = vunpack.c.l.b16 %v2858
  %v2883 = vunpack.c.l.b16 %v2859
  %v2884 = vunpack.c.l.b16 %v2860
  %v2885 = vpack.c.b16 %v2878, %v2877
  %v2886 = vpack.c.b16 %v2880, %v2879
  %v2887 = vpack.c.b16 %v2882, %v2881
  %v2888 = vpack.c.b16 %v2884, %v2883
  %vm2893 = vcmask 523264
  %v2895 = vsel %vm2893, %v2861, 0
  %2897 = vmatprep.subr.bf16.mxu0 0
  %2898 = vmatpush1.bf16.msra.mxu0 0
  %2899 = vmatprep.subr.bf16.mxu0 0
  %2900 = vmatpush1.bf16.msra.mxu0 0
  %2901 = vmatprep.subr.bf16.mxu0 0
  %2902 = vmatpush1.bf16.msra.mxu0 0
  %2903 = vmatprep.subr.bf16.mxu0 0
  %2904 = vmatpush1.bf16.msra.mxu0 0
  %2905 = vmatprep.subr.bf16.mxu0 0
  %2906 = vmatpush1.bf16.msra.mxu0 %v2888
  %2907 = vmatprep.subr.bf16.mxu0 0
  %2908 = vmatpush1.bf16.msra.mxu0 %v2887
  %2909 = vmatprep.subr.bf16.mxu0 0
  %2910 = vmatpush1.bf16.msra.mxu0 %v2886
  %2911 = vmatprep.subr.bf16.mxu0 0
  %2912 = vmatpush1.bf16.msra.mxu0 %v2885
  %2913 = vmatprep.subr.bf16.mxu0 0
  %2914 = vmatpush2.bf16.msra.mxu0 0
  %2915 = vmatprep.subr.bf16.mxu0 0
  %2916 = vmatpush2.bf16.msra.mxu0 0
  %2917 = vmatprep.subr.bf16.mxu0 0
  %2918 = vmatpush2.bf16.msra.mxu0 0
  %2919 = vmatprep.subr.bf16.mxu0 0
  %2920 = vmatpush2.bf16.msra.mxu0 0
  %2921 = vmatprep.subr.bf16.mxu0 0
  %2922 = vmatpush2.bf16.msra.mxu0 0
  %2923 = vmatprep.subr.bf16.mxu0 0
  %2924 = vmatpush2.bf16.msra.mxu0 0
  %2925 = vmatprep.subr.bf16.mxu0 0
  %2926 = vmatpush2.bf16.msra.mxu0 0
  %2927 = vmatprep.subr.bf16.mxu0 0
  %2928 = vmatpush2.bf16.msra.mxu0 0
  %2929 = vmatprep.mubr.bf16.mxu0 0
  %2930 = vmatmul.mubr.bf16.gmra.mxu0 %v2895
  %v2931 = vpop.f32.mrf.mxu0
  %v2932 = vadd.f32 %v2867, %v2931
  %v2933 = vpop.f32.mrf.mxu0
  %v2934 = vpop.f32.mrf.mxu0
  %v2935 = vadd.f32 %v2867, %v2934
  %v2936 = vpop.f32.mrf.mxu0
  %2937 = vdwg.mxu0
  %v2938 = vadd.f32 %v2765, %v2932
  %v2939 = vadd.f32 %v2766, %v2935
  %v2940 = vld [vmem:[%s17] sm:$0x1]
  %v2941 = vld [vmem:[%s18] sm:$0x1]
  %v2942 = vsel %vm397, %v2938, 0.0
  %2943 = vadd.xlane.f32.xlu0 %v2942
  %v2944 = vpop.xlane.xlu0 %2943
  %v2945 = vsel %vm397, %v2939, 0.0
  %2946 = vadd.xlane.f32.xlu0 %v2945
  %v2947 = vpop.xlane.xlu0 %2946
  %v2948 = vmul.f32 %v2944, %v404
  %v2949 = vmul.f32 %v2947, %v404
  %v2950 = vsub.f32 %v2938, %v2948
  %v2951 = vsub.f32 %v2939, %v2949
  %v2952 = vmul.f32 %v2950, %v2950
  %v2953 = vmul.f32 %v2951, %v2951
  %v2954 = vsel %vm397, %v2952, 0.0
  %2955 = vadd.xlane.f32.xlu0 %v2954
  %v2956 = vpop.xlane.xlu0 %2955
  %v2957 = vsel %vm397, %v2953, 0.0
  %2958 = vadd.xlane.f32.xlu0 %v2957
  %v2959 = vpop.xlane.xlu0 %2958
  %v2960 = vmul.f32 %v2956, %v404
  %v2961 = vmul.f32 %v2959, %v404
  %v2962 = vadd.f32 %v2960, 1e-05
  %v2963 = vadd.f32 %v2961, 1e-05
  %v2964 = vrsqrt.pop %v2962
  %v2965 = vrsqrt.pop %v2963
  %v2966 = vmul.f32 %v2950, %v2964
  %v2967 = vmul.f32 %v2951, %v2965
  %v2969 = vlaneseq
  %v2970 = vshrl.u32 %v2969, 7
  %v2971 = vsub.s32 0, %v2970
  %v2972 = vrot.slane %v2940, %v2971
  %v2974 = vmul.f32 %v2966, %v2972
  %v2975 = vmul.f32 %v2967, %v2972
  %v2977 = vlaneseq
  %v2978 = vshrl.u32 %v2977, 7
  %v2979 = vsub.s32 0, %v2978
  %v2980 = vrot.slane %v2941, %v2979
  %v2982 = vadd.f32 %v2974, %v2980
  %v2983 = vadd.f32 %v2975, %v2980
  %s2984 = scalar_lea.vmem %s7, 16
  %v2985 = vld [vmem:[%s2984] sm:$0xf]
  %v2986 = vld [vmem:[%s2984 + $0x4] sm:$0xf]
  %v2987 = vld [vmem:[%s2984 + $0x8] sm:$0xf]
  %v2988 = vld [vmem:[%s2984 + $0xc] sm:$0xf]
  %v2989 = vpack.c.bf16 %v2983, %v2982
  %s2990 = scalar_lea.vmem %s8, 1
  %v2991 = vld [vmem:[%s2990] sm:$0x1]
  %v2993 = vlaneseq
  %v2994 = vshrl.u32 %v2993, 7
  %v2995 = vsub.s32 0, %v2994
  %v2996 = vrot.slane %v2991, %v2995
  %v3002 = vunpack.c.l.b16 %v2985
  %v3003 = vunpack.c.l.b16 %v2986
  %v3004 = vunpack.c.l.b16 %v2987
  %v3005 = vunpack.c.l.b16 %v2988
  %v3006 = vpack.c.b16 %v3003, %v3002
  %v3007 = vpack.c.b16 %v3005, %v3004
  %v3011 = vsel %vm397, %v2989, 0
  %3013 = vmatprep.subr.bf16.mxu0 0
  %3014 = vmatpush1.bf16.msra.mxu0 0
  %3015 = vmatprep.subr.bf16.mxu0 0
  %3016 = vmatpush1.bf16.msra.mxu0 0
  %3017 = vmatprep.subr.bf16.mxu0 0
  %3018 = vmatpush1.bf16.msra.mxu0 0
  %3019 = vmatprep.subr.bf16.mxu0 0
  %3020 = vmatpush1.bf16.msra.mxu0 0
  %3021 = vmatprep.subr.bf16.mxu0 0
  %3022 = vmatpush1.bf16.msra.mxu0 0
  %3023 = vmatprep.subr.bf16.mxu0 0
  %3024 = vmatpush1.bf16.msra.mxu0 0
  %3025 = vmatprep.subr.bf16.mxu0 0
  %3026 = vmatpush1.bf16.msra.mxu0 %v3007
  %3027 = vmatprep.subr.bf16.mxu0 0
  %3028 = vmatpush1.bf16.msra.mxu0 %v3006
  %3029 = vmatprep.subr.bf16.mxu0 0
  %3030 = vmatpush2.bf16.msra.mxu0 0
  %3031 = vmatprep.subr.bf16.mxu0 0
  %3032 = vmatpush2.bf16.msra.mxu0 0
  %3033 = vmatprep.subr.bf16.mxu0 0
  %3034 = vmatpush2.bf16.msra.mxu0 0
  %3035 = vmatprep.subr.bf16.mxu0 0
  %3036 = vmatpush2.bf16.msra.mxu0 0
  %3037 = vmatprep.subr.bf16.mxu0 0
  %3038 = vmatpush2.bf16.msra.mxu0 0
  %3039 = vmatprep.subr.bf16.mxu0 0
  %3040 = vmatpush2.bf16.msra.mxu0 0
  %3041 = vmatprep.subr.bf16.mxu0 0
  %3042 = vmatpush2.bf16.msra.mxu0 0
  %3043 = vmatprep.subr.bf16.mxu0 0
  %3044 = vmatpush2.bf16.msra.mxu0 0
  %3045 = vmatprep.mubr.bf16.mxu0 0
  %3046 = vmatmul.mubr.bf16.gmra.mxu0 %v3011
  %v3047 = vpop.f32.mrf.mxu0
  %v3048 = vadd.f32 %v2996, %v3047
  %v3049 = vpop.f32.mrf.mxu0
  %v3050 = vpop.f32.mrf.mxu0
  %v3051 = vadd.f32 %v2996, %v3050
  %v3052 = vpop.f32.mrf.mxu0
  %3053 = vdwg.mxu0
  %3056 = vrot.lane.b32.xlu0 %v3048, 120
  %v3057 = vpop.permute.xlu0 %3056
  %3058 = vrot.lane.b32.xlu0 %v3051, 120
  %v3059 = vpop.permute.xlu0 %3058
  %3062 = vrot.lane.b32.xlu0 %v3048, 112
  %v3063 = vpop.permute.xlu0 %3062
  %3064 = vrot.lane.b32.xlu0 %v3051, 112
  %v3065 = vpop.permute.xlu0 %3064
  %3068 = vrot.lane.b32.xlu0 %v3048, 104
  %v3069 = vpop.permute.xlu0 %3068
  %3070 = vrot.lane.b32.xlu0 %v3051, 104
  %v3071 = vpop.permute.xlu0 %3070
  %3074 = vrot.lane.b32.xlu0 %v3048, 96
  %v3075 = vpop.permute.xlu0 %3074
  %3076 = vrot.lane.b32.xlu0 %v3051, 96
  %v3077 = vpop.permute.xlu0 %3076
  %3080 = vrot.lane.b32.xlu0 %v3048, 88
  %v3081 = vpop.permute.xlu0 %3080
  %3082 = vrot.lane.b32.xlu0 %v3051, 88
  %v3083 = vpop.permute.xlu0 %3082
  %3086 = vrot.lane.b32.xlu0 %v3048, 80
  %v3087 = vpop.permute.xlu0 %3086
  %3088 = vrot.lane.b32.xlu0 %v3051, 80
  %v3089 = vpop.permute.xlu0 %3088
  %3092 = vrot.lane.b32.xlu0 %v3048, 72
  %v3093 = vpop.permute.xlu0 %3092
  %3094 = vrot.lane.b32.xlu0 %v3051, 72
  %v3095 = vpop.permute.xlu0 %3094
  %3098 = vrot.lane.b32.xlu0 %v3048, 64
  %v3099 = vpop.permute.xlu0 %3098
  %3100 = vrot.lane.b32.xlu0 %v3051, 64
  %v3101 = vpop.permute.xlu0 %3100
  %3104 = vrot.lane.b32.xlu0 %v3048, 56
  %v3105 = vpop.permute.xlu0 %3104
  %3106 = vrot.lane.b32.xlu0 %v3051, 56
  %v3107 = vpop.permute.xlu0 %3106
  %3110 = vrot.lane.b32.xlu0 %v3048, 48
  %v3111 = vpop.permute.xlu0 %3110
  %3112 = vrot.lane.b32.xlu0 %v3051, 48
  %v3113 = vpop.permute.xlu0 %3112
  %3116 = vrot.lane.b32.xlu0 %v3048, 40
  %v3117 = vpop.permute.xlu0 %3116
  %3118 = vrot.lane.b32.xlu0 %v3051, 40
  %v3119 = vpop.permute.xlu0 %3118
  %v3122 = vcombine.low %v3048, %v3063
  %v3123 = vcombine.high %v3048, %v3063
  %v3125 = vunpack.c.l.s4 1983009808
  %v3126 = vunpack.c.0.s8 %v3125
  %v3127 = vlaneseq
  %v3128 = vshrl.u32 %v3127, 7
  %v3129 = vsub.s32 %v3126, %v3128
  %v3130 = vrot.slane %v3122, %v3129
  %v3132 = vunpack.c.l.s4 1983009808
  %v3133 = vunpack.c.0.s8 %v3132
  %v3134 = vlaneseq
  %v3135 = vshrl.u32 %v3134, 7
  %v3136 = vsub.s32 %v3133, %v3135
  %v3137 = vrot.slane %v3123, %v3136
  %v3138 = vcombine.low %v3057, %v3069
  %v3139 = vcombine.high %v3057, %v3069
  %v3141 = vunpack.c.l.s4 1983009808
  %v3142 = vunpack.c.0.s8 %v3141
  %v3143 = vlaneseq
  %v3144 = vshrl.u32 %v3143, 7
  %v3145 = vsub.s32 %v3142, %v3144
  %v3146 = vrot.slane %v3138, %v3145
  %v3148 = vunpack.c.l.s4 1983009808
  %v3149 = vunpack.c.0.s8 %v3148
  %v3150 = vlaneseq
  %v3151 = vshrl.u32 %v3150, 7
  %v3152 = vsub.s32 %v3149, %v3151
  %v3153 = vrot.slane %v3139, %v3152
  %v3154 = vcombine.low %v3075, %v3087
  %v3155 = vcombine.high %v3075, %v3087
  %v3157 = vunpack.c.l.s4 1983009808
  %v3158 = vunpack.c.0.s8 %v3157
  %v3159 = vlaneseq
  %v3160 = vshrl.u32 %v3159, 7
  %v3161 = vsub.s32 %v3158, %v3160
  %v3162 = vrot.slane %v3154, %v3161
  %v3164 = vunpack.c.l.s4 1983009808
  %v3165 = vunpack.c.0.s8 %v3164
  %v3166 = vlaneseq
  %v3167 = vshrl.u32 %v3166, 7
  %v3168 = vsub.s32 %v3165, %v3167
  %v3169 = vrot.slane %v3155, %v3168
  %v3170 = vcombine.low %v3081, %v3093
  %v3171 = vcombine.high %v3081, %v3093
  %v3173 = vunpack.c.l.s4 1983009808
  %v3174 = vunpack.c.0.s8 %v3173
  %v3175 = vlaneseq
  %v3176 = vshrl.u32 %v3175, 7
  %v3177 = vsub.s32 %v3174, %v3176
  %v3178 = vrot.slane %v3170, %v3177
  %v3180 = vunpack.c.l.s4 1983009808
  %v3181 = vunpack.c.0.s8 %v3180
  %v3182 = vlaneseq
  %v3183 = vshrl.u32 %v3182, 7
  %v3184 = vsub.s32 %v3181, %v3183
  %v3185 = vrot.slane %v3171, %v3184
  %v3186 = vcombine.low %v3130, %v3146
  %v3187 = vcombine.high %v3130, %v3146
  %v3189 = vunpack.c.l.s4 1934713408
  %v3190 = vunpack.c.0.s8 %v3189
  %v3191 = vlaneseq
  %v3192 = vshrl.u32 %v3191, 7
  %v3193 = vsub.s32 %v3190, %v3192
  %v3194 = vrot.slane %v3186, %v3193
  %v3196 = vunpack.c.l.s4 1934713408
  %v3197 = vunpack.c.0.s8 %v3196
  %v3198 = vlaneseq
  %v3199 = vshrl.u32 %v3198, 7
  %v3200 = vsub.s32 %v3197, %v3199
  %v3201 = vrot.slane %v3187, %v3200
  %v3202 = vcombine.low %v3137, %v3153
  %v3203 = vcombine.high %v3137, %v3153
  %v3205 = vunpack.c.l.s4 1934713408
  %v3206 = vunpack.c.0.s8 %v3205
  %v3207 = vlaneseq
  %v3208 = vshrl.u32 %v3207, 7
  %v3209 = vsub.s32 %v3206, %v3208
  %v3210 = vrot.slane %v3202, %v3209
  %v3212 = vunpack.c.l.s4 1934713408
  %v3213 = vunpack.c.0.s8 %v3212
  %v3214 = vlaneseq
  %v3215 = vshrl.u32 %v3214, 7
  %v3216 = vsub.s32 %v3213, %v3215
  %v3217 = vrot.slane %v3203, %v3216
  %v3218 = vcombine.low %v3162, %v3178
  %v3219 = vcombine.high %v3162, %v3178
  %v3221 = vunpack.c.l.s4 1934713408
  %v3222 = vunpack.c.0.s8 %v3221
  %v3223 = vlaneseq
  %v3224 = vshrl.u32 %v3223, 7
  %v3225 = vsub.s32 %v3222, %v3224
  %v3226 = vrot.slane %v3218, %v3225
  %v3228 = vunpack.c.l.s4 1934713408
  %v3229 = vunpack.c.0.s8 %v3228
  %v3230 = vlaneseq
  %v3231 = vshrl.u32 %v3230, 7
  %v3232 = vsub.s32 %v3229, %v3231
  %v3233 = vrot.slane %v3219, %v3232
  %v3234 = vcombine.low %v3169, %v3185
  %v3235 = vcombine.high %v3169, %v3185
  %v3237 = vunpack.c.l.s4 1934713408
  %v3238 = vunpack.c.0.s8 %v3237
  %v3239 = vlaneseq
  %v3240 = vshrl.u32 %v3239, 7
  %v3241 = vsub.s32 %v3238, %v3240
  %v3242 = vrot.slane %v3234, %v3241
  %v3244 = vunpack.c.l.s4 1934713408
  %v3245 = vunpack.c.0.s8 %v3244
  %v3246 = vlaneseq
  %v3247 = vshrl.u32 %v3246, 7
  %v3248 = vsub.s32 %v3245, %v3247
  %v3249 = vrot.slane %v3235, %v3248
  %v3250 = vcombine.low %v3194, %v3226
  %v3251 = vcombine.high %v3194, %v3226
  %v3252 = vcombine.low %v3201, %v3233
  %v3253 = vcombine.high %v3201, %v3233
  %v3254 = vcombine.low %v3210, %v3242
  %v3255 = vcombine.high %v3210, %v3242
  %v3256 = vcombine.low %v3217, %v3249
  %v3257 = vcombine.high %v3217, %v3249
  %v3258 = vcombine.low %v3099, %v3111
  %v3259 = vcombine.high %v3099, %v3111
  %v3261 = vunpack.c.l.s4 1983009808
  %v3262 = vunpack.c.0.s8 %v3261
  %v3263 = vlaneseq
  %v3264 = vshrl.u32 %v3263, 7
  %v3265 = vsub.s32 %v3262, %v3264
  %v3266 = vrot.slane %v3258, %v3265
  %v3268 = vunpack.c.l.s4 1983009808
  %v3269 = vunpack.c.0.s8 %v3268
  %v3270 = vlaneseq
  %v3271 = vshrl.u32 %v3270, 7
  %v3272 = vsub.s32 %v3269, %v3271
  %v3273 = vrot.slane %v3259, %v3272
  %v3274 = vcombine.low %v3105, %v3117
  %v3275 = vcombine.high %v3105, %v3117
  %v3277 = vunpack.c.l.s4 1983009808
  %v3278 = vunpack.c.0.s8 %v3277
  %v3279 = vlaneseq
  %v3280 = vshrl.u32 %v3279, 7
  %v3281 = vsub.s32 %v3278, %v3280
  %v3282 = vrot.slane %v3274, %v3281
  %v3284 = vunpack.c.l.s4 1983009808
  %v3285 = vunpack.c.0.s8 %v3284
  %v3286 = vlaneseq
  %v3287 = vshrl.u32 %v3286, 7
  %v3288 = vsub.s32 %v3285, %v3287
  %v3289 = vrot.slane %v3275, %v3288
  %v3290 = vcombine.low %v3266, %v3282
  %v3291 = vcombine.high %v3266, %v3282
  %v3293 = vunpack.c.l.s4 1934713408
  %v3294 = vunpack.c.0.s8 %v3293
  %v3295 = vlaneseq
  %v3296 = vshrl.u32 %v3295, 7
  %v3297 = vsub.s32 %v3294, %v3296
  %v3298 = vrot.slane %v3290, %v3297
  %v3300 = vunpack.c.l.s4 1934713408
  %v3301 = vunpack.c.0.s8 %v3300
  %v3302 = vlaneseq
  %v3303 = vshrl.u32 %v3302, 7
  %v3304 = vsub.s32 %v3301, %v3303
  %v3305 = vrot.slane %v3291, %v3304
  %v3306 = vcombine.low %v3273, %v3289
  %v3307 = vcombine.high %v3273, %v3289
  %v3309 = vunpack.c.l.s4 1934713408
  %v3310 = vunpack.c.0.s8 %v3309
  %v3311 = vlaneseq
  %v3312 = vshrl.u32 %v3311, 7
  %v3313 = vsub.s32 %v3310, %v3312
  %v3314 = vrot.slane %v3306, %v3313
  %v3316 = vunpack.c.l.s4 1934713408
  %v3317 = vunpack.c.0.s8 %v3316
  %v3318 = vlaneseq
  %v3319 = vshrl.u32 %v3318, 7
  %v3320 = vsub.s32 %v3317, %v3319
  %v3321 = vrot.slane %v3307, %v3320
  %v3322 = vcombine.high %v3298, 0.0
  %v3323 = vcombine.high %v3305, 0.0
  %v3324 = vcombine.high %v3314, 0.0
  %v3325 = vcombine.high %v3321, 0.0
  %v3326 = vcombine.low %v3051, %v3065
  %v3327 = vcombine.high %v3051, %v3065
  %v3329 = vunpack.c.l.s4 1983009808
  %v3330 = vunpack.c.0.s8 %v3329
  %v3331 = vlaneseq
  %v3332 = vshrl.u32 %v3331, 7
  %v3333 = vsub.s32 %v3330, %v3332
  %v3334 = vrot.slane %v3326, %v3333
  %v3336 = vunpack.c.l.s4 1983009808
  %v3337 = vunpack.c.0.s8 %v3336
  %v3338 = vlaneseq
  %v3339 = vshrl.u32 %v3338, 7
  %v3340 = vsub.s32 %v3337, %v3339
  %v3341 = vrot.slane %v3327, %v3340
  %v3342 = vcombine.low %v3059, %v3071
  %v3343 = vcombine.high %v3059, %v3071
  %v3345 = vunpack.c.l.s4 1983009808
  %v3346 = vunpack.c.0.s8 %v3345
  %v3347 = vlaneseq
  %v3348 = vshrl.u32 %v3347, 7
  %v3349 = vsub.s32 %v3346, %v3348
  %v3350 = vrot.slane %v3342, %v3349
  %v3352 = vunpack.c.l.s4 1983009808
  %v3353 = vunpack.c.0.s8 %v3352
  %v3354 = vlaneseq
  %v3355 = vshrl.u32 %v3354, 7
  %v3356 = vsub.s32 %v3353, %v3355
  %v3357 = vrot.slane %v3343, %v3356
  %v3358 = vcombine.low %v3077, %v3089
  %v3359 = vcombine.high %v3077, %v3089
  %v3361 = vunpack.c.l.s4 1983009808
  %v3362 = vunpack.c.0.s8 %v3361
  %v3363 = vlaneseq
  %v3364 = vshrl.u32 %v3363, 7
  %v3365 = vsub.s32 %v3362, %v3364
  %v3366 = vrot.slane %v3358, %v3365
  %v3368 = vunpack.c.l.s4 1983009808
  %v3369 = vunpack.c.0.s8 %v3368
  %v3370 = vlaneseq
  %v3371 = vshrl.u32 %v3370, 7
  %v3372 = vsub.s32 %v3369, %v3371
  %v3373 = vrot.slane %v3359, %v3372
  %v3374 = vcombine.low %v3083, %v3095
  %v3375 = vcombine.high %v3083, %v3095
  %v3377 = vunpack.c.l.s4 1983009808
  %v3378 = vunpack.c.0.s8 %v3377
  %v3379 = vlaneseq
  %v3380 = vshrl.u32 %v3379, 7
  %v3381 = vsub.s32 %v3378, %v3380
  %v3382 = vrot.slane %v3374, %v3381
  %v3384 = vunpack.c.l.s4 1983009808
  %v3385 = vunpack.c.0.s8 %v3384
  %v3386 = vlaneseq
  %v3387 = vshrl.u32 %v3386, 7
  %v3388 = vsub.s32 %v3385, %v3387
  %v3389 = vrot.slane %v3375, %v3388
  %v3390 = vcombine.low %v3334, %v3350
  %v3391 = vcombine.high %v3334, %v3350
  %v3393 = vunpack.c.l.s4 1934713408
  %v3394 = vunpack.c.0.s8 %v3393
  %v3395 = vlaneseq
  %v3396 = vshrl.u32 %v3395, 7
  %v3397 = vsub.s32 %v3394, %v3396
  %v3398 = vrot.slane %v3390, %v3397
  %v3400 = vunpack.c.l.s4 1934713408
  %v3401 = vunpack.c.0.s8 %v3400
  %v3402 = vlaneseq
  %v3403 = vshrl.u32 %v3402, 7
  %v3404 = vsub.s32 %v3401, %v3403
  %v3405 = vrot.slane %v3391, %v3404
  %v3406 = vcombine.low %v3341, %v3357
  %v3407 = vcombine.high %v3341, %v3357
  %v3409 = vunpack.c.l.s4 1934713408
  %v3410 = vunpack.c.0.s8 %v3409
  %v3411 = vlaneseq
  %v3412 = vshrl.u32 %v3411, 7
  %v3413 = vsub.s32 %v3410, %v3412
  %v3414 = vrot.slane %v3406, %v3413
  %v3416 = vunpack.c.l.s4 1934713408
  %v3417 = vunpack.c.0.s8 %v3416
  %v3418 = vlaneseq
  %v3419 = vshrl.u32 %v3418, 7
  %v3420 = vsub.s32 %v3417, %v3419
  %v3421 = vrot.slane %v3407, %v3420
  %v3422 = vcombine.low %v3366, %v3382
  %v3423 = vcombine.high %v3366, %v3382
  %v3425 = vunpack.c.l.s4 1934713408
  %v3426 = vunpack.c.0.s8 %v3425
  %v3427 = vlaneseq
  %v3428 = vshrl.u32 %v3427, 7
  %v3429 = vsub.s32 %v3426, %v3428
  %v3430 = vrot.slane %v3422, %v3429
  %v3432 = vunpack.c.l.s4 1934713408
  %v3433 = vunpack.c.0.s8 %v3432
  %v3434 = vlaneseq
  %v3435 = vshrl.u32 %v3434, 7
  %v3436 = vsub.s32 %v3433, %v3435
  %v3437 = vrot.slane %v3423, %v3436
  %v3438 = vcombine.low %v3373, %v3389
  %v3439 = vcombine.high %v3373, %v3389
  %v3441 = vunpack.c.l.s4 1934713408
  %v3442 = vunpack.c.0.s8 %v3441
  %v3443 = vlaneseq
  %v3444 = vshrl.u32 %v3443, 7
  %v3445 = vsub.s32 %v3442, %v3444
  %v3446 = vrot.slane %v3438, %v3445
  %v3448 = vunpack.c.l.s4 1934713408
  %v3449 = vunpack.c.0.s8 %v3448
  %v3450 = vlaneseq
  %v3451 = vshrl.u32 %v3450, 7
  %v3452 = vsub.s32 %v3449, %v3451
  %v3453 = vrot.slane %v3439, %v3452
  %v3454 = vcombine.low %v3398, %v3430
  %v3455 = vcombine.high %v3398, %v3430
  %v3456 = vcombine.low %v3405, %v3437
  %v3457 = vcombine.high %v3405, %v3437
  %v3458 = vcombine.low %v3414, %v3446
  %v3459 = vcombine.high %v3414, %v3446
  %v3460 = vcombine.low %v3421, %v3453
  %v3461 = vcombine.high %v3421, %v3453
  %v3462 = vcombine.low %v3101, %v3113
  %v3463 = vcombine.high %v3101, %v3113
  %v3465 = vunpack.c.l.s4 1983009808
  %v3466 = vunpack.c.0.s8 %v3465
  %v3467 = vlaneseq
  %v3468 = vshrl.u32 %v3467, 7
  %v3469 = vsub.s32 %v3466, %v3468
  %v3470 = vrot.slane %v3462, %v3469
  %v3472 = vunpack.c.l.s4 1983009808
  %v3473 = vunpack.c.0.s8 %v3472
  %v3474 = vlaneseq
  %v3475 = vshrl.u32 %v3474, 7
  %v3476 = vsub.s32 %v3473, %v3475
  %v3477 = vrot.slane %v3463, %v3476
  %v3478 = vcombine.low %v3107, %v3119
  %v3479 = vcombine.high %v3107, %v3119
  %v3481 = vunpack.c.l.s4 1983009808
  %v3482 = vunpack.c.0.s8 %v3481
  %v3483 = vlaneseq
  %v3484 = vshrl.u32 %v3483, 7
  %v3485 = vsub.s32 %v3482, %v3484
  %v3486 = vrot.slane %v3478, %v3485
  %v3488 = vunpack.c.l.s4 1983009808
  %v3489 = vunpack.c.0.s8 %v3488
  %v3490 = vlaneseq
  %v3491 = vshrl.u32 %v3490, 7
  %v3492 = vsub.s32 %v3489, %v3491
  %v3493 = vrot.slane %v3479, %v3492
  %v3494 = vcombine.low %v3470, %v3486
  %v3495 = vcombine.high %v3470, %v3486
  %v3497 = vunpack.c.l.s4 1934713408
  %v3498 = vunpack.c.0.s8 %v3497
  %v3499 = vlaneseq
  %v3500 = vshrl.u32 %v3499, 7
  %v3501 = vsub.s32 %v3498, %v3500
  %v3502 = vrot.slane %v3494, %v3501
  %v3504 = vunpack.c.l.s4 1934713408
  %v3505 = vunpack.c.0.s8 %v3504
  %v3506 = vlaneseq
  %v3507 = vshrl.u32 %v3506, 7
  %v3508 = vsub.s32 %v3505, %v3507
  %v3509 = vrot.slane %v3495, %v3508
  %v3510 = vcombine.low %v3477, %v3493
  %v3511 = vcombine.high %v3477, %v3493
  %v3513 = vunpack.c.l.s4 1934713408
  %v3514 = vunpack.c.0.s8 %v3513
  %v3515 = vlaneseq
  %v3516 = vshrl.u32 %v3515, 7
  %v3517 = vsub.s32 %v3514, %v3516
  %v3518 = vrot.slane %v3510, %v3517
  %v3520 = vunpack.c.l.s4 1934713408
  %v3521 = vunpack.c.0.s8 %v3520
  %v3522 = vlaneseq
  %v3523 = vshrl.u32 %v3522, 7
  %v3524 = vsub.s32 %v3521, %v3523
  %v3525 = vrot.slane %v3511, %v3524
  %v3526 = vcombine.high %v3502, 0.0
  %v3527 = vcombine.high %v3509, 0.0
  %v3528 = vcombine.high %v3518, 0.0
  %v3529 = vcombine.high %v3525, 0.0
  %v3530 = vcombine.low %v3250, %v3252
  %v3532 = vunpack.c.l.s4 1983009808
  %v3533 = vunpack.c.0.s8 %v3532
  %v3534 = vlaneseq
  %v3535 = vshrl.u32 %v3534, 7
  %v3536 = vsub.s32 %v3533, %v3535
  %v3537 = vrot.slane %v3530, %v3536
  %v3538 = vcombine.low %v3251, %v3253
  %v3540 = vunpack.c.l.s4 1983009808
  %v3541 = vunpack.c.0.s8 %v3540
  %v3542 = vlaneseq
  %v3543 = vshrl.u32 %v3542, 7
  %v3544 = vsub.s32 %v3541, %v3543
  %v3545 = vrot.slane %v3538, %v3544
  %v3546 = vcombine.low %v3254, %v3256
  %v3548 = vunpack.c.l.s4 1983009808
  %v3549 = vunpack.c.0.s8 %v3548
  %v3550 = vlaneseq
  %v3551 = vshrl.u32 %v3550, 7
  %v3552 = vsub.s32 %v3549, %v3551
  %v3553 = vrot.slane %v3546, %v3552
  %v3554 = vcombine.low %v3255, %v3257
  %v3556 = vunpack.c.l.s4 1983009808
  %v3557 = vunpack.c.0.s8 %v3556
  %v3558 = vlaneseq
  %v3559 = vshrl.u32 %v3558, 7
  %v3560 = vsub.s32 %v3557, %v3559
  %v3561 = vrot.slane %v3554, %v3560
  %v3562 = vcombine.low %v3537, %v3545
  %v3563 = vcombine.high %v3537, %v3545
  %v3565 = vunpack.c.l.s4 1934713408
  %v3566 = vunpack.c.0.s8 %v3565
  %v3567 = vlaneseq
  %v3568 = vshrl.u32 %v3567, 7
  %v3569 = vsub.s32 %v3566, %v3568
  %v3570 = vrot.slane %v3562, %v3569
  %v3572 = vunpack.c.l.s4 1934713408
  %v3573 = vunpack.c.0.s8 %v3572
  %v3574 = vlaneseq
  %v3575 = vshrl.u32 %v3574, 7
  %v3576 = vsub.s32 %v3573, %v3575
  %v3577 = vrot.slane %v3563, %v3576
  %v3578 = vcombine.low %v3553, %v3561
  %v3579 = vcombine.high %v3553, %v3561
  %v3581 = vunpack.c.l.s4 1934713408
  %v3582 = vunpack.c.0.s8 %v3581
  %v3583 = vlaneseq
  %v3584 = vshrl.u32 %v3583, 7
  %v3585 = vsub.s32 %v3582, %v3584
  %v3586 = vrot.slane %v3578, %v3585
  %v3588 = vunpack.c.l.s4 1934713408
  %v3589 = vunpack.c.0.s8 %v3588
  %v3590 = vlaneseq
  %v3591 = vshrl.u32 %v3590, 7
  %v3592 = vsub.s32 %v3589, %v3591
  %v3593 = vrot.slane %v3579, %v3592
  %v3594 = vcombine.low %v3570, %v3586
  %v3595 = vcombine.high %v3570, %v3586
  %v3596 = vcombine.low %v3577, %v3593
  %v3597 = vcombine.high %v3577, %v3593
  %v3598 = vcombine.low %v3454, %v3456
  %v3600 = vunpack.c.l.s4 1983009808
  %v3601 = vunpack.c.0.s8 %v3600
  %v3602 = vlaneseq
  %v3603 = vshrl.u32 %v3602, 7
  %v3604 = vsub.s32 %v3601, %v3603
  %v3605 = vrot.slane %v3598, %v3604
  %v3606 = vcombine.low %v3455, %v3457
  %v3608 = vunpack.c.l.s4 1983009808
  %v3609 = vunpack.c.0.s8 %v3608
  %v3610 = vlaneseq
  %v3611 = vshrl.u32 %v3610, 7
  %v3612 = vsub.s32 %v3609, %v3611
  %v3613 = vrot.slane %v3606, %v3612
  %v3614 = vcombine.low %v3458, %v3460
  %v3616 = vunpack.c.l.s4 1983009808
  %v3617 = vunpack.c.0.s8 %v3616
  %v3618 = vlaneseq
  %v3619 = vshrl.u32 %v3618, 7
  %v3620 = vsub.s32 %v3617, %v3619
  %v3621 = vrot.slane %v3614, %v3620
  %v3622 = vcombine.low %v3459, %v3461
  %v3624 = vunpack.c.l.s4 1983009808
  %v3625 = vunpack.c.0.s8 %v3624
  %v3626 = vlaneseq
  %v3627 = vshrl.u32 %v3626, 7
  %v3628 = vsub.s32 %v3625, %v3627
  %v3629 = vrot.slane %v3622, %v3628
  %v3630 = vcombine.low %v3605, %v3613
  %v3631 = vcombine.high %v3605, %v3613
  %v3633 = vunpack.c.l.s4 1934713408
  %v3634 = vunpack.c.0.s8 %v3633
  %v3635 = vlaneseq
  %v3636 = vshrl.u32 %v3635, 7
  %v3637 = vsub.s32 %v3634, %v3636
  %v3638 = vrot.slane %v3630, %v3637
  %v3640 = vunpack.c.l.s4 1934713408
  %v3641 = vunpack.c.0.s8 %v3640
  %v3642 = vlaneseq
  %v3643 = vshrl.u32 %v3642, 7
  %v3644 = vsub.s32 %v3641, %v3643
  %v3645 = vrot.slane %v3631, %v3644
  %v3646 = vcombine.low %v3621, %v3629
  %v3647 = vcombine.high %v3621, %v3629
  %v3649 = vunpack.c.l.s4 1934713408
  %v3650 = vunpack.c.0.s8 %v3649
  %v3651 = vlaneseq
  %v3652 = vshrl.u32 %v3651, 7
  %v3653 = vsub.s32 %v3650, %v3652
  %v3654 = vrot.slane %v3646, %v3653
  %v3656 = vunpack.c.l.s4 1934713408
  %v3657 = vunpack.c.0.s8 %v3656
  %v3658 = vlaneseq
  %v3659 = vshrl.u32 %v3658, 7
  %v3660 = vsub.s32 %v3657, %v3659
  %v3661 = vrot.slane %v3647, %v3660
  %v3662 = vcombine.low %v3638, %v3654
  %v3663 = vcombine.high %v3638, %v3654
  %v3664 = vcombine.low %v3645, %v3661
  %v3665 = vcombine.high %v3645, %v3661
  %v3682 = vrot.slane %v3250, 4
  %v3683 = vrot.slane %v3251, 4
  %v3684 = vrot.slane %v3252, 4
  %v3685 = vrot.slane %v3253, 4
  %v3686 = vrot.slane %v3254, 4
  %v3687 = vrot.slane %v3255, 4
  %v3688 = vrot.slane %v3256, 4
  %v3689 = vrot.slane %v3257, 4
  %v3690 = vrot.slane %v3454, 4
  %v3691 = vrot.slane %v3455, 4
  %v3692 = vrot.slane %v3456, 4
  %v3693 = vrot.slane %v3457, 4
  %v3694 = vrot.slane %v3458, 4
  %v3695 = vrot.slane %v3459, 4
  %v3696 = vrot.slane %v3460, 4
  %v3697 = vrot.slane %v3461, 4
  %v3714 = vcombine.low %v3682, %v3684
  %v3716 = vunpack.c.l.s4 1983009808
  %v3717 = vunpack.c.0.s8 %v3716
  %v3718 = vlaneseq
  %v3719 = vshrl.u32 %v3718, 7
  %v3720 = vsub.s32 %v3717, %v3719
  %v3721 = vrot.slane %v3714, %v3720
  %v3722 = vcombine.low %v3683, %v3685
  %v3724 = vunpack.c.l.s4 1983009808
  %v3725 = vunpack.c.0.s8 %v3724
  %v3726 = vlaneseq
  %v3727 = vshrl.u32 %v3726, 7
  %v3728 = vsub.s32 %v3725, %v3727
  %v3729 = vrot.slane %v3722, %v3728
  %v3730 = vcombine.low %v3686, %v3688
  %v3732 = vunpack.c.l.s4 1983009808
  %v3733 = vunpack.c.0.s8 %v3732
  %v3734 = vlaneseq
  %v3735 = vshrl.u32 %v3734, 7
  %v3736 = vsub.s32 %v3733, %v3735
  %v3737 = vrot.slane %v3730, %v3736
  %v3738 = vcombine.low %v3687, %v3689
  %v3740 = vunpack.c.l.s4 1983009808
  %v3741 = vunpack.c.0.s8 %v3740
  %v3742 = vlaneseq
  %v3743 = vshrl.u32 %v3742, 7
  %v3744 = vsub.s32 %v3741, %v3743
  %v3745 = vrot.slane %v3738, %v3744
  %v3746 = vcombine.low %v3721, %v3729
  %v3747 = vcombine.high %v3721, %v3729
  %v3749 = vunpack.c.l.s4 1934713408
  %v3750 = vunpack.c.0.s8 %v3749
  %v3751 = vlaneseq
  %v3752 = vshrl.u32 %v3751, 7
  %v3753 = vsub.s32 %v3750, %v3752
  %v3754 = vrot.slane %v3746, %v3753
  %v3756 = vunpack.c.l.s4 1934713408
  %v3757 = vunpack.c.0.s8 %v3756
  %v3758 = vlaneseq
  %v3759 = vshrl.u32 %v3758, 7
  %v3760 = vsub.s32 %v3757, %v3759
  %v3761 = vrot.slane %v3747, %v3760
  %v3762 = vcombine.low %v3737, %v3745
  %v3763 = vcombine.high %v3737, %v3745
  %v3765 = vunpack.c.l.s4 1934713408
  %v3766 = vunpack.c.0.s8 %v3765
  %v3767 = vlaneseq
  %v3768 = vshrl.u32 %v3767, 7
  %v3769 = vsub.s32 %v3766, %v3768
  %v3770 = vrot.slane %v3762, %v3769
  %v3772 = vunpack.c.l.s4 1934713408
  %v3773 = vunpack.c.0.s8 %v3772
  %v3774 = vlaneseq
  %v3775 = vshrl.u32 %v3774, 7
  %v3776 = vsub.s32 %v3773, %v3775
  %v3777 = vrot.slane %v3763, %v3776
  %v3778 = vcombine.low %v3754, %v3770
  %v3779 = vcombine.high %v3754, %v3770
  %v3780 = vcombine.low %v3761, %v3777
  %v3781 = vcombine.high %v3761, %v3777
  %v3782 = vcombine.low %v3690, %v3692
  %v3784 = vunpack.c.l.s4 1983009808
  %v3785 = vunpack.c.0.s8 %v3784
  %v3786 = vlaneseq
  %v3787 = vshrl.u32 %v3786, 7
  %v3788 = vsub.s32 %v3785, %v3787
  %v3789 = vrot.slane %v3782, %v3788
  %v3790 = vcombine.low %v3691, %v3693
  %v3792 = vunpack.c.l.s4 1983009808
  %v3793 = vunpack.c.0.s8 %v3792
  %v3794 = vlaneseq
  %v3795 = vshrl.u32 %v3794, 7
  %v3796 = vsub.s32 %v3793, %v3795
  %v3797 = vrot.slane %v3790, %v3796
  %v3798 = vcombine.low %v3694, %v3696
  %v3800 = vunpack.c.l.s4 1983009808
  %v3801 = vunpack.c.0.s8 %v3800
  %v3802 = vlaneseq
  %v3803 = vshrl.u32 %v3802, 7
  %v3804 = vsub.s32 %v3801, %v3803
  %v3805 = vrot.slane %v3798, %v3804
  %v3806 = vcombine.low %v3695, %v3697
  %v3808 = vunpack.c.l.s4 1983009808
  %v3809 = vunpack.c.0.s8 %v3808
  %v3810 = vlaneseq
  %v3811 = vshrl.u32 %v3810, 7
  %v3812 = vsub.s32 %v3809, %v3811
  %v3813 = vrot.slane %v3806, %v3812
  %v3814 = vcombine.low %v3789, %v3797
  %v3815 = vcombine.high %v3789, %v3797
  %v3817 = vunpack.c.l.s4 1934713408
  %v3818 = vunpack.c.0.s8 %v3817
  %v3819 = vlaneseq
  %v3820 = vshrl.u32 %v3819, 7
  %v3821 = vsub.s32 %v3818, %v3820
  %v3822 = vrot.slane %v3814, %v3821
  %v3824 = vunpack.c.l.s4 1934713408
  %v3825 = vunpack.c.0.s8 %v3824
  %v3826 = vlaneseq
  %v3827 = vshrl.u32 %v3826, 7
  %v3828 = vsub.s32 %v3825, %v3827
  %v3829 = vrot.slane %v3815, %v3828
  %v3830 = vcombine.low %v3805, %v3813
  %v3831 = vcombine.high %v3805, %v3813
  %v3833 = vunpack.c.l.s4 1934713408
  %v3834 = vunpack.c.0.s8 %v3833
  %v3835 = vlaneseq
  %v3836 = vshrl.u32 %v3835, 7
  %v3837 = vsub.s32 %v3834, %v3836
  %v3838 = vrot.slane %v3830, %v3837
  %v3840 = vunpack.c.l.s4 1934713408
  %v3841 = vunpack.c.0.s8 %v3840
  %v3842 = vlaneseq
  %v3843 = vshrl.u32 %v3842, 7
  %v3844 = vsub.s32 %v3841, %v3843
  %v3845 = vrot.slane %v3831, %v3844
  %v3846 = vcombine.low %v3822, %v3838
  %v3847 = vcombine.high %v3822, %v3838
  %v3848 = vcombine.low %v3829, %v3845
  %v3849 = vcombine.high %v3829, %v3845
  %v3850 = vcombine.low %v3298, %v3305
  %v3852 = vunpack.c.l.s4 1983009808
  %v3853 = vunpack.c.0.s8 %v3852
  %v3854 = vlaneseq
  %v3855 = vshrl.u32 %v3854, 7
  %v3856 = vsub.s32 %v3853, %v3855
  %v3857 = vrot.slane %v3850, %v3856
  %v3858 = vcombine.low %v3322, %v3323
  %v3860 = vunpack.c.l.s4 1983009808
  %v3861 = vunpack.c.0.s8 %v3860
  %v3862 = vlaneseq
  %v3863 = vshrl.u32 %v3862, 7
  %v3864 = vsub.s32 %v3861, %v3863
  %v3865 = vrot.slane %v3858, %v3864
  %v3866 = vcombine.low %v3314, %v3321
  %v3868 = vunpack.c.l.s4 1983009808
  %v3869 = vunpack.c.0.s8 %v3868
  %v3870 = vlaneseq
  %v3871 = vshrl.u32 %v3870, 7
  %v3872 = vsub.s32 %v3869, %v3871
  %v3873 = vrot.slane %v3866, %v3872
  %v3874 = vcombine.low %v3324, %v3325
  %v3876 = vunpack.c.l.s4 1983009808
  %v3877 = vunpack.c.0.s8 %v3876
  %v3878 = vlaneseq
  %v3879 = vshrl.u32 %v3878, 7
  %v3880 = vsub.s32 %v3877, %v3879
  %v3881 = vrot.slane %v3874, %v3880
  %v3882 = vcombine.low %v3857, %v3865
  %v3883 = vcombine.high %v3857, %v3865
  %v3885 = vunpack.c.l.s4 1934713408
  %v3886 = vunpack.c.0.s8 %v3885
  %v3887 = vlaneseq
  %v3888 = vshrl.u32 %v3887, 7
  %v3889 = vsub.s32 %v3886, %v3888
  %v3890 = vrot.slane %v3882, %v3889
  %v3892 = vunpack.c.l.s4 1934713408
  %v3893 = vunpack.c.0.s8 %v3892
  %v3894 = vlaneseq
  %v3895 = vshrl.u32 %v3894, 7
  %v3896 = vsub.s32 %v3893, %v3895
  %v3897 = vrot.slane %v3883, %v3896
  %v3898 = vcombine.low %v3873, %v3881
  %v3899 = vcombine.high %v3873, %v3881
  %v3901 = vunpack.c.l.s4 1934713408
  %v3902 = vunpack.c.0.s8 %v3901
  %v3903 = vlaneseq
  %v3904 = vshrl.u32 %v3903, 7
  %v3905 = vsub.s32 %v3902, %v3904
  %v3906 = vrot.slane %v3898, %v3905
  %v3908 = vunpack.c.l.s4 1934713408
  %v3909 = vunpack.c.0.s8 %v3908
  %v3910 = vlaneseq
  %v3911 = vshrl.u32 %v3910, 7
  %v3912 = vsub.s32 %v3909, %v3911
  %v3913 = vrot.slane %v3899, %v3912
  %v3914 = vcombine.low %v3890, %v3906
  %v3915 = vcombine.high %v3890, %v3906
  %v3916 = vcombine.low %v3897, %v3913
  %v3917 = vcombine.high %v3897, %v3913
  %v3918 = vcombine.low %v3502, %v3509
  %v3920 = vunpack.c.l.s4 1983009808
  %v3921 = vunpack.c.0.s8 %v3920
  %v3922 = vlaneseq
  %v3923 = vshrl.u32 %v3922, 7
  %v3924 = vsub.s32 %v3921, %v3923
  %v3925 = vrot.slane %v3918, %v3924
  %v3926 = vcombine.low %v3526, %v3527
  %v3928 = vunpack.c.l.s4 1983009808
  %v3929 = vunpack.c.0.s8 %v3928
  %v3930 = vlaneseq
  %v3931 = vshrl.u32 %v3930, 7
  %v3932 = vsub.s32 %v3929, %v3931
  %v3933 = vrot.slane %v3926, %v3932
  %v3934 = vcombine.low %v3518, %v3525
  %v3936 = vunpack.c.l.s4 1983009808
  %v3937 = vunpack.c.0.s8 %v3936
  %v3938 = vlaneseq
  %v3939 = vshrl.u32 %v3938, 7
  %v3940 = vsub.s32 %v3937, %v3939
  %v3941 = vrot.slane %v3934, %v3940
  %v3942 = vcombine.low %v3528, %v3529
  %v3944 = vunpack.c.l.s4 1983009808
  %v3945 = vunpack.c.0.s8 %v3944
  %v3946 = vlaneseq
  %v3947 = vshrl.u32 %v3946, 7
  %v3948 = vsub.s32 %v3945, %v3947
  %v3949 = vrot.slane %v3942, %v3948
  %v3950 = vcombine.low %v3925, %v3933
  %v3951 = vcombine.high %v3925, %v3933
  %v3953 = vunpack.c.l.s4 1934713408
  %v3954 = vunpack.c.0.s8 %v3953
  %v3955 = vlaneseq
  %v3956 = vshrl.u32 %v3955, 7
  %v3957 = vsub.s32 %v3954, %v3956
  %v3958 = vrot.slane %v3950, %v3957
  %v3960 = vunpack.c.l.s4 1934713408
  %v3961 = vunpack.c.0.s8 %v3960
  %v3962 = vlaneseq
  %v3963 = vshrl.u32 %v3962, 7
  %v3964 = vsub.s32 %v3961, %v3963
  %v3965 = vrot.slane %v3951, %v3964
  %v3966 = vcombine.low %v3941, %v3949
  %v3967 = vcombine.high %v3941, %v3949
  %v3969 = vunpack.c.l.s4 1934713408
  %v3970 = vunpack.c.0.s8 %v3969
  %v3971 = vlaneseq
  %v3972 = vshrl.u32 %v3971, 7
  %v3973 = vsub.s32 %v3970, %v3972
  %v3974 = vrot.slane %v3966, %v3973
  %v3976 = vunpack.c.l.s4 1934713408
  %v3977 = vunpack.c.0.s8 %v3976
  %v3978 = vlaneseq
  %v3979 = vshrl.u32 %v3978, 7
  %v3980 = vsub.s32 %v3977, %v3979
  %v3981 = vrot.slane %v3967, %v3980
  %v3982 = vcombine.low %v3958, %v3974
  %v3983 = vcombine.high %v3958, %v3974
  %v3984 = vcombine.low %v3965, %v3981
  %v3985 = vcombine.high %v3965, %v3981
  %v3986 = vpack.c.bf16 %v3594, %v3594
  %v3987 = vpack.c.bf16 %v3595, %v3595
  %v3988 = vpack.c.bf16 %v3596, %v3596
  %v3989 = vpack.c.bf16 %v3597, %v3597
  %v3990 = vpack.c.bf16 %v3662, %v3662
  %v3991 = vpack.c.bf16 %v3663, %v3663
  %v3992 = vpack.c.bf16 %v3664, %v3664
  %v3993 = vpack.c.bf16 %v3665, %v3665
  %v3994 = vpack.c.bf16 %v3778, %v3778
  %v3995 = vpack.c.bf16 %v3779, %v3779
  %v3996 = vpack.c.bf16 %v3780, %v3780
  %v3997 = vpack.c.bf16 %v3781, %v3781
  %v3998 = vpack.c.bf16 %v3846, %v3846
  %v3999 = vpack.c.bf16 %v3847, %v3847
  %v4000 = vpack.c.bf16 %v3848, %v3848
  %v4001 = vpack.c.bf16 %v3849, %v3849
  %v4003 = vsel %vm86, %v3986, 0
  %v4006 = vsel %vm86, %v3994, 0
  %4008 = vmatprep.subr.bf16.mxu0 0
  %4009 = vmatpush1.bf16.xpose.msra.mxu0 0
  %4010 = vmatprep.subr.bf16.mxu0 0
  %4011 = vmatpush1.bf16.xpose.msra.mxu0 0
  %4012 = vmatprep.subr.bf16.mxu0 0
  %4013 = vmatpush1.bf16.xpose.msra.mxu0 0
  %4014 = vmatprep.subr.bf16.mxu0 0
  %4015 = vmatpush1.bf16.xpose.msra.mxu0 0
  %4016 = vmatprep.subr.bf16.mxu0 0
  %4017 = vmatpush1.bf16.xpose.msra.mxu0 0
  %4018 = vmatprep.subr.bf16.mxu0 0
  %4019 = vmatpush1.bf16.xpose.msra.mxu0 0
  %4020 = vmatprep.subr.bf16.mxu0 0
  %4021 = vmatpush1.bf16.xpose.msra.mxu0 0
  %4022 = vmatprep.subr.bf16.mxu0 0
  %4023 = vmatpush1.bf16.xpose.msra.mxu0 %v4006
  %4024 = vmatprep.subr.bf16.mxu0 0
  %4025 = vmatpush2.bf16.xpose.msra.mxu0 0
  %4026 = vmatprep.subr.bf16.mxu0 0
  %4027 = vmatpush2.bf16.xpose.msra.mxu0 0
  %4028 = vmatprep.subr.bf16.mxu0 0
  %4029 = vmatpush2.bf16.xpose.msra.mxu0 0
  %4030 = vmatprep.subr.bf16.mxu0 0
  %4031 = vmatpush2.bf16.xpose.msra.mxu0 0
  %4032 = vmatprep.subr.bf16.mxu0 0
  %4033 = vmatpush2.bf16.xpose.msra.mxu0 0
  %4034 = vmatprep.subr.bf16.mxu0 0
  %4035 = vmatpush2.bf16.xpose.msra.mxu0 0
  %4036 = vmatprep.subr.bf16.mxu0 0
  %4037 = vmatpush2.bf16.xpose.msra.mxu0 0
  %4038 = vmatprep.subr.bf16.mxu0 0
  %4039 = vmatpush2.bf16.xpose.msra.mxu0 0
  %4040 = vmatprep.mubr.bf16.mxu0 0
  %4041 = vmatmul.mubr.bf16.gmra.mxu0 %v4003
  %v4042 = vpop.f32.mrf.mxu0
  %v4043 = vadd.f32 0.0, %v4042
  %v4044 = vpop.f32.mrf.mxu0
  %v4045 = vpop.f32.mrf.mxu0
  %v4046 = vpop.f32.mrf.mxu0
  %4047 = vdwg.mxu0
  %v4049 = vsel %vm86, %v3987, 0
  %v4052 = vsel %vm86, %v3995, 0
  %4054 = vmatprep.subr.bf16.mxu0 0
  %4055 = vmatpush1.bf16.xpose.msra.mxu0 0
  %4056 = vmatprep.subr.bf16.mxu0 0
  %4057 = vmatpush1.bf16.xpose.msra.mxu0 0
  %4058 = vmatprep.subr.bf16.mxu0 0
  %4059 = vmatpush1.bf16.xpose.msra.mxu0 0
  %4060 = vmatprep.subr.bf16.mxu0 0
  %4061 = vmatpush1.bf16.xpose.msra.mxu0 0
  %4062 = vmatprep.subr.bf16.mxu0 0
  %4063 = vmatpush1.bf16.xpose.msra.mxu0 0
  %4064 = vmatprep.subr.bf16.mxu0 0
  %4065 = vmatpush1.bf16.xpose.msra.mxu0 0
  %4066 = vmatprep.subr.bf16.mxu0 0
  %4067 = vmatpush1.bf16.xpose.msra.mxu0 0
  %4068 = vmatprep.subr.bf16.mxu0 0
  %4069 = vmatpush1.bf16.xpose.msra.mxu0 %v4052
  %4070 = vmatprep.subr.bf16.mxu0 0
  %4071 = vmatpush2.bf16.xpose.msra.mxu0 0
  %4072 = vmatprep.subr.bf16.mxu0 0
  %4073 = vmatpush2.bf16.xpose.msra.mxu0 0
  %4074 = vmatprep.subr.bf16.mxu0 0
  %4075 = vmatpush2.bf16.xpose.msra.mxu0 0
  %4076 = vmatprep.subr.bf16.mxu0 0
  %4077 = vmatpush2.bf16.xpose.msra.mxu0 0
  %4078 = vmatprep.subr.bf16.mxu0 0
  %4079 = vmatpush2.bf16.xpose.msra.mxu0 0
  %4080 = vmatprep.subr.bf16.mxu0 0
  %4081 = vmatpush2.bf16.xpose.msra.mxu0 0
  %4082 = vmatprep.subr.bf16.mxu0 0
  %4083 = vmatpush2.bf16.xpose.msra.mxu0 0
  %4084 = vmatprep.subr.bf16.mxu0 0
  %4085 = vmatpush2.bf16.xpose.msra.mxu0 0
  %4086 = vmatprep.mubr.bf16.mxu0 0
  %4087 = vmatmul.mubr.bf16.gmra.mxu0 %v4049
  %v4088 = vpop.f32.mrf.mxu0
  %v4089 = vadd.f32 0.0, %v4088
  %v4090 = vpop.f32.mrf.mxu0
  %v4091 = vpop.f32.mrf.mxu0
  %v4092 = vpop.f32.mrf.mxu0
  %4093 = vdwg.mxu0
  %v4095 = vsel %vm86, %v3988, 0
  %v4098 = vsel %vm86, %v3996, 0
  %4100 = vmatprep.subr.bf16.mxu0 0
  %4101 = vmatpush1.bf16.xpose.msra.mxu0 0
  %4102 = vmatprep.subr.bf16.mxu0 0
  %4103 = vmatpush1.bf16.xpose.msra.mxu0 0
  %4104 = vmatprep.subr.bf16.mxu0 0
  %4105 = vmatpush1.bf16.xpose.msra.mxu0 0
  %4106 = vmatprep.subr.bf16.mxu0 0
  %4107 = vmatpush1.bf16.xpose.msra.mxu0 0
  %4108 = vmatprep.subr.bf16.mxu0 0
  %4109 = vmatpush1.bf16.xpose.msra.mxu0 0
  %4110 = vmatprep.subr.bf16.mxu0 0
  %4111 = vmatpush1.bf16.xpose.msra.mxu0 0
  %4112 = vmatprep.subr.bf16.mxu0 0
  %4113 = vmatpush1.bf16.xpose.msra.mxu0 0
  %4114 = vmatprep.subr.bf16.mxu0 0
  %4115 = vmatpush1.bf16.xpose.msra.mxu0 %v4098
  %4116 = vmatprep.subr.bf16.mxu0 0
  %4117 = vmatpush2.bf16.xpose.msra.mxu0 0
  %4118 = vmatprep.subr.bf16.mxu0 0
  %4119 = vmatpush2.bf16.xpose.msra.mxu0 0
  %4120 = vmatprep.subr.bf16.mxu0 0
  %4121 = vmatpush2.bf16.xpose.msra.mxu0 0
  %4122 = vmatprep.subr.bf16.mxu0 0
  %4123 = vmatpush2.bf16.xpose.msra.mxu0 0
  %4124 = vmatprep.subr.bf16.mxu0 0
  %4125 = vmatpush2.bf16.xpose.msra.mxu0 0
  %4126 = vmatprep.subr.bf16.mxu0 0
  %4127 = vmatpush2.bf16.xpose.msra.mxu0 0
  %4128 = vmatprep.subr.bf16.mxu0 0
  %4129 = vmatpush2.bf16.xpose.msra.mxu0 0
  %4130 = vmatprep.subr.bf16.mxu0 0
  %4131 = vmatpush2.bf16.xpose.msra.mxu0 0
  %4132 = vmatprep.mubr.bf16.mxu0 0
  %4133 = vmatmul.mubr.bf16.gmra.mxu0 %v4095
  %v4134 = vpop.f32.mrf.mxu0
  %v4135 = vadd.f32 0.0, %v4134
  %v4136 = vpop.f32.mrf.mxu0
  %v4137 = vpop.f32.mrf.mxu0
  %v4138 = vpop.f32.mrf.mxu0
  %4139 = vdwg.mxu0
  %v4141 = vsel %vm86, %v3989, 0
  %v4144 = vsel %vm86, %v3997, 0
  %4146 = vmatprep.subr.bf16.mxu0 0
  %4147 = vmatpush1.bf16.xpose.msra.mxu0 0
  %4148 = vmatprep.subr.bf16.mxu0 0
  %4149 = vmatpush1.bf16.xpose.msra.mxu0 0
  %4150 = vmatprep.subr.bf16.mxu0 0
  %4151 = vmatpush1.bf16.xpose.msra.mxu0 0
  %4152 = vmatprep.subr.bf16.mxu0 0
  %4153 = vmatpush1.bf16.xpose.msra.mxu0 0
  %4154 = vmatprep.subr.bf16.mxu0 0
  %4155 = vmatpush1.bf16.xpose.msra.mxu0 0
  %4156 = vmatprep.subr.bf16.mxu0 0
  %4157 = vmatpush1.bf16.xpose.msra.mxu0 0
  %4158 = vmatprep.subr.bf16.mxu0 0
  %4159 = vmatpush1.bf16.xpose.msra.mxu0 0
  %4160 = vmatprep.subr.bf16.mxu0 0
  %4161 = vmatpush1.bf16.xpose.msra.mxu0 %v4144
  %4162 = vmatprep.subr.bf16.mxu0 0
  %4163 = vmatpush2.bf16.xpose.msra.mxu0 0
  %4164 = vmatprep.subr.bf16.mxu0 0
  %4165 = vmatpush2.bf16.xpose.msra.mxu0 0
  %4166 = vmatprep.subr.bf16.mxu0 0
  %4167 = vmatpush2.bf16.xpose.msra.mxu0 0
  %4168 = vmatprep.subr.bf16.mxu0 0
  %4169 = vmatpush2.bf16.xpose.msra.mxu0 0
  %4170 = vmatprep.subr.bf16.mxu0 0
  %4171 = vmatpush2.bf16.xpose.msra.mxu0 0
  %4172 = vmatprep.subr.bf16.mxu0 0
  %4173 = vmatpush2.bf16.xpose.msra.mxu0 0
  %4174 = vmatprep.subr.bf16.mxu0 0
  %4175 = vmatpush2.bf16.xpose.msra.mxu0 0
  %4176 = vmatprep.subr.bf16.mxu0 0
  %4177 = vmatpush2.bf16.xpose.msra.mxu0 0
  %4178 = vmatprep.mubr.bf16.mxu0 0
  %4179 = vmatmul.mubr.bf16.gmra.mxu0 %v4141
  %v4180 = vpop.f32.mrf.mxu0
  %v4181 = vadd.f32 0.0, %v4180
  %v4182 = vpop.f32.mrf.mxu0
  %v4183 = vpop.f32.mrf.mxu0
  %v4184 = vpop.f32.mrf.mxu0
  %4185 = vdwg.mxu0
  %v4187 = vsel %vm86, %v3990, 0
  %v4190 = vsel %vm86, %v3998, 0
  %4192 = vmatprep.subr.bf16.mxu0 0
  %4193 = vmatpush1.bf16.xpose.msra.mxu0 0
  %4194 = vmatprep.subr.bf16.mxu0 0
  %4195 = vmatpush1.bf16.xpose.msra.mxu0 0
  %4196 = vmatprep.subr.bf16.mxu0 0
  %4197 = vmatpush1.bf16.xpose.msra.mxu0 0
  %4198 = vmatprep.subr.bf16.mxu0 0
  %4199 = vmatpush1.bf16.xpose.msra.mxu0 0
  %4200 = vmatprep.subr.bf16.mxu0 0
  %4201 = vmatpush1.bf16.xpose.msra.mxu0 0
  %4202 = vmatprep.subr.bf16.mxu0 0
  %4203 = vmatpush1.bf16.xpose.msra.mxu0 0
  %4204 = vmatprep.subr.bf16.mxu0 0
  %4205 = vmatpush1.bf16.xpose.msra.mxu0 0
  %4206 = vmatprep.subr.bf16.mxu0 0
  %4207 = vmatpush1.bf16.xpose.msra.mxu0 %v4190
  %4208 = vmatprep.subr.bf16.mxu0 0
  %4209 = vmatpush2.bf16.xpose.msra.mxu0 0
  %4210 = vmatprep.subr.bf16.mxu0 0
  %4211 = vmatpush2.bf16.xpose.msra.mxu0 0
  %4212 = vmatprep.subr.bf16.mxu0 0
  %4213 = vmatpush2.bf16.xpose.msra.mxu0 0
  %4214 = vmatprep.subr.bf16.mxu0 0
  %4215 = vmatpush2.bf16.xpose.msra.mxu0 0
  %4216 = vmatprep.subr.bf16.mxu0 0
  %4217 = vmatpush2.bf16.xpose.msra.mxu0 0
  %4218 = vmatprep.subr.bf16.mxu0 0
  %4219 = vmatpush2.bf16.xpose.msra.mxu0 0
  %4220 = vmatprep.subr.bf16.mxu0 0
  %4221 = vmatpush2.bf16.xpose.msra.mxu0 0
  %4222 = vmatprep.subr.bf16.mxu0 0
  %4223 = vmatpush2.bf16.xpose.msra.mxu0 0
  %4224 = vmatprep.mubr.bf16.mxu0 0
  %4225 = vmatmul.mubr.bf16.gmra.mxu0 %v4187
  %v4226 = vpop.f32.mrf.mxu0
  %v4227 = vadd.f32 0.0, %v4226
  %v4228 = vpop.f32.mrf.mxu0
  %v4229 = vpop.f32.mrf.mxu0
  %v4230 = vpop.f32.mrf.mxu0
  %4231 = vdwg.mxu0
  %v4233 = vsel %vm86, %v3991, 0
  %v4236 = vsel %vm86, %v3999, 0
  %4238 = vmatprep.subr.bf16.mxu0 0
  %4239 = vmatpush1.bf16.xpose.msra.mxu0 0
  %4240 = vmatprep.subr.bf16.mxu0 0
  %4241 = vmatpush1.bf16.xpose.msra.mxu0 0
  %4242 = vmatprep.subr.bf16.mxu0 0
  %4243 = vmatpush1.bf16.xpose.msra.mxu0 0
  %4244 = vmatprep.subr.bf16.mxu0 0
  %4245 = vmatpush1.bf16.xpose.msra.mxu0 0
  %4246 = vmatprep.subr.bf16.mxu0 0
  %4247 = vmatpush1.bf16.xpose.msra.mxu0 0
  %4248 = vmatprep.subr.bf16.mxu0 0
  %4249 = vmatpush1.bf16.xpose.msra.mxu0 0
  %4250 = vmatprep.subr.bf16.mxu0 0
  %4251 = vmatpush1.bf16.xpose.msra.mxu0 0
  %4252 = vmatprep.subr.bf16.mxu0 0
  %4253 = vmatpush1.bf16.xpose.msra.mxu0 %v4236
  %4254 = vmatprep.subr.bf16.mxu0 0
  %4255 = vmatpush2.bf16.xpose.msra.mxu0 0
  %4256 = vmatprep.subr.bf16.mxu0 0
  %4257 = vmatpush2.bf16.xpose.msra.mxu0 0
  %4258 = vmatprep.subr.bf16.mxu0 0
  %4259 = vmatpush2.bf16.xpose.msra.mxu0 0
  %4260 = vmatprep.subr.bf16.mxu0 0
  %4261 = vmatpush2.bf16.xpose.msra.mxu0 0
  %4262 = vmatprep.subr.bf16.mxu0 0
  %4263 = vmatpush2.bf16.xpose.msra.mxu0 0
  %4264 = vmatprep.subr.bf16.mxu0 0
  %4265 = vmatpush2.bf16.xpose.msra.mxu0 0
  %4266 = vmatprep.subr.bf16.mxu0 0
  %4267 = vmatpush2.bf16.xpose.msra.mxu0 0
  %4268 = vmatprep.subr.bf16.mxu0 0
  %4269 = vmatpush2.bf16.xpose.msra.mxu0 0
  %4270 = vmatprep.mubr.bf16.mxu0 0
  %4271 = vmatmul.mubr.bf16.gmra.mxu0 %v4233
  %v4272 = vpop.f32.mrf.mxu0
  %v4273 = vadd.f32 0.0, %v4272
  %v4274 = vpop.f32.mrf.mxu0
  %v4275 = vpop.f32.mrf.mxu0
  %v4276 = vpop.f32.mrf.mxu0
  %4277 = vdwg.mxu0
  %v4279 = vsel %vm86, %v3992, 0
  %v4282 = vsel %vm86, %v4000, 0
  %4284 = vmatprep.subr.bf16.mxu0 0
  %4285 = vmatpush1.bf16.xpose.msra.mxu0 0
  %4286 = vmatprep.subr.bf16.mxu0 0
  %4287 = vmatpush1.bf16.xpose.msra.mxu0 0
  %4288 = vmatprep.subr.bf16.mxu0 0
  %4289 = vmatpush1.bf16.xpose.msra.mxu0 0
  %4290 = vmatprep.subr.bf16.mxu0 0
  %4291 = vmatpush1.bf16.xpose.msra.mxu0 0
  %4292 = vmatprep.subr.bf16.mxu0 0
  %4293 = vmatpush1.bf16.xpose.msra.mxu0 0
  %4294 = vmatprep.subr.bf16.mxu0 0
  %4295 = vmatpush1.bf16.xpose.msra.mxu0 0
  %4296 = vmatprep.subr.bf16.mxu0 0
  %4297 = vmatpush1.bf16.xpose.msra.mxu0 0
  %4298 = vmatprep.subr.bf16.mxu0 0
  %4299 = vmatpush1.bf16.xpose.msra.mxu0 %v4282
  %4300 = vmatprep.subr.bf16.mxu0 0
  %4301 = vmatpush2.bf16.xpose.msra.mxu0 0
  %4302 = vmatprep.subr.bf16.mxu0 0
  %4303 = vmatpush2.bf16.xpose.msra.mxu0 0
  %4304 = vmatprep.subr.bf16.mxu0 0
  %4305 = vmatpush2.bf16.xpose.msra.mxu0 0
  %4306 = vmatprep.subr.bf16.mxu0 0
  %4307 = vmatpush2.bf16.xpose.msra.mxu0 0
  %4308 = vmatprep.subr.bf16.mxu0 0
  %4309 = vmatpush2.bf16.xpose.msra.mxu0 0
  %4310 = vmatprep.subr.bf16.mxu0 0
  %4311 = vmatpush2.bf16.xpose.msra.mxu0 0
  %4312 = vmatprep.subr.bf16.mxu0 0
  %4313 = vmatpush2.bf16.xpose.msra.mxu0 0
  %4314 = vmatprep.subr.bf16.mxu0 0
  %4315 = vmatpush2.bf16.xpose.msra.mxu0 0
  %4316 = vmatprep.mubr.bf16.mxu0 0
  %4317 = vmatmul.mubr.bf16.gmra.mxu0 %v4279
  %v4318 = vpop.f32.mrf.mxu0
  %v4319 = vadd.f32 0.0, %v4318
  %v4320 = vpop.f32.mrf.mxu0
  %v4321 = vpop.f32.mrf.mxu0
  %v4322 = vpop.f32.mrf.mxu0
  %4323 = vdwg.mxu0
  %v4325 = vsel %vm86, %v3993, 0
  %v4328 = vsel %vm86, %v4001, 0
  %4330 = vmatprep.subr.bf16.mxu0 0
  %4331 = vmatpush1.bf16.xpose.msra.mxu0 0
  %4332 = vmatprep.subr.bf16.mxu0 0
  %4333 = vmatpush1.bf16.xpose.msra.mxu0 0
  %4334 = vmatprep.subr.bf16.mxu0 0
  %4335 = vmatpush1.bf16.xpose.msra.mxu0 0
  %4336 = vmatprep.subr.bf16.mxu0 0
  %4337 = vmatpush1.bf16.xpose.msra.mxu0 0
  %4338 = vmatprep.subr.bf16.mxu0 0
  %4339 = vmatpush1.bf16.xpose.msra.mxu0 0
  %4340 = vmatprep.subr.bf16.mxu0 0
  %4341 = vmatpush1.bf16.xpose.msra.mxu0 0
  %4342 = vmatprep.subr.bf16.mxu0 0
  %4343 = vmatpush1.bf16.xpose.msra.mxu0 0
  %4344 = vmatprep.subr.bf16.mxu0 0
  %4345 = vmatpush1.bf16.xpose.msra.mxu0 %v4328
  %4346 = vmatprep.subr.bf16.mxu0 0
  %4347 = vmatpush2.bf16.xpose.msra.mxu0 0
  %4348 = vmatprep.subr.bf16.mxu0 0
  %4349 = vmatpush2.bf16.xpose.msra.mxu0 0
  %4350 = vmatprep.subr.bf16.mxu0 0
  %4351 = vmatpush2.bf16.xpose.msra.mxu0 0
  %4352 = vmatprep.subr.bf16.mxu0 0
  %4353 = vmatpush2.bf16.xpose.msra.mxu0 0
  %4354 = vmatprep.subr.bf16.mxu0 0
  %4355 = vmatpush2.bf16.xpose.msra.mxu0 0
  %4356 = vmatprep.subr.bf16.mxu0 0
  %4357 = vmatpush2.bf16.xpose.msra.mxu0 0
  %4358 = vmatprep.subr.bf16.mxu0 0
  %4359 = vmatpush2.bf16.xpose.msra.mxu0 0
  %4360 = vmatprep.subr.bf16.mxu0 0
  %4361 = vmatpush2.bf16.xpose.msra.mxu0 0
  %4362 = vmatprep.mubr.bf16.mxu0 0
  %4363 = vmatmul.mubr.bf16.gmra.mxu0 %v4325
  %v4364 = vpop.f32.mrf.mxu0
  %v4365 = vadd.f32 0.0, %v4364
  %v4366 = vpop.f32.mrf.mxu0
  %v4367 = vpop.f32.mrf.mxu0
  %v4368 = vpop.f32.mrf.mxu0
  %4369 = vdwg.mxu0
  %v4370 = vmul.f32 %v4043, 0.35355338
  %v4371 = vmul.f32 %v4089, 0.35355338
  %v4372 = vmul.f32 %v4135, 0.35355338
  %v4373 = vmul.f32 %v4181, 0.35355338
  %v4374 = vmul.f32 %v4227, 0.35355338
  %v4375 = vmul.f32 %v4273, 0.35355338
  %v4376 = vmul.f32 %v4319, 0.35355338
  %v4377 = vmul.f32 %v4365, 0.35355338
  %v4378 = vadd.f32 %v4370, %v1863
  %v4379 = vadd.f32 %v4371, %v1863
  %v4380 = vadd.f32 %v4372, %v1863
  %v4381 = vadd.f32 %v4373, %v1863
  %v4382 = vadd.f32 %v4374, %v1867
  %v4383 = vadd.f32 %v4375, %v1867
  %v4384 = vadd.f32 %v4376, %v1867
  %v4385 = vadd.f32 %v4377, %v1867
  %v4386 = vsel %vm86, %v4378, -inf
  %4387 = vmax.xlane.f32.xlu0 %v4386
  %v4388 = vpop.xlane.xlu0 %4387
  %v4389 = vsel %vm86, %v4379, -inf
  %4390 = vmax.xlane.f32.xlu0 %v4389
  %v4391 = vpop.xlane.xlu0 %4390
  %v4392 = vsel %vm86, %v4380, -inf
  %4393 = vmax.xlane.f32.xlu0 %v4392
  %v4394 = vpop.xlane.xlu0 %4393
  %v4395 = vsel %vm86, %v4381, -inf
  %4396 = vmax.xlane.f32.xlu0 %v4395
  %v4397 = vpop.xlane.xlu0 %4396
  %v4398 = vsel %vm86, %v4382, -inf
  %4399 = vmax.xlane.f32.xlu0 %v4398
  %v4400 = vpop.xlane.xlu0 %4399
  %v4401 = vsel %vm86, %v4383, -inf
  %4402 = vmax.xlane.f32.xlu0 %v4401
  %v4403 = vpop.xlane.xlu0 %4402
  %v4404 = vsel %vm86, %v4384, -inf
  %4405 = vmax.xlane.f32.xlu0 %v4404
  %v4406 = vpop.xlane.xlu0 %4405
  %v4407 = vsel %vm86, %v4385, -inf
  %4408 = vmax.xlane.f32.xlu0 %v4407
  %v4409 = vpop.xlane.xlu0 %4408
  %v4410 = vsub.f32 %v4378, %v4388
  %v4411 = vsub.f32 %v4379, %v4391
  %v4412 = vsub.f32 %v4380, %v4394
  %v4413 = vsub.f32 %v4381, %v4397
  %v4414 = vsub.f32 %v4382, %v4400
  %v4415 = vsub.f32 %v4383, %v4403
  %v4416 = vsub.f32 %v4384, %v4406
  %v4417 = vsub.f32 %v4385, %v4409
  %v4418 = vmul.f32 %v4410, 1.442695
  %v4419 = vpow.pop %v4418
  %v4420 = vmul.f32 %v4411, 1.442695
  %v4421 = vpow.pop %v4420
  %v4422 = vmul.f32 %v4412, 1.442695
  %v4423 = vpow.pop %v4422
  %v4424 = vmul.f32 %v4413, 1.442695
  %v4425 = vpow.pop %v4424
  %v4426 = vmul.f32 %v4414, 1.442695
  %v4427 = vpow.pop %v4426
  %v4428 = vmul.f32 %v4415, 1.442695
  %v4429 = vpow.pop %v4428
  %v4430 = vmul.f32 %v4416, 1.442695
  %v4431 = vpow.pop %v4430
  %v4432 = vmul.f32 %v4417, 1.442695
  %v4433 = vpow.pop %v4432
  %v4434 = vsel %vm86, %v4419, 0.0
  %4435 = vadd.xlane.f32.xlu0 %v4434
  %v4436 = vpop.xlane.xlu0 %4435
  %v4437 = vsel %vm86, %v4421, 0.0
  %4438 = vadd.xlane.f32.xlu0 %v4437
  %v4439 = vpop.xlane.xlu0 %4438
  %v4440 = vsel %vm86, %v4423, 0.0
  %4441 = vadd.xlane.f32.xlu0 %v4440
  %v4442 = vpop.xlane.xlu0 %4441
  %v4443 = vsel %vm86, %v4425, 0.0
  %4444 = vadd.xlane.f32.xlu0 %v4443
  %v4445 = vpop.xlane.xlu0 %4444
  %v4446 = vsel %vm86, %v4427, 0.0
  %4447 = vadd.xlane.f32.xlu0 %v4446
  %v4448 = vpop.xlane.xlu0 %4447
  %v4449 = vsel %vm86, %v4429, 0.0
  %4450 = vadd.xlane.f32.xlu0 %v4449
  %v4451 = vpop.xlane.xlu0 %4450
  %v4452 = vsel %vm86, %v4431, 0.0
  %4453 = vadd.xlane.f32.xlu0 %v4452
  %v4454 = vpop.xlane.xlu0 %4453
  %v4455 = vsel %vm86, %v4433, 0.0
  %4456 = vadd.xlane.f32.xlu0 %v4455
  %v4457 = vpop.xlane.xlu0 %4456
  %v4458 = vrcp.pop %v4436
  %v4459 = vrcp.pop %v4439
  %v4460 = vrcp.pop %v4442
  %v4461 = vrcp.pop %v4445
  %v4462 = vrcp.pop %v4448
  %v4463 = vrcp.pop %v4451
  %v4464 = vrcp.pop %v4454
  %v4465 = vrcp.pop %v4457
  %v4466 = vmul.f32 %v4419, %v4458
  %v4467 = vmul.f32 %v4421, %v4459
  %v4468 = vmul.f32 %v4423, %v4460
  %v4469 = vmul.f32 %v4425, %v4461
  %v4470 = vmul.f32 %v4427, %v4462
  %v4471 = vmul.f32 %v4429, %v4463
  %v4472 = vmul.f32 %v4431, %v4464
  %v4473 = vmul.f32 %v4433, %v4465
  %v4474 = vpack.c.bf16 %v4466, %v4466
  %v4475 = vpack.c.bf16 %v4467, %v4467
  %v4476 = vpack.c.bf16 %v4468, %v4468
  %v4477 = vpack.c.bf16 %v4469, %v4469
  %v4478 = vpack.c.bf16 %v4470, %v4470
  %v4479 = vpack.c.bf16 %v4471, %v4471
  %v4480 = vpack.c.bf16 %v4472, %v4472
  %v4481 = vpack.c.bf16 %v4473, %v4473
  %v4482 = vpack.c.bf16 %v3914, %v3914
  %v4483 = vpack.c.bf16 %v3915, %v3915
  %v4484 = vpack.c.bf16 %v3916, %v3916
  %v4485 = vpack.c.bf16 %v3917, %v3917
  %v4486 = vpack.c.bf16 %v3982, %v3982
  %v4487 = vpack.c.bf16 %v3983, %v3983
  %v4488 = vpack.c.bf16 %v3984, %v3984
  %v4489 = vpack.c.bf16 %v3985, %v3985
  %v4491 = vsel %vm86, %v4474, 0
  %v4494 = vsel %vm307, %v4482, 0
  %4496 = vmatprep.subr.bf16.mxu0 0
  %4497 = vmatpush1.bf16.msra.mxu0 0
  %4498 = vmatprep.subr.bf16.mxu0 0
  %4499 = vmatpush1.bf16.msra.mxu0 0
  %4500 = vmatprep.subr.bf16.mxu0 0
  %4501 = vmatpush1.bf16.msra.mxu0 0
  %4502 = vmatprep.subr.bf16.mxu0 0
  %4503 = vmatpush1.bf16.msra.mxu0 0
  %4504 = vmatprep.subr.bf16.mxu0 0
  %4505 = vmatpush1.bf16.msra.mxu0 0
  %4506 = vmatprep.subr.bf16.mxu0 0
  %4507 = vmatpush1.bf16.msra.mxu0 0
  %4508 = vmatprep.subr.bf16.mxu0 0
  %4509 = vmatpush1.bf16.msra.mxu0 0
  %4510 = vmatprep.subr.bf16.mxu0 0
  %4511 = vmatpush1.bf16.msra.mxu0 %v4494
  %4512 = vmatprep.subr.bf16.mxu0 0
  %4513 = vmatpush2.bf16.msra.mxu0 0
  %4514 = vmatprep.subr.bf16.mxu0 0
  %4515 = vmatpush2.bf16.msra.mxu0 0
  %4516 = vmatprep.subr.bf16.mxu0 0
  %4517 = vmatpush2.bf16.msra.mxu0 0
  %4518 = vmatprep.subr.bf16.mxu0 0
  %4519 = vmatpush2.bf16.msra.mxu0 0
  %4520 = vmatprep.subr.bf16.mxu0 0
  %4521 = vmatpush2.bf16.msra.mxu0 0
  %4522 = vmatprep.subr.bf16.mxu0 0
  %4523 = vmatpush2.bf16.msra.mxu0 0
  %4524 = vmatprep.subr.bf16.mxu0 0
  %4525 = vmatpush2.bf16.msra.mxu0 0
  %4526 = vmatprep.subr.bf16.mxu0 0
  %4527 = vmatpush2.bf16.msra.mxu0 0
  %4528 = vmatprep.mubr.bf16.mxu0 0
  %4529 = vmatmul.mubr.bf16.gmra.mxu0 %v4491
  %v4530 = vpop.f32.mrf.mxu0
  %v4531 = vadd.f32 0.0, %v4530
  %v4532 = vpop.f32.mrf.mxu0
  %v4533 = vpop.f32.mrf.mxu0
  %v4534 = vpop.f32.mrf.mxu0
  %4535 = vdwg.mxu0
  %v4537 = vsel %vm86, %v4475, 0
  %v4540 = vsel %vm307, %v4483, 0
  %4542 = vmatprep.subr.bf16.mxu0 0
  %4543 = vmatpush1.bf16.msra.mxu0 0
  %4544 = vmatprep.subr.bf16.mxu0 0
  %4545 = vmatpush1.bf16.msra.mxu0 0
  %4546 = vmatprep.subr.bf16.mxu0 0
  %4547 = vmatpush1.bf16.msra.mxu0 0
  %4548 = vmatprep.subr.bf16.mxu0 0
  %4549 = vmatpush1.bf16.msra.mxu0 0
  %4550 = vmatprep.subr.bf16.mxu0 0
  %4551 = vmatpush1.bf16.msra.mxu0 0
  %4552 = vmatprep.subr.bf16.mxu0 0
  %4553 = vmatpush1.bf16.msra.mxu0 0
  %4554 = vmatprep.subr.bf16.mxu0 0
  %4555 = vmatpush1.bf16.msra.mxu0 0
  %4556 = vmatprep.subr.bf16.mxu0 0
  %4557 = vmatpush1.bf16.msra.mxu0 %v4540
  %4558 = vmatprep.subr.bf16.mxu0 0
  %4559 = vmatpush2.bf16.msra.mxu0 0
  %4560 = vmatprep.subr.bf16.mxu0 0
  %4561 = vmatpush2.bf16.msra.mxu0 0
  %4562 = vmatprep.subr.bf16.mxu0 0
  %4563 = vmatpush2.bf16.msra.mxu0 0
  %4564 = vmatprep.subr.bf16.mxu0 0
  %4565 = vmatpush2.bf16.msra.mxu0 0
  %4566 = vmatprep.subr.bf16.mxu0 0
  %4567 = vmatpush2.bf16.msra.mxu0 0
  %4568 = vmatprep.subr.bf16.mxu0 0
  %4569 = vmatpush2.bf16.msra.mxu0 0
  %4570 = vmatprep.subr.bf16.mxu0 0
  %4571 = vmatpush2.bf16.msra.mxu0 0
  %4572 = vmatprep.subr.bf16.mxu0 0
  %4573 = vmatpush2.bf16.msra.mxu0 0
  %4574 = vmatprep.mubr.bf16.mxu0 0
  %4575 = vmatmul.mubr.bf16.gmra.mxu0 %v4537
  %v4576 = vpop.f32.mrf.mxu0
  %v4577 = vadd.f32 0.0, %v4576
  %v4578 = vpop.f32.mrf.mxu0
  %v4579 = vpop.f32.mrf.mxu0
  %v4580 = vpop.f32.mrf.mxu0
  %4581 = vdwg.mxu0
  %v4583 = vsel %vm86, %v4476, 0
  %v4586 = vsel %vm307, %v4484, 0
  %4588 = vmatprep.subr.bf16.mxu0 0
  %4589 = vmatpush1.bf16.msra.mxu0 0
  %4590 = vmatprep.subr.bf16.mxu0 0
  %4591 = vmatpush1.bf16.msra.mxu0 0
  %4592 = vmatprep.subr.bf16.mxu0 0
  %4593 = vmatpush1.bf16.msra.mxu0 0
  %4594 = vmatprep.subr.bf16.mxu0 0
  %4595 = vmatpush1.bf16.msra.mxu0 0
  %4596 = vmatprep.subr.bf16.mxu0 0
  %4597 = vmatpush1.bf16.msra.mxu0 0
  %4598 = vmatprep.subr.bf16.mxu0 0
  %4599 = vmatpush1.bf16.msra.mxu0 0
  %4600 = vmatprep.subr.bf16.mxu0 0
  %4601 = vmatpush1.bf16.msra.mxu0 0
  %4602 = vmatprep.subr.bf16.mxu0 0
  %4603 = vmatpush1.bf16.msra.mxu0 %v4586
  %4604 = vmatprep.subr.bf16.mxu0 0
  %4605 = vmatpush2.bf16.msra.mxu0 0
  %4606 = vmatprep.subr.bf16.mxu0 0
  %4607 = vmatpush2.bf16.msra.mxu0 0
  %4608 = vmatprep.subr.bf16.mxu0 0
  %4609 = vmatpush2.bf16.msra.mxu0 0
  %4610 = vmatprep.subr.bf16.mxu0 0
  %4611 = vmatpush2.bf16.msra.mxu0 0
  %4612 = vmatprep.subr.bf16.mxu0 0
  %4613 = vmatpush2.bf16.msra.mxu0 0
  %4614 = vmatprep.subr.bf16.mxu0 0
  %4615 = vmatpush2.bf16.msra.mxu0 0
  %4616 = vmatprep.subr.bf16.mxu0 0
  %4617 = vmatpush2.bf16.msra.mxu0 0
  %4618 = vmatprep.subr.bf16.mxu0 0
  %4619 = vmatpush2.bf16.msra.mxu0 0
  %4620 = vmatprep.mubr.bf16.mxu0 0
  %4621 = vmatmul.mubr.bf16.gmra.mxu0 %v4583
  %v4622 = vpop.f32.mrf.mxu0
  %v4623 = vadd.f32 0.0, %v4622
  %v4624 = vpop.f32.mrf.mxu0
  %v4625 = vpop.f32.mrf.mxu0
  %v4626 = vpop.f32.mrf.mxu0
  %4627 = vdwg.mxu0
  %v4629 = vsel %vm86, %v4477, 0
  %v4632 = vsel %vm307, %v4485, 0
  %4634 = vmatprep.subr.bf16.mxu0 0
  %4635 = vmatpush1.bf16.msra.mxu0 0
  %4636 = vmatprep.subr.bf16.mxu0 0
  %4637 = vmatpush1.bf16.msra.mxu0 0
  %4638 = vmatprep.subr.bf16.mxu0 0
  %4639 = vmatpush1.bf16.msra.mxu0 0
  %4640 = vmatprep.subr.bf16.mxu0 0
  %4641 = vmatpush1.bf16.msra.mxu0 0
  %4642 = vmatprep.subr.bf16.mxu0 0
  %4643 = vmatpush1.bf16.msra.mxu0 0
  %4644 = vmatprep.subr.bf16.mxu0 0
  %4645 = vmatpush1.bf16.msra.mxu0 0
  %4646 = vmatprep.subr.bf16.mxu0 0
  %4647 = vmatpush1.bf16.msra.mxu0 0
  %4648 = vmatprep.subr.bf16.mxu0 0
  %4649 = vmatpush1.bf16.msra.mxu0 %v4632
  %4650 = vmatprep.subr.bf16.mxu0 0
  %4651 = vmatpush2.bf16.msra.mxu0 0
  %4652 = vmatprep.subr.bf16.mxu0 0
  %4653 = vmatpush2.bf16.msra.mxu0 0
  %4654 = vmatprep.subr.bf16.mxu0 0
  %4655 = vmatpush2.bf16.msra.mxu0 0
  %4656 = vmatprep.subr.bf16.mxu0 0
  %4657 = vmatpush2.bf16.msra.mxu0 0
  %4658 = vmatprep.subr.bf16.mxu0 0
  %4659 = vmatpush2.bf16.msra.mxu0 0
  %4660 = vmatprep.subr.bf16.mxu0 0
  %4661 = vmatpush2.bf16.msra.mxu0 0
  %4662 = vmatprep.subr.bf16.mxu0 0
  %4663 = vmatpush2.bf16.msra.mxu0 0
  %4664 = vmatprep.subr.bf16.mxu0 0
  %4665 = vmatpush2.bf16.msra.mxu0 0
  %4666 = vmatprep.mubr.bf16.mxu0 0
  %4667 = vmatmul.mubr.bf16.gmra.mxu0 %v4629
  %v4668 = vpop.f32.mrf.mxu0
  %v4669 = vadd.f32 0.0, %v4668
  %v4670 = vpop.f32.mrf.mxu0
  %v4671 = vpop.f32.mrf.mxu0
  %v4672 = vpop.f32.mrf.mxu0
  %4673 = vdwg.mxu0
  %v4675 = vsel %vm86, %v4478, 0
  %v4678 = vsel %vm307, %v4486, 0
  %4680 = vmatprep.subr.bf16.mxu0 0
  %4681 = vmatpush1.bf16.msra.mxu0 0
  %4682 = vmatprep.subr.bf16.mxu0 0
  %4683 = vmatpush1.bf16.msra.mxu0 0
  %4684 = vmatprep.subr.bf16.mxu0 0
  %4685 = vmatpush1.bf16.msra.mxu0 0
  %4686 = vmatprep.subr.bf16.mxu0 0
  %4687 = vmatpush1.bf16.msra.mxu0 0
  %4688 = vmatprep.subr.bf16.mxu0 0
  %4689 = vmatpush1.bf16.msra.mxu0 0
  %4690 = vmatprep.subr.bf16.mxu0 0
  %4691 = vmatpush1.bf16.msra.mxu0 0
  %4692 = vmatprep.subr.bf16.mxu0 0
  %4693 = vmatpush1.bf16.msra.mxu0 0
  %4694 = vmatprep.subr.bf16.mxu0 0
  %4695 = vmatpush1.bf16.msra.mxu0 %v4678
  %4696 = vmatprep.subr.bf16.mxu0 0
  %4697 = vmatpush2.bf16.msra.mxu0 0
  %4698 = vmatprep.subr.bf16.mxu0 0
  %4699 = vmatpush2.bf16.msra.mxu0 0
  %4700 = vmatprep.subr.bf16.mxu0 0
  %4701 = vmatpush2.bf16.msra.mxu0 0
  %4702 = vmatprep.subr.bf16.mxu0 0
  %4703 = vmatpush2.bf16.msra.mxu0 0
  %4704 = vmatprep.subr.bf16.mxu0 0
  %4705 = vmatpush2.bf16.msra.mxu0 0
  %4706 = vmatprep.subr.bf16.mxu0 0
  %4707 = vmatpush2.bf16.msra.mxu0 0
  %4708 = vmatprep.subr.bf16.mxu0 0
  %4709 = vmatpush2.bf16.msra.mxu0 0
  %4710 = vmatprep.subr.bf16.mxu0 0
  %4711 = vmatpush2.bf16.msra.mxu0 0
  %4712 = vmatprep.mubr.bf16.mxu0 0
  %4713 = vmatmul.mubr.bf16.gmra.mxu0 %v4675
  %v4714 = vpop.f32.mrf.mxu0
  %v4715 = vadd.f32 0.0, %v4714
  %v4716 = vpop.f32.mrf.mxu0
  %v4717 = vpop.f32.mrf.mxu0
  %v4718 = vpop.f32.mrf.mxu0
  %4719 = vdwg.mxu0
  %v4721 = vsel %vm86, %v4479, 0
  %v4724 = vsel %vm307, %v4487, 0
  %4726 = vmatprep.subr.bf16.mxu0 0
  %4727 = vmatpush1.bf16.msra.mxu0 0
  %4728 = vmatprep.subr.bf16.mxu0 0
  %4729 = vmatpush1.bf16.msra.mxu0 0
  %4730 = vmatprep.subr.bf16.mxu0 0
  %4731 = vmatpush1.bf16.msra.mxu0 0
  %4732 = vmatprep.subr.bf16.mxu0 0
  %4733 = vmatpush1.bf16.msra.mxu0 0
  %4734 = vmatprep.subr.bf16.mxu0 0
  %4735 = vmatpush1.bf16.msra.mxu0 0
  %4736 = vmatprep.subr.bf16.mxu0 0
  %4737 = vmatpush1.bf16.msra.mxu0 0
  %4738 = vmatprep.subr.bf16.mxu0 0
  %4739 = vmatpush1.bf16.msra.mxu0 0
  %4740 = vmatprep.subr.bf16.mxu0 0
  %4741 = vmatpush1.bf16.msra.mxu0 %v4724
  %4742 = vmatprep.subr.bf16.mxu0 0
  %4743 = vmatpush2.bf16.msra.mxu0 0
  %4744 = vmatprep.subr.bf16.mxu0 0
  %4745 = vmatpush2.bf16.msra.mxu0 0
  %4746 = vmatprep.subr.bf16.mxu0 0
  %4747 = vmatpush2.bf16.msra.mxu0 0
  %4748 = vmatprep.subr.bf16.mxu0 0
  %4749 = vmatpush2.bf16.msra.mxu0 0
  %4750 = vmatprep.subr.bf16.mxu0 0
  %4751 = vmatpush2.bf16.msra.mxu0 0
  %4752 = vmatprep.subr.bf16.mxu0 0
  %4753 = vmatpush2.bf16.msra.mxu0 0
  %4754 = vmatprep.subr.bf16.mxu0 0
  %4755 = vmatpush2.bf16.msra.mxu0 0
  %4756 = vmatprep.subr.bf16.mxu0 0
  %4757 = vmatpush2.bf16.msra.mxu0 0
  %4758 = vmatprep.mubr.bf16.mxu0 0
  %4759 = vmatmul.mubr.bf16.gmra.mxu0 %v4721
  %v4760 = vpop.f32.mrf.mxu0
  %v4761 = vadd.f32 0.0, %v4760
  %v4762 = vpop.f32.mrf.mxu0
  %v4763 = vpop.f32.mrf.mxu0
  %v4764 = vpop.f32.mrf.mxu0
  %4765 = vdwg.mxu0
  %v4767 = vsel %vm86, %v4480, 0
  %v4770 = vsel %vm307, %v4488, 0
  %4772 = vmatprep.subr.bf16.mxu0 0
  %4773 = vmatpush1.bf16.msra.mxu0 0
  %4774 = vmatprep.subr.bf16.mxu0 0
  %4775 = vmatpush1.bf16.msra.mxu0 0
  %4776 = vmatprep.subr.bf16.mxu0 0
  %4777 = vmatpush1.bf16.msra.mxu0 0
  %4778 = vmatprep.subr.bf16.mxu0 0
  %4779 = vmatpush1.bf16.msra.mxu0 0
  %4780 = vmatprep.subr.bf16.mxu0 0
  %4781 = vmatpush1.bf16.msra.mxu0 0
  %4782 = vmatprep.subr.bf16.mxu0 0
  %4783 = vmatpush1.bf16.msra.mxu0 0
  %4784 = vmatprep.subr.bf16.mxu0 0
  %4785 = vmatpush1.bf16.msra.mxu0 0
  %4786 = vmatprep.subr.bf16.mxu0 0
  %4787 = vmatpush1.bf16.msra.mxu0 %v4770
  %4788 = vmatprep.subr.bf16.mxu0 0
  %4789 = vmatpush2.bf16.msra.mxu0 0
  %4790 = vmatprep.subr.bf16.mxu0 0
  %4791 = vmatpush2.bf16.msra.mxu0 0
  %4792 = vmatprep.subr.bf16.mxu0 0
  %4793 = vmatpush2.bf16.msra.mxu0 0
  %4794 = vmatprep.subr.bf16.mxu0 0
  %4795 = vmatpush2.bf16.msra.mxu0 0
  %4796 = vmatprep.subr.bf16.mxu0 0
  %4797 = vmatpush2.bf16.msra.mxu0 0
  %4798 = vmatprep.subr.bf16.mxu0 0
  %4799 = vmatpush2.bf16.msra.mxu0 0
  %4800 = vmatprep.subr.bf16.mxu0 0
  %4801 = vmatpush2.bf16.msra.mxu0 0
  %4802 = vmatprep.subr.bf16.mxu0 0
  %4803 = vmatpush2.bf16.msra.mxu0 0
  %4804 = vmatprep.mubr.bf16.mxu0 0
  %4805 = vmatmul.mubr.bf16.gmra.mxu0 %v4767
  %v4806 = vpop.f32.mrf.mxu0
  %v4807 = vadd.f32 0.0, %v4806
  %v4808 = vpop.f32.mrf.mxu0
  %v4809 = vpop.f32.mrf.mxu0
  %v4810 = vpop.f32.mrf.mxu0
  %4811 = vdwg.mxu0
  %v4813 = vsel %vm86, %v4481, 0
  %v4816 = vsel %vm307, %v4489, 0
  %4818 = vmatprep.subr.bf16.mxu0 0
  %4819 = vmatpush1.bf16.msra.mxu0 0
  %4820 = vmatprep.subr.bf16.mxu0 0
  %4821 = vmatpush1.bf16.msra.mxu0 0
  %4822 = vmatprep.subr.bf16.mxu0 0
  %4823 = vmatpush1.bf16.msra.mxu0 0
  %4824 = vmatprep.subr.bf16.mxu0 0
  %4825 = vmatpush1.bf16.msra.mxu0 0
  %4826 = vmatprep.subr.bf16.mxu0 0
  %4827 = vmatpush1.bf16.msra.mxu0 0
  %4828 = vmatprep.subr.bf16.mxu0 0
  %4829 = vmatpush1.bf16.msra.mxu0 0
  %4830 = vmatprep.subr.bf16.mxu0 0
  %4831 = vmatpush1.bf16.msra.mxu0 0
  %4832 = vmatprep.subr.bf16.mxu0 0
  %4833 = vmatpush1.bf16.msra.mxu0 %v4816
  %4834 = vmatprep.subr.bf16.mxu0 0
  %4835 = vmatpush2.bf16.msra.mxu0 0
  %4836 = vmatprep.subr.bf16.mxu0 0
  %4837 = vmatpush2.bf16.msra.mxu0 0
  %4838 = vmatprep.subr.bf16.mxu0 0
  %4839 = vmatpush2.bf16.msra.mxu0 0
  %4840 = vmatprep.subr.bf16.mxu0 0
  %4841 = vmatpush2.bf16.msra.mxu0 0
  %4842 = vmatprep.subr.bf16.mxu0 0
  %4843 = vmatpush2.bf16.msra.mxu0 0
  %4844 = vmatprep.subr.bf16.mxu0 0
  %4845 = vmatpush2.bf16.msra.mxu0 0
  %4846 = vmatprep.subr.bf16.mxu0 0
  %4847 = vmatpush2.bf16.msra.mxu0 0
  %4848 = vmatprep.subr.bf16.mxu0 0
  %4849 = vmatpush2.bf16.msra.mxu0 0
  %4850 = vmatprep.mubr.bf16.mxu0 0
  %4851 = vmatmul.mubr.bf16.gmra.mxu0 %v4813
  %v4852 = vpop.f32.mrf.mxu0
  %v4853 = vadd.f32 0.0, %v4852
  %v4854 = vpop.f32.mrf.mxu0
  %v4855 = vpop.f32.mrf.mxu0
  %v4856 = vpop.f32.mrf.mxu0
  %4857 = vdwg.mxu0
  %v4858 = vcombine.low %v4531, %v4623
  %v4859 = vcombine.high %v4531, %v4623
  %v4861 = vunpack.c.l.s4 1983009808
  %v4862 = vunpack.c.0.s8 %v4861
  %v4863 = vlaneseq
  %v4864 = vshrl.u32 %v4863, 7
  %v4865 = vsub.s32 %v4862, %v4864
  %v4866 = vrot.slane %v4858, %v4865
  %v4868 = vunpack.c.l.s4 1983009808
  %v4869 = vunpack.c.0.s8 %v4868
  %v4870 = vlaneseq
  %v4871 = vshrl.u32 %v4870, 7
  %v4872 = vsub.s32 %v4869, %v4871
  %v4873 = vrot.slane %v4859, %v4872
  %v4874 = vcombine.low %v4577, %v4669
  %v4875 = vcombine.high %v4577, %v4669
  %v4877 = vunpack.c.l.s4 1983009808
  %v4878 = vunpack.c.0.s8 %v4877
  %v4879 = vlaneseq
  %v4880 = vshrl.u32 %v4879, 7
  %v4881 = vsub.s32 %v4878, %v4880
  %v4882 = vrot.slane %v4874, %v4881
  %v4884 = vunpack.c.l.s4 1983009808
  %v4885 = vunpack.c.0.s8 %v4884
  %v4886 = vlaneseq
  %v4887 = vshrl.u32 %v4886, 7
  %v4888 = vsub.s32 %v4885, %v4887
  %v4889 = vrot.slane %v4875, %v4888
  %v4890 = vcombine.low %v4866, %v4882
  %v4891 = vcombine.high %v4866, %v4882
  %v4893 = vunpack.c.l.s4 1934713408
  %v4894 = vunpack.c.0.s8 %v4893
  %v4895 = vlaneseq
  %v4896 = vshrl.u32 %v4895, 7
  %v4897 = vsub.s32 %v4894, %v4896
  %v4898 = vrot.slane %v4890, %v4897
  %v4900 = vunpack.c.l.s4 1934713408
  %v4901 = vunpack.c.0.s8 %v4900
  %v4902 = vlaneseq
  %v4903 = vshrl.u32 %v4902, 7
  %v4904 = vsub.s32 %v4901, %v4903
  %v4905 = vrot.slane %v4891, %v4904
  %v4906 = vcombine.low %v4873, %v4889
  %v4907 = vcombine.high %v4873, %v4889
  %v4909 = vunpack.c.l.s4 1934713408
  %v4910 = vunpack.c.0.s8 %v4909
  %v4911 = vlaneseq
  %v4912 = vshrl.u32 %v4911, 7
  %v4913 = vsub.s32 %v4910, %v4912
  %v4914 = vrot.slane %v4906, %v4913
  %v4916 = vunpack.c.l.s4 1934713408
  %v4917 = vunpack.c.0.s8 %v4916
  %v4918 = vlaneseq
  %v4919 = vshrl.u32 %v4918, 7
  %v4920 = vsub.s32 %v4917, %v4919
  %v4921 = vrot.slane %v4907, %v4920
  %v4922 = vcombine.high %v4898, 0.0
  %v4923 = vcombine.high %v4905, 0.0
  %v4924 = vcombine.high %v4914, 0.0
  %v4925 = vcombine.high %v4921, 0.0
  %v4926 = vcombine.low %v4715, %v4807
  %v4927 = vcombine.high %v4715, %v4807
  %v4929 = vunpack.c.l.s4 1983009808
  %v4930 = vunpack.c.0.s8 %v4929
  %v4931 = vlaneseq
  %v4932 = vshrl.u32 %v4931, 7
  %v4933 = vsub.s32 %v4930, %v4932
  %v4934 = vrot.slane %v4926, %v4933
  %v4936 = vunpack.c.l.s4 1983009808
  %v4937 = vunpack.c.0.s8 %v4936
  %v4938 = vlaneseq
  %v4939 = vshrl.u32 %v4938, 7
  %v4940 = vsub.s32 %v4937, %v4939
  %v4941 = vrot.slane %v4927, %v4940
  %v4942 = vcombine.low %v4761, %v4853
  %v4943 = vcombine.high %v4761, %v4853
  %v4945 = vunpack.c.l.s4 1983009808
  %v4946 = vunpack.c.0.s8 %v4945
  %v4947 = vlaneseq
  %v4948 = vshrl.u32 %v4947, 7
  %v4949 = vsub.s32 %v4946, %v4948
  %v4950 = vrot.slane %v4942, %v4949
  %v4952 = vunpack.c.l.s4 1983009808
  %v4953 = vunpack.c.0.s8 %v4952
  %v4954 = vlaneseq
  %v4955 = vshrl.u32 %v4954, 7
  %v4956 = vsub.s32 %v4953, %v4955
  %v4957 = vrot.slane %v4943, %v4956
  %v4958 = vcombine.low %v4934, %v4950
  %v4959 = vcombine.high %v4934, %v4950
  %v4961 = vunpack.c.l.s4 1934713408
  %v4962 = vunpack.c.0.s8 %v4961
  %v4963 = vlaneseq
  %v4964 = vshrl.u32 %v4963, 7
  %v4965 = vsub.s32 %v4962, %v4964
  %v4966 = vrot.slane %v4958, %v4965
  %v4968 = vunpack.c.l.s4 1934713408
  %v4969 = vunpack.c.0.s8 %v4968
  %v4970 = vlaneseq
  %v4971 = vshrl.u32 %v4970, 7
  %v4972 = vsub.s32 %v4969, %v4971
  %v4973 = vrot.slane %v4959, %v4972
  %v4974 = vcombine.low %v4941, %v4957
  %v4975 = vcombine.high %v4941, %v4957
  %v4977 = vunpack.c.l.s4 1934713408
  %v4978 = vunpack.c.0.s8 %v4977
  %v4979 = vlaneseq
  %v4980 = vshrl.u32 %v4979, 7
  %v4981 = vsub.s32 %v4978, %v4980
  %v4982 = vrot.slane %v4974, %v4981
  %v4984 = vunpack.c.l.s4 1934713408
  %v4985 = vunpack.c.0.s8 %v4984
  %v4986 = vlaneseq
  %v4987 = vshrl.u32 %v4986, 7
  %v4988 = vsub.s32 %v4985, %v4987
  %v4989 = vrot.slane %v4975, %v4988
  %v4990 = vcombine.high %v4966, 0.0
  %v4991 = vcombine.high %v4973, 0.0
  %v4992 = vcombine.high %v4982, 0.0
  %v4993 = vcombine.high %v4989, 0.0
  %v4994 = vcombine.low %v4898, %v4905
  %v4996 = vunpack.c.l.s4 1983009808
  %v4997 = vunpack.c.0.s8 %v4996
  %v4998 = vlaneseq
  %v4999 = vshrl.u32 %v4998, 7
  %v5000 = vsub.s32 %v4997, %v4999
  %v5001 = vrot.slane %v4994, %v5000
  %v5002 = vcombine.low %v4922, %v4923
  %v5004 = vunpack.c.l.s4 1983009808
  %v5005 = vunpack.c.0.s8 %v5004
  %v5006 = vlaneseq
  %v5007 = vshrl.u32 %v5006, 7
  %v5008 = vsub.s32 %v5005, %v5007
  %v5009 = vrot.slane %v5002, %v5008
  %v5010 = vcombine.low %v4914, %v4921
  %v5012 = vunpack.c.l.s4 1983009808
  %v5013 = vunpack.c.0.s8 %v5012
  %v5014 = vlaneseq
  %v5015 = vshrl.u32 %v5014, 7
  %v5016 = vsub.s32 %v5013, %v5015
  %v5017 = vrot.slane %v5010, %v5016
  %v5018 = vcombine.low %v4924, %v4925
  %v5020 = vunpack.c.l.s4 1983009808
  %v5021 = vunpack.c.0.s8 %v5020
  %v5022 = vlaneseq
  %v5023 = vshrl.u32 %v5022, 7
  %v5024 = vsub.s32 %v5021, %v5023
  %v5025 = vrot.slane %v5018, %v5024
  %v5026 = vcombine.low %v5001, %v5009
  %v5027 = vcombine.high %v5001, %v5009
  %v5029 = vunpack.c.l.s4 1934713408
  %v5030 = vunpack.c.0.s8 %v5029
  %v5031 = vlaneseq
  %v5032 = vshrl.u32 %v5031, 7
  %v5033 = vsub.s32 %v5030, %v5032
  %v5034 = vrot.slane %v5026, %v5033
  %v5036 = vunpack.c.l.s4 1934713408
  %v5037 = vunpack.c.0.s8 %v5036
  %v5038 = vlaneseq
  %v5039 = vshrl.u32 %v5038, 7
  %v5040 = vsub.s32 %v5037, %v5039
  %v5041 = vrot.slane %v5027, %v5040
  %v5042 = vcombine.low %v5017, %v5025
  %v5043 = vcombine.high %v5017, %v5025
  %v5045 = vunpack.c.l.s4 1934713408
  %v5046 = vunpack.c.0.s8 %v5045
  %v5047 = vlaneseq
  %v5048 = vshrl.u32 %v5047, 7
  %v5049 = vsub.s32 %v5046, %v5048
  %v5050 = vrot.slane %v5042, %v5049
  %v5052 = vunpack.c.l.s4 1934713408
  %v5053 = vunpack.c.0.s8 %v5052
  %v5054 = vlaneseq
  %v5055 = vshrl.u32 %v5054, 7
  %v5056 = vsub.s32 %v5053, %v5055
  %v5057 = vrot.slane %v5043, %v5056
  %v5058 = vcombine.low %v5034, %v5050
  %v5059 = vcombine.high %v5034, %v5050
  %v5060 = vcombine.low %v5041, %v5057
  %v5061 = vcombine.high %v5041, %v5057
  %v5062 = vcombine.low %v4966, %v4973
  %v5064 = vunpack.c.l.s4 1983009808
  %v5065 = vunpack.c.0.s8 %v5064
  %v5066 = vlaneseq
  %v5067 = vshrl.u32 %v5066, 7
  %v5068 = vsub.s32 %v5065, %v5067
  %v5069 = vrot.slane %v5062, %v5068
  %v5070 = vcombine.low %v4990, %v4991
  %v5072 = vunpack.c.l.s4 1983009808
  %v5073 = vunpack.c.0.s8 %v5072
  %v5074 = vlaneseq
  %v5075 = vshrl.u32 %v5074, 7
  %v5076 = vsub.s32 %v5073, %v5075
  %v5077 = vrot.slane %v5070, %v5076
  %v5078 = vcombine.low %v4982, %v4989
  %v5080 = vunpack.c.l.s4 1983009808
  %v5081 = vunpack.c.0.s8 %v5080
  %v5082 = vlaneseq
  %v5083 = vshrl.u32 %v5082, 7
  %v5084 = vsub.s32 %v5081, %v5083
  %v5085 = vrot.slane %v5078, %v5084
  %v5086 = vcombine.low %v4992, %v4993
  %v5088 = vunpack.c.l.s4 1983009808
  %v5089 = vunpack.c.0.s8 %v5088
  %v5090 = vlaneseq
  %v5091 = vshrl.u32 %v5090, 7
  %v5092 = vsub.s32 %v5089, %v5091
  %v5093 = vrot.slane %v5086, %v5092
  %v5094 = vcombine.low %v5069, %v5077
  %v5095 = vcombine.high %v5069, %v5077
  %v5097 = vunpack.c.l.s4 1934713408
  %v5098 = vunpack.c.0.s8 %v5097
  %v5099 = vlaneseq
  %v5100 = vshrl.u32 %v5099, 7
  %v5101 = vsub.s32 %v5098, %v5100
  %v5102 = vrot.slane %v5094, %v5101
  %v5104 = vunpack.c.l.s4 1934713408
  %v5105 = vunpack.c.0.s8 %v5104
  %v5106 = vlaneseq
  %v5107 = vshrl.u32 %v5106, 7
  %v5108 = vsub.s32 %v5105, %v5107
  %v5109 = vrot.slane %v5095, %v5108
  %v5110 = vcombine.low %v5085, %v5093
  %v5111 = vcombine.high %v5085, %v5093
  %v5113 = vunpack.c.l.s4 1934713408
  %v5114 = vunpack.c.0.s8 %v5113
  %v5115 = vlaneseq
  %v5116 = vshrl.u32 %v5115, 7
  %v5117 = vsub.s32 %v5114, %v5116
  %v5118 = vrot.slane %v5110, %v5117
  %v5120 = vunpack.c.l.s4 1934713408
  %v5121 = vunpack.c.0.s8 %v5120
  %v5122 = vlaneseq
  %v5123 = vshrl.u32 %v5122, 7
  %v5124 = vsub.s32 %v5121, %v5123
  %v5125 = vrot.slane %v5111, %v5124
  %v5126 = vcombine.low %v5102, %v5118
  %v5127 = vcombine.high %v5102, %v5118
  %v5128 = vcombine.low %v5109, %v5125
  %v5129 = vcombine.high %v5109, %v5125
  %5132 = vrot.lane.b32.xlu0 %v5059, 8
  %v5133 = vpop.permute.xlu0 %5132
  %5134 = vrot.lane.b32.xlu0 %v5127, 8
  %v5135 = vpop.permute.xlu0 %5134
  %5140 = vrot.lane.b32.xlu0 %v5060, 16
  %v5141 = vpop.permute.xlu0 %5140
  %5142 = vrot.lane.b32.xlu0 %v5128, 16
  %v5143 = vpop.permute.xlu0 %5142
  %5148 = vrot.lane.b32.xlu0 %v5061, 24
  %v5149 = vpop.permute.xlu0 %5148
  %5150 = vrot.lane.b32.xlu0 %v5129, 24
  %v5151 = vpop.permute.xlu0 %5150
  %v5154 = vsel %vm86, %v5058, %v5133
  %v5155 = vsel %vm86, %v5126, %v5135
  %v5156 = vsel %vm218, %v5154, %v5141
  %v5157 = vsel %vm218, %v5155, %v5143
  %v5158 = vsel %vm2650, %v5156, %v5149
  %v5159 = vsel %vm2650, %v5157, %v5151
  %s5160 = scalar_lea.vmem %s9, 16
  %v5161 = vld [vmem:[%s5160] sm:$0xf]
  %v5162 = vld [vmem:[%s5160 + $0x4] sm:$0xf]
  %v5163 = vld [vmem:[%s5160 + $0x8] sm:$0xf]
  %v5164 = vld [vmem:[%s5160 + $0xc] sm:$0xf]
  %v5165 = vpack.c.bf16 %v5159, %v5158
  %s5166 = scalar_lea.vmem %s10, 1
  %v5167 = vld [vmem:[%s5166] sm:$0x1]
  %v5169 = vlaneseq
  %v5170 = vshrl.u32 %v5169, 7
  %v5171 = vsub.s32 0, %v5170
  %v5172 = vrot.slane %v5167, %v5171
  %v5178 = vunpack.c.l.b16 %v5161
  %v5179 = vunpack.c.l.b16 %v5162
  %v5180 = vunpack.c.l.b16 %v5163
  %v5181 = vunpack.c.l.b16 %v5164
  %v5182 = vpack.c.b16 %v5179, %v5178
  %v5183 = vpack.c.b16 %v5181, %v5180
  %v5187 = vsel %vm397, %v5165, 0
  %5189 = vmatprep.subr.bf16.mxu0 0
  %5190 = vmatpush1.bf16.msra.mxu0 0
  %5191 = vmatprep.subr.bf16.mxu0 0
  %5192 = vmatpush1.bf16.msra.mxu0 0
  %5193 = vmatprep.subr.bf16.mxu0 0
  %5194 = vmatpush1.bf16.msra.mxu0 0
  %5195 = vmatprep.subr.bf16.mxu0 0
  %5196 = vmatpush1.bf16.msra.mxu0 0
  %5197 = vmatprep.subr.bf16.mxu0 0
  %5198 = vmatpush1.bf16.msra.mxu0 0
  %5199 = vmatprep.subr.bf16.mxu0 0
  %5200 = vmatpush1.bf16.msra.mxu0 0
  %5201 = vmatprep.subr.bf16.mxu0 0
  %5202 = vmatpush1.bf16.msra.mxu0 %v5183
  %5203 = vmatprep.subr.bf16.mxu0 0
  %5204 = vmatpush1.bf16.msra.mxu0 %v5182
  %5205 = vmatprep.subr.bf16.mxu0 0
  %5206 = vmatpush2.bf16.msra.mxu0 0
  %5207 = vmatprep.subr.bf16.mxu0 0
  %5208 = vmatpush2.bf16.msra.mxu0 0
  %5209 = vmatprep.subr.bf16.mxu0 0
  %5210 = vmatpush2.bf16.msra.mxu0 0
  %5211 = vmatprep.subr.bf16.mxu0 0
  %5212 = vmatpush2.bf16.msra.mxu0 0
  %5213 = vmatprep.subr.bf16.mxu0 0
  %5214 = vmatpush2.bf16.msra.mxu0 0
  %5215 = vmatprep.subr.bf16.mxu0 0
  %5216 = vmatpush2.bf16.msra.mxu0 0
  %5217 = vmatprep.subr.bf16.mxu0 0
  %5218 = vmatpush2.bf16.msra.mxu0 0
  %5219 = vmatprep.subr.bf16.mxu0 0
  %5220 = vmatpush2.bf16.msra.mxu0 0
  %5221 = vmatprep.mubr.bf16.mxu0 0
  %5222 = vmatmul.mubr.bf16.gmra.mxu0 %v5187
  %v5223 = vpop.f32.mrf.mxu0
  %v5224 = vadd.f32 %v5172, %v5223
  %v5225 = vpop.f32.mrf.mxu0
  %v5226 = vpop.f32.mrf.mxu0
  %v5227 = vadd.f32 %v5172, %v5226
  %v5228 = vpop.f32.mrf.mxu0
  %5229 = vdwg.mxu0
  %v5230 = vadd.f32 %v2982, %v5224
  %v5231 = vadd.f32 %v2983, %v5227
  %s5232 = scalar_lea.vmem %s11, 1
  %v5233 = vld [vmem:[%s5232] sm:$0x1]
  %s5234 = scalar_lea.vmem %s12, 1
  %v5235 = vld [vmem:[%s5234] sm:$0x1]
  %v5236 = vsel %vm397, %v5230, 0.0
  %5237 = vadd.xlane.f32.xlu0 %v5236
  %v5238 = vpop.xlane.xlu0 %5237
  %v5239 = vsel %vm397, %v5231, 0.0
  %5240 = vadd.xlane.f32.xlu0 %v5239
  %v5241 = vpop.xlane.xlu0 %5240
  %v5242 = vmul.f32 %v5238, %v404
  %v5243 = vmul.f32 %v5241, %v404
  %v5244 = vsub.f32 %v5230, %v5242
  %v5245 = vsub.f32 %v5231, %v5243
  %v5246 = vmul.f32 %v5244, %v5244
  %v5247 = vmul.f32 %v5245, %v5245
  %v5248 = vsel %vm397, %v5246, 0.0
  %5249 = vadd.xlane.f32.xlu0 %v5248
  %v5250 = vpop.xlane.xlu0 %5249
  %v5251 = vsel %vm397, %v5247, 0.0
  %5252 = vadd.xlane.f32.xlu0 %v5251
  %v5253 = vpop.xlane.xlu0 %5252
  %v5254 = vmul.f32 %v5250, %v404
  %v5255 = vmul.f32 %v5253, %v404
  %v5256 = vadd.f32 %v5254, 1e-05
  %v5257 = vadd.f32 %v5255, 1e-05
  %v5258 = vrsqrt.pop %v5256
  %v5259 = vrsqrt.pop %v5257
  %v5260 = vmul.f32 %v5244, %v5258
  %v5261 = vmul.f32 %v5245, %v5259
  %v5263 = vlaneseq
  %v5264 = vshrl.u32 %v5263, 7
  %v5265 = vsub.s32 0, %v5264
  %v5266 = vrot.slane %v5233, %v5265
  %v5268 = vmul.f32 %v5260, %v5266
  %v5269 = vmul.f32 %v5261, %v5266
  %v5271 = vlaneseq
  %v5272 = vshrl.u32 %v5271, 7
  %v5273 = vsub.s32 0, %v5272
  %v5274 = vrot.slane %v5235, %v5273
  %v5276 = vadd.f32 %v5268, %v5274
  %v5277 = vadd.f32 %v5269, %v5274
  %s5278 = scalar_lea.vmem %s13, 16
  %v5279 = vld [vmem:[%s5278] sm:$0xf]
  %v5280 = vld [vmem:[%s5278 + $0x4] sm:$0xf]
  %v5281 = vld [vmem:[%s5278 + $0x8] sm:$0xf]
  %v5282 = vld [vmem:[%s5278 + $0xc] sm:$0xf]
  %v5283 = vpack.c.bf16 %v5277, %v5276
  %s5284 = scalar_lea.vmem %s14, 1
  %v5285 = vld [vmem:[%s5284] sm:$0x1]
  %v5287 = vlaneseq
  %v5288 = vshrl.u32 %v5287, 7
  %v5289 = vsub.s32 0, %v5288
  %v5290 = vrot.slane %v5285, %v5289
  %v5296 = vunpack.c.l.b16 %v5279
  %v5297 = vunpack.c.l.b16 %v5280
  %v5298 = vunpack.c.l.b16 %v5281
  %v5299 = vunpack.c.l.b16 %v5282
  %v5300 = vpack.c.b16 %v5297, %v5296
  %v5301 = vpack.c.b16 %v5299, %v5298
  %v5305 = vsel %vm397, %v5283, 0
  %5307 = vmatprep.subr.bf16.mxu0 0
  %5308 = vmatpush1.bf16.msra.mxu0 0
  %5309 = vmatprep.subr.bf16.mxu0 0
  %5310 = vmatpush1.bf16.msra.mxu0 0
  %5311 = vmatprep.subr.bf16.mxu0 0
  %5312 = vmatpush1.bf16.msra.mxu0 0
  %5313 = vmatprep.subr.bf16.mxu0 0
  %5314 = vmatpush1.bf16.msra.mxu0 0
  %5315 = vmatprep.subr.bf16.mxu0 0
  %5316 = vmatpush1.bf16.msra.mxu0 0
  %5317 = vmatprep.subr.bf16.mxu0 0
  %5318 = vmatpush1.bf16.msra.mxu0 0
  %5319 = vmatprep.subr.bf16.mxu0 0
  %5320 = vmatpush1.bf16.msra.mxu0 %v5301
  %5321 = vmatprep.subr.bf16.mxu0 0
  %5322 = vmatpush1.bf16.msra.mxu0 %v5300
  %5323 = vmatprep.subr.bf16.mxu0 0
  %5324 = vmatpush2.bf16.msra.mxu0 0
  %5325 = vmatprep.subr.bf16.mxu0 0
  %5326 = vmatpush2.bf16.msra.mxu0 0
  %5327 = vmatprep.subr.bf16.mxu0 0
  %5328 = vmatpush2.bf16.msra.mxu0 0
  %5329 = vmatprep.subr.bf16.mxu0 0
  %5330 = vmatpush2.bf16.msra.mxu0 0
  %5331 = vmatprep.subr.bf16.mxu0 0
  %5332 = vmatpush2.bf16.msra.mxu0 0
  %5333 = vmatprep.subr.bf16.mxu0 0
  %5334 = vmatpush2.bf16.msra.mxu0 0
  %5335 = vmatprep.subr.bf16.mxu0 0
  %5336 = vmatpush2.bf16.msra.mxu0 0
  %5337 = vmatprep.subr.bf16.mxu0 0
  %5338 = vmatpush2.bf16.msra.mxu0 0
  %5339 = vmatprep.mubr.bf16.mxu0 0
  %5340 = vmatmul.mubr.bf16.gmra.mxu0 %v5305
  %v5341 = vpop.f32.mrf.mxu0
  %v5342 = vadd.f32 %v5290, %v5341
  %v5343 = vpop.f32.mrf.mxu0
  %v5344 = vpop.f32.mrf.mxu0
  %v5345 = vadd.f32 %v5290, %v5344
  %v5346 = vpop.f32.mrf.mxu0
  %5347 = vdwg.mxu0
  %v5348 = vmul.f32 %v5342, %v5342
  %v5349 = vmul.f32 %v5345, %v5345
  %v5350 = vmul.f32 %v5342, %v5348
  %v5351 = vmul.f32 %v5345, %v5349
  %v5352 = vmul.f32 %v5350, 0.044715
  %v5353 = vmul.f32 %v5351, 0.044715
  %v5354 = vadd.f32 %v5342, %v5352
  %v5355 = vadd.f32 %v5345, %v5353
  %v5356 = vmul.f32 %v5354, 0.7978846
  %v5357 = vmul.f32 %v5355, 0.7978846
  %v5358 = vtanh.pop %v5356
  %v5359 = vtanh.pop %v5357
  %v5360 = vadd.f32 %v5358, 1.0
  %v5361 = vadd.f32 %v5359, 1.0
  %v5362 = vmul.f32 %v5360, 0.5
  %v5363 = vmul.f32 %v5361, 0.5
  %v5364 = vmul.f32 %v5342, %v5362
  %v5365 = vmul.f32 %v5345, %v5363
  %s5366 = scalar_lea.vmem %s15, 32
  %v5367 = vld [vmem:[%s5366] sm:$0xf]
  %v5368 = vld [vmem:[%s5366 + $0x4] sm:$0xf]
  %v5369 = vld [vmem:[%s5366 + $0x8] sm:$0xf]
  %v5370 = vld [vmem:[%s5366 + $0xc] sm:$0xf]
  %v5371 = vld [vmem:[%s5366 + $0x10] sm:$0xf]
  %v5372 = vld [vmem:[%s5366 + $0x14] sm:$0xf]
  %v5373 = vld [vmem:[%s5366 + $0x18] sm:$0xf]
  %v5374 = vld [vmem:[%s5366 + $0x1c] sm:$0xf]
  %v5375 = vpack.c.bf16 %v5365, %v5364
  %s5376 = scalar_lea.vmem %s16, 1
  %v5377 = vld [vmem:[%s5376] sm:$0x1]
  %v5379 = vlaneseq
  %v5380 = vshrl.u32 %v5379, 7
  %v5381 = vsub.s32 0, %v5380
  %v5382 = vrot.slane %v5377, %v5381
  %v5392 = vunpack.c.l.b16 %v5367
  %v5393 = vunpack.c.l.b16 %v5368
  %v5394 = vunpack.c.l.b16 %v5369
  %v5395 = vunpack.c.l.b16 %v5370
  %v5396 = vunpack.c.l.b16 %v5371
  %v5397 = vunpack.c.l.b16 %v5372
  %v5398 = vunpack.c.l.b16 %v5373
  %v5399 = vunpack.c.l.b16 %v5374
  %v5400 = vpack.c.b16 %v5393, %v5392
  %v5401 = vpack.c.b16 %v5395, %v5394
  %v5402 = vpack.c.b16 %v5397, %v5396
  %v5403 = vpack.c.b16 %v5399, %v5398
  %v5409 = vsel %vm2893, %v5375, 0
  %5411 = vmatprep.subr.bf16.mxu0 0
  %5412 = vmatpush1.bf16.msra.mxu0 0
  %5413 = vmatprep.subr.bf16.mxu0 0
  %5414 = vmatpush1.bf16.msra.mxu0 0
  %5415 = vmatprep.subr.bf16.mxu0 0
  %5416 = vmatpush1.bf16.msra.mxu0 0
  %5417 = vmatprep.subr.bf16.mxu0 0
  %5418 = vmatpush1.bf16.msra.mxu0 0
  %5419 = vmatprep.subr.bf16.mxu0 0
  %5420 = vmatpush1.bf16.msra.mxu0 %v5403
  %5421 = vmatprep.subr.bf16.mxu0 0
  %5422 = vmatpush1.bf16.msra.mxu0 %v5402
  %5423 = vmatprep.subr.bf16.mxu0 0
  %5424 = vmatpush1.bf16.msra.mxu0 %v5401
  %5425 = vmatprep.subr.bf16.mxu0 0
  %5426 = vmatpush1.bf16.msra.mxu0 %v5400
  %5427 = vmatprep.subr.bf16.mxu0 0
  %5428 = vmatpush2.bf16.msra.mxu0 0
  %5429 = vmatprep.subr.bf16.mxu0 0
  %5430 = vmatpush2.bf16.msra.mxu0 0
  %5431 = vmatprep.subr.bf16.mxu0 0
  %5432 = vmatpush2.bf16.msra.mxu0 0
  %5433 = vmatprep.subr.bf16.mxu0 0
  %5434 = vmatpush2.bf16.msra.mxu0 0
  %5435 = vmatprep.subr.bf16.mxu0 0
  %5436 = vmatpush2.bf16.msra.mxu0 0
  %5437 = vmatprep.subr.bf16.mxu0 0
  %5438 = vmatpush2.bf16.msra.mxu0 0
  %5439 = vmatprep.subr.bf16.mxu0 0
  %5440 = vmatpush2.bf16.msra.mxu0 0
  %5441 = vmatprep.subr.bf16.mxu0 0
  %5442 = vmatpush2.bf16.msra.mxu0 0
  %5443 = vmatprep.mubr.bf16.mxu0 0
  %5444 = vmatmul.mubr.bf16.gmra.mxu0 %v5409
  %v5445 = vpop.f32.mrf.mxu0
  %v5446 = vadd.f32 %v5382, %v5445
  %v5447 = vpop.f32.mrf.mxu0
  %v5448 = vpop.f32.mrf.mxu0
  %v5449 = vadd.f32 %v5382, %v5448
  %v5450 = vpop.f32.mrf.mxu0
  %5451 = vdwg.mxu0
  %v5452 = vadd.f32 %v5276, %v5446
  %v5453 = vadd.f32 %v5277, %v5449
  %s5454 = scalar_lea.vmem %s17, 1
  %v5455 = vld [vmem:[%s5454] sm:$0x1]
  %s5456 = scalar_lea.vmem %s18, 1
  %v5457 = vld [vmem:[%s5456] sm:$0x1]
  %v5458 = vsel %vm397, %v5452, 0.0
  %5459 = vadd.xlane.f32.xlu0 %v5458
  %v5460 = vpop.xlane.xlu0 %5459
  %v5461 = vsel %vm397, %v5453, 0.0
  %5462 = vadd.xlane.f32.xlu0 %v5461
  %v5463 = vpop.xlane.xlu0 %5462
  %v5464 = vmul.f32 %v5460, %v404
  %v5465 = vmul.f32 %v5463, %v404
  %v5466 = vsub.f32 %v5452, %v5464
  %v5467 = vsub.f32 %v5453, %v5465
  %v5468 = vmul.f32 %v5466, %v5466
  %v5469 = vmul.f32 %v5467, %v5467
  %v5470 = vsel %vm397, %v5468, 0.0
  %5471 = vadd.xlane.f32.xlu0 %v5470
  %v5472 = vpop.xlane.xlu0 %5471
  %v5473 = vsel %vm397, %v5469, 0.0
  %5474 = vadd.xlane.f32.xlu0 %v5473
  %v5475 = vpop.xlane.xlu0 %5474
  %v5476 = vmul.f32 %v5472, %v404
  %v5477 = vmul.f32 %v5475, %v404
  %v5478 = vadd.f32 %v5476, 1e-05
  %v5479 = vadd.f32 %v5477, 1e-05
  %v5480 = vrsqrt.pop %v5478
  %v5481 = vrsqrt.pop %v5479
  %v5482 = vmul.f32 %v5466, %v5480
  %v5483 = vmul.f32 %v5467, %v5481
  %v5485 = vlaneseq
  %v5486 = vshrl.u32 %v5485, 7
  %v5487 = vsub.s32 0, %v5486
  %v5488 = vrot.slane %v5455, %v5487
  %v5490 = vmul.f32 %v5482, %v5488
  %v5491 = vmul.f32 %v5483, %v5488
  %v5493 = vlaneseq
  %v5494 = vshrl.u32 %v5493, 7
  %v5495 = vsub.s32 0, %v5494
  %v5496 = vrot.slane %v5457, %v5495
  %v5498 = vadd.f32 %v5490, %v5496
  %v5499 = vadd.f32 %v5491, %v5496
  %v5500 = vld [vmem:[%s19] sm:$0xf]
  %v5501 = vld [vmem:[%s19 + $0x4] sm:$0xf]
  %v5502 = vld [vmem:[%s19 + $0x8] sm:$0xf]
  %v5503 = vld [vmem:[%s19 + $0xc] sm:$0xf]
  %v5504 = vpack.c.bf16 %v5498, %v5498
  %v5505 = vpack.c.bf16 %v5499, %v5499
  %v5506 = vld [vmem:[%s20] sm:$0x1]
  %v5508 = vlaneseq
  %v5509 = vshrl.u32 %v5508, 7
  %v5510 = vsub.s32 0, %v5509
  %v5511 = vrot.slane %v5506, %v5510
  %v5515 = vunpack.c.l.b16 %v5504
  %v5516 = vunpack.c.l.b16 %v5505
  %v5517 = vrot.slane %v5516, 7
  %vm5518 = vcmask 1041409
  %v5519 = vsel %vm5518, %v5517, %v5515
  %v5520 = vpack.c.b16 %v5519, %v5519
  %v5525 = vunpack.c.l.b16 %v5500
  %v5526 = vunpack.c.l.b16 %v5501
  %v5527 = vunpack.c.l.b16 %v5502
  %v5528 = vunpack.c.l.b16 %v5503
  %v5529 = vpack.c.b16 %v5526, %v5525
  %v5530 = vpack.c.b16 %v5528, %v5527
  %v5534 = vsel %vm397, %v5520, 0
  %5536 = vmatprep.subr.bf16.mxu0 0
  %5537 = vmatpush1.bf16.msra.mxu0 0
  %5538 = vmatprep.subr.bf16.mxu0 0
  %5539 = vmatpush1.bf16.msra.mxu0 0
  %5540 = vmatprep.subr.bf16.mxu0 0
  %5541 = vmatpush1.bf16.msra.mxu0 0
  %5542 = vmatprep.subr.bf16.mxu0 0
  %5543 = vmatpush1.bf16.msra.mxu0 0
  %5544 = vmatprep.subr.bf16.mxu0 0
  %5545 = vmatpush1.bf16.msra.mxu0 0
  %5546 = vmatprep.subr.bf16.mxu0 0
  %5547 = vmatpush1.bf16.msra.mxu0 0
  %5548 = vmatprep.subr.bf16.mxu0 0
  %5549 = vmatpush1.bf16.msra.mxu0 %v5530
  %5550 = vmatprep.subr.bf16.mxu0 0
  %5551 = vmatpush1.bf16.msra.mxu0 %v5529
  %5552 = vmatprep.subr.bf16.mxu0 0
  %5553 = vmatpush2.bf16.msra.mxu0 0
  %5554 = vmatprep.subr.bf16.mxu0 0
  %5555 = vmatpush2.bf16.msra.mxu0 0
  %5556 = vmatprep.subr.bf16.mxu0 0
  %5557 = vmatpush2.bf16.msra.mxu0 0
  %5558 = vmatprep.subr.bf16.mxu0 0
  %5559 = vmatpush2.bf16.msra.mxu0 0
  %5560 = vmatprep.subr.bf16.mxu0 0
  %5561 = vmatpush2.bf16.msra.mxu0 0
  %5562 = vmatprep.subr.bf16.mxu0 0
  %5563 = vmatpush2.bf16.msra.mxu0 0
  %5564 = vmatprep.subr.bf16.mxu0 0
  %5565 = vmatpush2.bf16.msra.mxu0 0
  %5566 = vmatprep.subr.bf16.mxu0 0
  %5567 = vmatpush2.bf16.msra.mxu0 0
  %5568 = vmatprep.mubr.bf16.mxu0 0
  %5569 = vmatmul.mubr.bf16.gmra.mxu0 %v5534
  %v5570 = vpop.f32.mrf.mxu0
  %v5571 = vadd.f32 %v5511, %v5570
  %v5572 = vpop.f32.mrf.mxu0
  %v5573 = vpop.f32.mrf.mxu0
  %v5574 = vpop.f32.mrf.mxu0
  %5575 = vdwg.mxu0
  %v5576 = vtanh.pop %v5571
  %v5577 = vld [vmem:[%s21] sm:$0xf]
  %v5578 = vld [vmem:[%s21 + $0x4] sm:$0xf]
  %v5579 = vld [vmem:[%s21 + $0x8] sm:$0xf]
  %v5580 = vld [vmem:[%s21 + $0xc] sm:$0xf]
  %v5581 = vpack.c.bf16 %v5576, %v5576
  %v5582 = vld [vmem:[%s22] sm:$0x1]
  %v5584 = vlaneseq
  %v5585 = vshrl.u32 %v5584, 7
  %v5586 = vsub.s32 0, %v5585
  %v5587 = vrot.slane %v5582, %v5586
  %v5593 = vunpack.c.l.b16 %v5577
  %v5594 = vunpack.c.l.b16 %v5578
  %v5595 = vunpack.c.l.b16 %v5579
  %v5596 = vunpack.c.l.b16 %v5580
  %v5597 = vpack.c.b16 %v5594, %v5593
  %v5598 = vpack.c.b16 %v5596, %v5595
  %v5602 = vsel %vm397, %v5581, 0
  %5604 = vmatprep.subr.bf16.mxu0 0
  %5605 = vmatpush1.bf16.msra.mxu0 0
  %5606 = vmatprep.subr.bf16.mxu0 0
  %5607 = vmatpush1.bf16.msra.mxu0 0
  %5608 = vmatprep.subr.bf16.mxu0 0
  %5609 = vmatpush1.bf16.msra.mxu0 0
  %5610 = vmatprep.subr.bf16.mxu0 0
  %5611 = vmatpush1.bf16.msra.mxu0 0
  %5612 = vmatprep.subr.bf16.mxu0 0
  %5613 = vmatpush1.bf16.msra.mxu0 0
  %5614 = vmatprep.subr.bf16.mxu0 0
  %5615 = vmatpush1.bf16.msra.mxu0 0
  %5616 = vmatprep.subr.bf16.mxu0 0
  %5617 = vmatpush1.bf16.msra.mxu0 %v5598
  %5618 = vmatprep.subr.bf16.mxu0 0
  %5619 = vmatpush1.bf16.msra.mxu0 %v5597
  %5620 = vmatprep.subr.bf16.mxu0 0
  %5621 = vmatpush2.bf16.msra.mxu0 0
  %5622 = vmatprep.subr.bf16.mxu0 0
  %5623 = vmatpush2.bf16.msra.mxu0 0
  %5624 = vmatprep.subr.bf16.mxu0 0
  %5625 = vmatpush2.bf16.msra.mxu0 0
  %5626 = vmatprep.subr.bf16.mxu0 0
  %5627 = vmatpush2.bf16.msra.mxu0 0
  %5628 = vmatprep.subr.bf16.mxu0 0
  %5629 = vmatpush2.bf16.msra.mxu0 0
  %5630 = vmatprep.subr.bf16.mxu0 0
  %5631 = vmatpush2.bf16.msra.mxu0 0
  %5632 = vmatprep.subr.bf16.mxu0 0
  %5633 = vmatpush2.bf16.msra.mxu0 0
  %5634 = vmatprep.subr.bf16.mxu0 0
  %5635 = vmatpush2.bf16.msra.mxu0 0
  %5636 = vmatprep.mubr.bf16.mxu0 0
  %5637 = vmatmul.mubr.bf16.gmra.mxu0 %v5602
  %v5638 = vpop.f32.mrf.mxu0
  %v5639 = vadd.f32 %v5587, %v5638
  %v5640 = vpop.f32.mrf.mxu0
  %v5641 = vpop.f32.mrf.mxu0
  %v5642 = vpop.f32.mrf.mxu0
  %5643 = vdwg.mxu0
  %vm5644 = vcmask 9216
  %v5645 = vsel %vm5644, %v5639, -inf
  %5646 = vmax.xlane.f32.xlu0 %v5645
  %v5647 = vpop.xlane.xlu0 %5646
  %v5648 = vsub.f32 %v5639, %v5647
  %v5649 = vmul.f32 %v5648, 1.442695
  %v5650 = vpow.pop %v5649
  %v5651 = vsel %vm5644, %v5650, 0.0
  %5652 = vadd.xlane.f32.xlu0 %v5651
  %v5653 = vpop.xlane.xlu0 %5652
  %v5654 = vrcp.pop %v5653
  %v5655 = vmul.f32 %v5650, %v5654
  %v5658 = vrot.slane %v5499, 7
  %v5659 = vsel %vm5518, %v5658, %v5498
  %5660 = vrot.lane.b32.xlu0 %v5659, 2
  %v5661 = vpop.permute.xlu0 %5660
  %vm5663 = vcmask 15360
  %v5664 = vsel %vm5663, %v5655, %v5661
  %vm5665 = vcmask 277504
  %v5666 = vsel %vm5665, %v5664, 0.0
  %5667 = vst [vmem:[%s23] sm:$0x3] %v5666
  // Predicated region
  $region94: #{clr_forward.1} parent=0 // pred_check
    _
  $region95: #{clr_forward.1} parent=0 // pred_check_branch
    %5669 = sbr.rel (0) target = $region97
  $region96: #{clr_forward.1} parent=0 // pred_region
    _
  $region97: #{clr_forward.1} parent=0 // pred_fallthru
    _
  // Predicated region
  $region98: #{clr_forward.1} parent=0 // pred_check
    _
  $region99: #{clr_forward.1} parent=0 // pred_check_branch
    %5671 = sbr.rel (0) target = $region101
  $region100: #{clr_forward.1} parent=0 // pred_region
    _
  $region101: #{clr_forward.1} parent=0 // pred_fallthru
    _

</llo_original>
